<compile_context>
chip_gen: v7x
topology: tpu7x:2x2x1
jax: 0.10.0
libtpu: 0.0.40
codegen_flags: <defaults>
</compile_context>

<pallas_src>
import math
import jax
import jax.numpy as jnp
from jax.experimental import pallas as pl
from jax.experimental.pallas import tpu as pltpu

# ----------------------------- configuration --------------------------------
BS = 2
C_IN = 4
H = W = 16
PATCH = 8
VIT_DIM = 64             # encoder (ViT) embedding dim
D_MODEL = 32             # transformer d_model
NHEAD = 4
HEAD_DIM = D_MODEL // NHEAD
NUM_QUERIES = 8
DIM_FF = 64
NUM_DEC_LAYERS = 1
LN_EPS = 1e-5

PW, PH = W // PATCH, H // PATCH              # encoder.dim_patches
NUM_PATCHES = PW * PH
SEQ = NUM_PATCHES + 1                        # cls token + patches
SEQ_PAD = ((SEQ + 7) // 8) * 8               # pad sequence to full sublanes
PATCH_FEATS = C_IN * PATCH * PATCH
POS_EMBED_VERSION = "learned_cls"            # branch implemented from the module


# --------------------------- weight-slab layout -------------------------------
def _slab_layout():
    """Static layout of the single packed weight slab: name -> (row0, rows, cols)."""
    entries = [
        ("enc_w", PATCH_FEATS, VIT_DIM),
        ("enc_row_bias", SEQ_PAD, VIT_DIM),
        ("proj_w", VIT_DIM, D_MODEL),
        ("vitln_g", 1, D_MODEL),
        ("vitln_b", 1, D_MODEL),
        ("pos_embed", SEQ_PAD, D_MODEL),
    ]
    for l in range(NUM_DEC_LAYERS):
        p = f"l{l}_"
        entries += [
            (p + "sa_wqk", D_MODEL, 2 * D_MODEL), (p + "sa_bqk", 1, 2 * D_MODEL),
            (p + "sa_wv", D_MODEL, D_MODEL),      (p + "sa_bv", 1, D_MODEL),
            (p + "sa_wo", D_MODEL, D_MODEL),      (p + "sa_bo", 1, D_MODEL),
            (p + "n1_g", 1, D_MODEL),             (p + "n1_b", 1, D_MODEL),
            (p + "ca_wq", D_MODEL, D_MODEL),      (p + "ca_bq", 1, D_MODEL),
            (p + "ca_wk", D_MODEL, D_MODEL),      (p + "ca_bk", 1, D_MODEL),
            (p + "ca_wv", D_MODEL, D_MODEL),      (p + "ca_bv", 1, D_MODEL),
            (p + "ca_wo", D_MODEL, D_MODEL),      (p + "ca_bo", 1, D_MODEL),
            (p + "n2_g", 1, D_MODEL),             (p + "n2_b", 1, D_MODEL),
            (p + "l1_w", D_MODEL, DIM_FF),        (p + "l1_b", 1, DIM_FF),
            (p + "l2_w", DIM_FF, D_MODEL),        (p + "l2_b", 1, D_MODEL),
            (p + "n3_g", 1, D_MODEL),             (p + "n3_b", 1, D_MODEL),
        ]
    entries += [("dec_norm_g", 1, D_MODEL), ("dec_norm_b", 1, D_MODEL)]

    offsets, row = {}, 0
    for name, r, c in entries:
        assert c <= 128
        offsets[name] = (row, r, c)
        row += ((r + 7) // 8) * 8                # 8-row aligned chunks
    return offsets, row


_SLAB_OFFSETS, _SLAB_ROWS = _slab_layout()


# ------------------------------ fused Pallas kernel ---------------------------
def _make_kernel(off):
    D, Dh = D_MODEL, HEAD_DIM

    def kernel(patches_ref, qemb_ref, w_ref, out_ref):
        B, S, PF = patches_ref.shape             # (BS, SEQ_PAD, PATCH_FEATS)
        Q = qemb_ref.shape[0]

        def rd(name):
            r0, r, c = off[name]
            return w_ref[r0:r0 + r, 0:c]         # static slice of the weight slab

        def mm(x2d, w2d):
            return jnp.dot(x2d, w2d, preferred_element_type=jnp.float32)

        def layernorm(x, g, b):
            mu = jnp.mean(x, axis=-1, keepdims=True)
            var = jnp.mean((x - mu) ** 2, axis=-1, keepdims=True)
            return (x - mu) * jax.lax.rsqrt(var + LN_EPS) * g + b

        def attention(q, k, v, wo_name, bo_name, key_bias):
            """Multi-head attention core; q:(B,Lq,D) k,v:(B,Lk,D)."""
            scale = 1.0 / math.sqrt(Dh)
            ohs = []
            for h in range(NHEAD):               # unrolled at trace time
                sl = slice(h * Dh, (h + 1) * Dh)
                qh = q[..., sl] * scale
                kh = k[..., sl]
                vh = v[..., sl]
                s = jax.lax.dot_general(         # (B, Lq, Lk)
                    qh, kh, dimension_numbers=(((2,), (2,)), ((0,), (0,))),
                    preferred_element_type=jnp.float32)
                if key_bias is not None:
                    s = s + key_bias
                s = s - jnp.max(s, axis=-1, keepdims=True)
                p = jnp.exp(s)
                p = p * pl.reciprocal(jnp.sum(p, axis=-1, keepdims=True), approx=False)
                oh = jax.lax.dot_general(        # (B, Lq, Dh)
                    p, vh, dimension_numbers=(((2,), (1,)), ((0,), (0,))),
                    preferred_element_type=jnp.float32)
                ohs.append(oh)
            attn = jnp.concatenate(ohs, axis=-1)              # (B, Lq, D)
            Lq = attn.shape[1]
            o = mm(attn.reshape(B * Lq, D), rd(wo_name)) + rd(bo_name)
            return o.reshape(B, Lq, D)

        # ---- synthetic ViT encoder: patch embed; row 0 of the additive row-bias
        #      carries the cls token (patch row 0 is a zero "cls slot").
        patches = patches_ref[...].reshape(B * S, PF)
        mem_vit = mm(patches, rd("enc_w")).reshape(B, S, VIT_DIM) + rd("enc_row_bias")[None]

        # ---- memory = vit_norm(lin_proj_mem(memory))
        mem = layernorm(mm(mem_vit.reshape(B * S, VIT_DIM), rd("proj_w")).reshape(B, S, D),
                        rd("vitln_g"), rd("vitln_b"))                       # (B, S, D)
        mem_pos = mem + rd("pos_embed")[None]

        # mask bias for padded key positions (SEQ..SEQ_PAD-1) in cross-attention
        if S > SEQ:
            key_idx = jax.lax.broadcasted_iota(jnp.int32, (1, 1, S), 2)
            key_bias = jnp.where(key_idx < SEQ, 0.0, -1e30).astype(jnp.float32)
        else:
            key_bias = None

        qpos = qemb_ref[...]                                                 # (Q, D)
        tgt = jnp.zeros((B, Q, D), jnp.float32)

        for l in range(NUM_DEC_LAYERS):
            p = f"l{l}_"
            # ---- self-attention: fused Q|K projection on (tgt+qpos), V on tgt
            q_in = (tgt + qpos[None]).reshape(B * Q, D)
            qk = mm(q_in, rd(p + "sa_wqk")) + rd(p + "sa_bqk")               # (B*Q, 2D)
            q = qk[:, 0:D].reshape(B, Q, D)
            k = qk[:, D:2 * D].reshape(B, Q, D)
            v = (mm(tgt.reshape(B * Q, D), rd(p + "sa_wv")) + rd(p + "sa_bv")).reshape(B, Q, D)
            sa = attention(q, k, v, p + "sa_wo", p + "sa_bo", None)
            tgt = layernorm(tgt + sa, rd(p + "n1_g"), rd(p + "n1_b"))

            # ---- cross-attention (Q from tgt+qpos, K from mem+pos, V from mem)
            qc = (mm((tgt + qpos[None]).reshape(B * Q, D), rd(p + "ca_wq"))
                  + rd(p + "ca_bq")).reshape(B, Q, D)
            kc = (mm(mem_pos.reshape(B * S, D), rd(p + "ca_wk"))
                  + rd(p + "ca_bk")).reshape(B, S, D)
            vc = (mm(mem.reshape(B * S, D), rd(p + "ca_wv"))
                  + rd(p + "ca_bv")).reshape(B, S, D)
            ca = attention(qc, kc, vc, p + "ca_wo", p + "ca_bo", key_bias)
            tgt = layernorm(tgt + ca, rd(p + "n2_g"), rd(p + "n2_b"))

            # ---- FFN (dropout = identity in eval)
            h1 = jnp.maximum(mm(tgt.reshape(B * Q, D), rd(p + "l1_w")) + rd(p + "l1_b"), 0.0)
            h2 = (mm(h1, rd(p + "l2_w")) + rd(p + "l2_b")).reshape(B, Q, D)
            tgt = layernorm(tgt + h2, rd(p + "n3_g"), rd(p + "n3_b"))

        # final decoder norm
        hs = layernorm(tgt, rd("dec_norm_g"), rd("dec_norm_b"))              # (B, Q, D)

        # single combined output: [hs | padded memory] along the sequence axis
        out_ref[...] = jnp.concatenate([hs, mem], axis=1)                    # (B, Q+S, D)

    return kernel


# ------------------------------- forward wrapper ------------------------------
def make_forward():
    """Mirror of TransformerVit.forward (pos_embed_version='learned_cls')."""
    kernel = _make_kernel(_SLAB_OFFSETS)

    def forward(weight_slab, src, query_embed):
        bs = src.shape[0]
        p = PATCH
        # Patchify (pure layout prep): NCHW -> [bs, num_patches, C*P*P]; row 0 is a
        # zero "cls slot" (cls token is added by the encoder row-bias in-kernel),
        # rows SEQ..SEQ_PAD-1 are sublane padding (masked out of cross-attention).
        patches = src.reshape(bs, C_IN, H // p, p, W // p, p)
        patches = patches.transpose(0, 2, 4, 1, 3, 5).reshape(bs, NUM_PATCHES, PATCH_FEATS)
        patches_ext = (jnp.zeros((bs, SEQ_PAD, PATCH_FEATS), jnp.float32)
                       .at[:, 1:SEQ, :].set(patches))

        out = pl.pallas_call(
            kernel,
            out_shape=jax.ShapeDtypeStruct((bs, NUM_QUERIES + SEQ_PAD, D_MODEL), jnp.float32),
            in_specs=[pl.BlockSpec(memory_space=pltpu.MemorySpace.VMEM)] * 3,
            out_specs=pl.BlockSpec(memory_space=pltpu.MemorySpace.VMEM),
        )(patches_ext, query_embed, weight_slab)

        hs = out[:, :NUM_QUERIES, :][None]                  # == hs.transpose(1, 2)
        memory = out[:, NUM_QUERIES:NUM_QUERIES + SEQ, :]   # == memory.permute(1, 0, 2)
        # return hs.transpose(1, 2), memory.permute(1, 0, 2), attn_list
        return hs, memory, []                               # return_attn=False -> []

    return forward


# --------------------------- deterministic parameters -------------------------
def init_params(key):
    """Build all weights in matmul-ready [K, N] layout and pack into one slab."""
    ks = iter(jax.random.split(key, 64))

    def nrm(shape, std=0.02):
        return (std * jax.random.normal(next(ks), shape)).astype(jnp.float32)

    D, FF, VIT = D_MODEL, DIM_FF, VIT_DIM
    ones_d = jnp.ones((1, D), jnp.float32)
    zeros_d = jnp.zeros((1, D), jnp.float32)

    vals = {}
    # synthetic encoder: row 0 of the additive row-bias is the cls token.
    vals["enc_w"] = nrm((PATCH_FEATS, VIT))
    cls_token = nrm((VIT,))
    vals["enc_row_bias"] = jnp.zeros((SEQ_PAD, VIT), jnp.float32).at[0].set(cls_token)
    # TransformerVit own parameters
    vals["proj_w"] = nrm((VIT, D))                                # lin_proj_mem (bias=False)
    vals["vitln_g"] = ones_d
    vals["vitln_b"] = zeros_d
    vals["pos_embed"] = (jnp.zeros((SEQ_PAD, D), jnp.float32)
                         .at[:SEQ].set(nrm((SEQ, D))))            # learned_cls pos embedding
    # decoder layers (DETR-style post-norm)
    for l in range(NUM_DEC_LAYERS):
        p = f"l{l}_"
        wq, wk = nrm((D, D)), nrm((D, D))
        vals[p + "sa_wqk"] = jnp.concatenate([wq, wk], axis=1)    # fused Q|K
        vals[p + "sa_bqk"] = jnp.zeros((1, 2 * D), jnp.float32)
        vals[p + "sa_wv"] = nrm((D, D)); vals[p + "sa_bv"] = zeros_d
        vals[p + "sa_wo"] = nrm((D, D)); vals[p + "sa_bo"] = zeros_d
        vals[p + "n1_g"] = ones_d;       vals[p + "n1_b"] = zeros_d
        vals[p + "ca_wq"] = nrm((D, D)); vals[p + "ca_bq"] = zeros_d
        vals[p + "ca_wk"] = nrm((D, D)); vals[p + "ca_bk"] = zeros_d
        vals[p + "ca_wv"] = nrm((D, D)); vals[p + "ca_bv"] = zeros_d
        vals[p + "ca_wo"] = nrm((D, D)); vals[p + "ca_bo"] = zeros_d
        vals[p + "n2_g"] = ones_d;       vals[p + "n2_b"] = zeros_d
        vals[p + "l1_w"] = nrm((D, FF)); vals[p + "l1_b"] = jnp.zeros((1, FF), jnp.float32)
        vals[p + "l2_w"] = nrm((FF, D)); vals[p + "l2_b"] = zeros_d
        vals[p + "n3_g"] = ones_d;       vals[p + "n3_b"] = zeros_d
    vals["dec_norm_g"] = ones_d
    vals["dec_norm_b"] = zeros_d

    slab = jnp.zeros((_SLAB_ROWS, 128), jnp.float32)
    for name, (r0, r, c) in _SLAB_OFFSETS.items():
        slab = slab.at[r0:r0 + r, 0:c].set(vals[name].astype(jnp.float32))
    return slab


# ----------------------------------- main -------------------------------------
if __name__ == "__main__":
    key = jax.random.PRNGKey(0)
    k_params, k_src, k_query = jax.random.split(key, 3)

    weight_slab = init_params(k_params)
    src = jax.random.normal(k_src, (BS, C_IN, H, W), dtype=jnp.float32)
    query_embed = jax.random.normal(k_query, (NUM_QUERIES, D_MODEL), dtype=jnp.float32)

    fwd = jax.jit(make_forward())
    hs, memory_out, attn_list = fwd(weight_slab, src, query_embed)
    jax.block_until_ready((hs, memory_out))

    assert hs.shape == (1, BS, NUM_QUERIES, D_MODEL)
    assert memory_out.shape == (BS, SEQ, D_MODEL)
    assert attn_list == []
    # TODO(synk): encoder/decoder are injected nn.Modules in the original code;
    # deterministic synthetic stand-ins are used here (see header comment).
    print("KERNEL_OK")
</pallas_src>

<mosaic_0001>
module attributes {stable_mosaic.version = 11 : i64} {
  func.func @kernel(%arg0: memref<2x8x256xf32, #tpu.memory_space<vmem>>, %arg1: memref<8x32xf32, #tpu.memory_space<vmem>>, %arg2: memref<808x128xf32, #tpu.memory_space<vmem>>, %arg3: memref<2x16x32xf32, #tpu.memory_space<vmem>>) attributes {dimension_semantics = [], scalar_prefetch = 0 : i64, scratch_operands = 0 : i64, tpu.core_type = #tpu.core_type<tc>} {
    %c0 = arith.constant 0 : index
    %c0_0 = arith.constant 0 : index
    %c0_1 = arith.constant 0 : index
    %0 = vector.load %arg0[%c0, %c0_0, %c0_1] : memref<2x8x256xf32, #tpu.memory_space<vmem>>, vector<2x8x256xf32>
    %1 = vector.shape_cast %0 : vector<2x8x256xf32> to vector<16x256xf32>
    %c0_2 = arith.constant 0 : index
    %c0_3 = arith.constant 0 : index
    %2 = vector.load %arg2[%c0_2, %c0_3] : memref<808x128xf32, #tpu.memory_space<vmem>>, vector<256x64xf32>
    %cst = arith.constant dense<0.000000e+00> : vector<16x64xf32>
    %3 = tpu.matmul %1, %2, %cst {dimension_numbers = #tpu.dot_dimension_numbers<[1], [0], [0], [1], [0, 0, 1, 1], [], []>} : vector<16x256xf32>, vector<256x64xf32>, vector<16x64xf32> -> vector<16x64xf32>
    %4 = vector.shape_cast %3 : vector<16x64xf32> to vector<2x8x64xf32>
    %c256 = arith.constant 256 : index
    %c0_4 = arith.constant 0 : index
    %5 = vector.load %arg2[%c256, %c0_4] : memref<808x128xf32, #tpu.memory_space<vmem>>, vector<8x64xf32>
    %6 = vector.shape_cast %5 : vector<8x64xf32> to vector<1x8x64xf32>
    %7 = vector.broadcast %6 : vector<1x8x64xf32> to vector<2x8x64xf32>
    %8 = arith.addf %4, %7 : vector<2x8x64xf32>
    %9 = vector.shape_cast %8 : vector<2x8x64xf32> to vector<16x64xf32>
    %c264 = arith.constant 264 : index
    %c0_5 = arith.constant 0 : index
    %10 = vector.load %arg2[%c264, %c0_5] : memref<808x128xf32, #tpu.memory_space<vmem>>, vector<64x32xf32>
    %cst_6 = arith.constant dense<0.000000e+00> : vector<16x32xf32>
    %11 = tpu.matmul %9, %10, %cst_6 {dimension_numbers = #tpu.dot_dimension_numbers<[1], [0], [0], [1], [0, 0, 1, 1], [], []>} : vector<16x64xf32>, vector<64x32xf32>, vector<16x32xf32> -> vector<16x32xf32>
    %12 = vector.shape_cast %11 : vector<16x32xf32> to vector<2x8x32xf32>
    %c328 = arith.constant 328 : index
    %c0_7 = arith.constant 0 : index
    %13 = vector.load %arg2[%c328, %c0_7] : memref<808x128xf32, #tpu.memory_space<vmem>>, vector<1x32xf32>
    %c336 = arith.constant 336 : index
    %c0_8 = arith.constant 0 : index
    %14 = vector.load %arg2[%c336, %c0_8] : memref<808x128xf32, #tpu.memory_space<vmem>>, vector<1x32xf32>
    %cst_9 = arith.constant dense<0.000000e+00> : vector<2x8xf32>
    %15 = vector.multi_reduction <add>, %12, %cst_9 [2] : vector<2x8x32xf32> to vector<2x8xf32>
    %16 = vector.shape_cast %15 : vector<2x8xf32> to vector<2x8x1xf32>
    %cst_10 = arith.constant 3.200000e+01 : f32
    %17 = vector.broadcast %cst_10 : f32 to vector<2x8x1xf32>
    %18 = arith.divf %16, %17 : vector<2x8x1xf32>
    %19 = vector.broadcast %18 : vector<2x8x1xf32> to vector<2x8x32xf32>
    %20 = arith.subf %12, %19 : vector<2x8x32xf32>
    %21 = arith.mulf %20, %20 : vector<2x8x32xf32>
    %cst_11 = arith.constant dense<0.000000e+00> : vector<2x8xf32>
    %22 = vector.multi_reduction <add>, %21, %cst_11 [2] : vector<2x8x32xf32> to vector<2x8xf32>
    %23 = vector.shape_cast %22 : vector<2x8xf32> to vector<2x8x1xf32>
    %cst_12 = arith.constant 3.200000e+01 : f32
    %24 = vector.broadcast %cst_12 : f32 to vector<2x8x1xf32>
    %25 = arith.divf %23, %24 : vector<2x8x1xf32>
    %26 = vector.broadcast %18 : vector<2x8x1xf32> to vector<2x8x32xf32>
    %27 = arith.subf %12, %26 : vector<2x8x32xf32>
    %cst_13 = arith.constant 9.99999974E-6 : f32
    %28 = vector.broadcast %cst_13 : f32 to vector<2x8x1xf32>
    %29 = arith.addf %25, %28 : vector<2x8x1xf32>
    %30 = math.rsqrt %29 : vector<2x8x1xf32>
    %31 = vector.broadcast %30 : vector<2x8x1xf32> to vector<2x8x32xf32>
    %32 = arith.mulf %27, %31 : vector<2x8x32xf32>
    %33 = vector.shape_cast %13 : vector<1x32xf32> to vector<1x1x32xf32>
    %34 = vector.broadcast %33 : vector<1x1x32xf32> to vector<2x8x32xf32>
    %35 = arith.mulf %32, %34 : vector<2x8x32xf32>
    %36 = vector.shape_cast %14 : vector<1x32xf32> to vector<1x1x32xf32>
    %37 = vector.broadcast %36 : vector<1x1x32xf32> to vector<2x8x32xf32>
    %38 = arith.addf %35, %37 : vector<2x8x32xf32>
    %c344 = arith.constant 344 : index
    %c0_14 = arith.constant 0 : index
    %39 = vector.load %arg2[%c344, %c0_14] : memref<808x128xf32, #tpu.memory_space<vmem>>, vector<8x32xf32>
    %40 = vector.shape_cast %39 : vector<8x32xf32> to vector<1x8x32xf32>
    %41 = vector.broadcast %40 : vector<1x8x32xf32> to vector<2x8x32xf32>
    %42 = arith.addf %38, %41 : vector<2x8x32xf32>
    %43 = tpu.iota {dimensions = array<i32: 2>} : vector<1x1x8xi32>
    %c5_i32 = arith.constant 5 : i32
    %44 = vector.broadcast %c5_i32 : i32 to vector<1x1x8xi32>
    %45 = arith.cmpi slt, %43, %44 : vector<1x1x8xi32>
    %cst_15 = arith.constant 0.000000e+00 : f32
    %cst_16 = arith.constant -1.000000e+30 : f32
    %46 = vector.broadcast %cst_15 : f32 to vector<1x1x8xf32>
    %47 = vector.broadcast %cst_16 : f32 to vector<1x1x8xf32>
    %48 = arith.select %45, %46, %47 : vector<1x1x8xi1>, vector<1x1x8xf32>
    %c0_17 = arith.constant 0 : index
    %c0_18 = arith.constant 0 : index
    %49 = vector.load %arg1[%c0_17, %c0_18] : memref<8x32xf32, #tpu.memory_space<vmem>>, vector<8x32xf32>
    %cst_19 = arith.constant 0.000000e+00 : f32
    %50 = vector.broadcast %cst_19 : f32 to vector<2x8x32xf32>
    %51 = vector.shape_cast %49 : vector<8x32xf32> to vector<1x8x32xf32>
    %52 = vector.broadcast %51 : vector<1x8x32xf32> to vector<2x8x32xf32>
    %53 = arith.addf %50, %52 : vector<2x8x32xf32>
    %54 = vector.shape_cast %53 : vector<2x8x32xf32> to vector<16x32xf32>
    %c352 = arith.constant 352 : index
    %c0_20 = arith.constant 0 : index
    %55 = vector.load %arg2[%c352, %c0_20] : memref<808x128xf32, #tpu.memory_space<vmem>>, vector<32x64xf32>
    %cst_21 = arith.constant dense<0.000000e+00> : vector<16x64xf32>
    %56 = tpu.matmul %54, %55, %cst_21 {dimension_numbers = #tpu.dot_dimension_numbers<[1], [0], [0], [1], [0, 0, 1, 1], [], []>} : vector<16x32xf32>, vector<32x64xf32>, vector<16x64xf32> -> vector<16x64xf32>
    %c384 = arith.constant 384 : index
    %c0_22 = arith.constant 0 : index
    %57 = vector.load %arg2[%c384, %c0_22] : memref<808x128xf32, #tpu.memory_space<vmem>>, vector<1x64xf32>
    %58 = vector.broadcast %57 : vector<1x64xf32> to vector<16x64xf32>
    %59 = arith.addf %56, %58 : vector<16x64xf32>
    %60 = vector.extract_strided_slice %59 {offsets = [0, 0], sizes = [16, 32], strides = [1, 1]} : vector<16x64xf32> to vector<16x32xf32>
    %61 = vector.shape_cast %60 : vector<16x32xf32> to vector<2x8x32xf32>
    %62 = vector.extract_strided_slice %59 {offsets = [0, 32], sizes = [16, 32], strides = [1, 1]} : vector<16x64xf32> to vector<16x32xf32>
    %63 = vector.shape_cast %62 : vector<16x32xf32> to vector<2x8x32xf32>
    %64 = vector.shape_cast %50 : vector<2x8x32xf32> to vector<16x32xf32>
    %c392 = arith.constant 392 : index
    %c0_23 = arith.constant 0 : index
    %65 = vector.load %arg2[%c392, %c0_23] : memref<808x128xf32, #tpu.memory_space<vmem>>, vector<32x32xf32>
    %cst_24 = arith.constant dense<0.000000e+00> : vector<16x32xf32>
    %66 = tpu.matmul %64, %65, %cst_24 {dimension_numbers = #tpu.dot_dimension_numbers<[1], [0], [0], [1], [0, 0, 1, 1], [], []>} : vector<16x32xf32>, vector<32x32xf32>, vector<16x32xf32> -> vector<16x32xf32>
    %c424 = arith.constant 424 : index
    %c0_25 = arith.constant 0 : index
    %67 = vector.load %arg2[%c424, %c0_25] : memref<808x128xf32, #tpu.memory_space<vmem>>, vector<1x32xf32>
    %68 = vector.broadcast %67 : vector<1x32xf32> to vector<16x32xf32>
    %69 = arith.addf %66, %68 : vector<16x32xf32>
    %70 = vector.shape_cast %69 : vector<16x32xf32> to vector<2x8x32xf32>
    %71 = vector.extract_strided_slice %61 {offsets = [0, 0, 0], sizes = [2, 8, 8], strides = [1, 1, 1]} : vector<2x8x32xf32> to vector<2x8x8xf32>
    %cst_26 = arith.constant 0.353553385 : f32
    %72 = vector.broadcast %cst_26 : f32 to vector<2x8x8xf32>
    %73 = arith.mulf %71, %72 : vector<2x8x8xf32>
    %74 = vector.extract_strided_slice %63 {offsets = [0, 0, 0], sizes = [2, 8, 8], strides = [1, 1, 1]} : vector<2x8x32xf32> to vector<2x8x8xf32>
    %75 = vector.extract_strided_slice %70 {offsets = [0, 0, 0], sizes = [2, 8, 8], strides = [1, 1, 1]} : vector<2x8x32xf32> to vector<2x8x8xf32>
    %cst_27 = arith.constant dense<0.000000e+00> : vector<2x8x8xf32>
    %76 = tpu.matmul %73, %74, %cst_27 {dimension_numbers = #tpu.dot_dimension_numbers<[2], [2], [1], [1], [0, 0, 0, 1, 1, 1], [0], [0]>} : vector<2x8x8xf32>, vector<2x8x8xf32>, vector<2x8x8xf32> -> vector<2x8x8xf32>
    %cst_28 = arith.constant dense<0xFF800000> : vector<2x8xf32>
    %77 = vector.multi_reduction <maximumf>, %76, %cst_28 [2] : vector<2x8x8xf32> to vector<2x8xf32>
    %78 = vector.shape_cast %77 : vector<2x8xf32> to vector<2x8x1xf32>
    %79 = vector.broadcast %78 : vector<2x8x1xf32> to vector<2x8x8xf32>
    %80 = arith.subf %76, %79 : vector<2x8x8xf32>
    %81 = math.exp %80 : vector<2x8x8xf32>
    %cst_29 = arith.constant dense<0.000000e+00> : vector<2x8xf32>
    %82 = vector.multi_reduction <add>, %81, %cst_29 [2] : vector<2x8x8xf32> to vector<2x8xf32>
    %83 = vector.shape_cast %82 : vector<2x8xf32> to vector<2x8x1xf32>
    %84 = tpu.reciprocal %83 : vector<2x8x1xf32> -> vector<2x8x1xf32>
    %85 = vector.broadcast %84 : vector<2x8x1xf32> to vector<2x8x8xf32>
    %86 = arith.mulf %81, %85 : vector<2x8x8xf32>
    %cst_30 = arith.constant dense<0.000000e+00> : vector<2x8x8xf32>
    %87 = tpu.matmul %86, %75, %cst_30 {dimension_numbers = #tpu.dot_dimension_numbers<[2], [1], [1], [2], [0, 0, 0, 1, 1, 2], [0], [0]>} : vector<2x8x8xf32>, vector<2x8x8xf32>, vector<2x8x8xf32> -> vector<2x8x8xf32>
    %88 = vector.extract_strided_slice %61 {offsets = [0, 0, 8], sizes = [2, 8, 8], strides = [1, 1, 1]} : vector<2x8x32xf32> to vector<2x8x8xf32>
    %cst_31 = arith.constant 0.353553385 : f32
    %89 = vector.broadcast %cst_31 : f32 to vector<2x8x8xf32>
    %90 = arith.mulf %88, %89 : vector<2x8x8xf32>
    %91 = vector.extract_strided_slice %63 {offsets = [0, 0, 8], sizes = [2, 8, 8], strides = [1, 1, 1]} : vector<2x8x32xf32> to vector<2x8x8xf32>
    %92 = vector.extract_strided_slice %70 {offsets = [0, 0, 8], sizes = [2, 8, 8], strides = [1, 1, 1]} : vector<2x8x32xf32> to vector<2x8x8xf32>
    %cst_32 = arith.constant dense<0.000000e+00> : vector<2x8x8xf32>
    %93 = tpu.matmul %90, %91, %cst_32 {dimension_numbers = #tpu.dot_dimension_numbers<[2], [2], [1], [1], [0, 0, 0, 1, 1, 1], [0], [0]>} : vector<2x8x8xf32>, vector<2x8x8xf32>, vector<2x8x8xf32> -> vector<2x8x8xf32>
    %cst_33 = arith.constant dense<0xFF800000> : vector<2x8xf32>
    %94 = vector.multi_reduction <maximumf>, %93, %cst_33 [2] : vector<2x8x8xf32> to vector<2x8xf32>
    %95 = vector.shape_cast %94 : vector<2x8xf32> to vector<2x8x1xf32>
    %96 = vector.broadcast %95 : vector<2x8x1xf32> to vector<2x8x8xf32>
    %97 = arith.subf %93, %96 : vector<2x8x8xf32>
    %98 = math.exp %97 : vector<2x8x8xf32>
    %cst_34 = arith.constant dense<0.000000e+00> : vector<2x8xf32>
    %99 = vector.multi_reduction <add>, %98, %cst_34 [2] : vector<2x8x8xf32> to vector<2x8xf32>
    %100 = vector.shape_cast %99 : vector<2x8xf32> to vector<2x8x1xf32>
    %101 = tpu.reciprocal %100 : vector<2x8x1xf32> -> vector<2x8x1xf32>
    %102 = vector.broadcast %101 : vector<2x8x1xf32> to vector<2x8x8xf32>
    %103 = arith.mulf %98, %102 : vector<2x8x8xf32>
    %cst_35 = arith.constant dense<0.000000e+00> : vector<2x8x8xf32>
    %104 = tpu.matmul %103, %92, %cst_35 {dimension_numbers = #tpu.dot_dimension_numbers<[2], [1], [1], [2], [0, 0, 0, 1, 1, 2], [0], [0]>} : vector<2x8x8xf32>, vector<2x8x8xf32>, vector<2x8x8xf32> -> vector<2x8x8xf32>
    %105 = vector.extract_strided_slice %61 {offsets = [0, 0, 16], sizes = [2, 8, 8], strides = [1, 1, 1]} : vector<2x8x32xf32> to vector<2x8x8xf32>
    %cst_36 = arith.constant 0.353553385 : f32
    %106 = vector.broadcast %cst_36 : f32 to vector<2x8x8xf32>
    %107 = arith.mulf %105, %106 : vector<2x8x8xf32>
    %108 = vector.extract_strided_slice %63 {offsets = [0, 0, 16], sizes = [2, 8, 8], strides = [1, 1, 1]} : vector<2x8x32xf32> to vector<2x8x8xf32>
    %109 = vector.extract_strided_slice %70 {offsets = [0, 0, 16], sizes = [2, 8, 8], strides = [1, 1, 1]} : vector<2x8x32xf32> to vector<2x8x8xf32>
    %cst_37 = arith.constant dense<0.000000e+00> : vector<2x8x8xf32>
    %110 = tpu.matmul %107, %108, %cst_37 {dimension_numbers = #tpu.dot_dimension_numbers<[2], [2], [1], [1], [0, 0, 0, 1, 1, 1], [0], [0]>} : vector<2x8x8xf32>, vector<2x8x8xf32>, vector<2x8x8xf32> -> vector<2x8x8xf32>
    %cst_38 = arith.constant dense<0xFF800000> : vector<2x8xf32>
    %111 = vector.multi_reduction <maximumf>, %110, %cst_38 [2] : vector<2x8x8xf32> to vector<2x8xf32>
    %112 = vector.shape_cast %111 : vector<2x8xf32> to vector<2x8x1xf32>
    %113 = vector.broadcast %112 : vector<2x8x1xf32> to vector<2x8x8xf32>
    %114 = arith.subf %110, %113 : vector<2x8x8xf32>
    %115 = math.exp %114 : vector<2x8x8xf32>
    %cst_39 = arith.constant dense<0.000000e+00> : vector<2x8xf32>
    %116 = vector.multi_reduction <add>, %115, %cst_39 [2] : vector<2x8x8xf32> to vector<2x8xf32>
    %117 = vector.shape_cast %116 : vector<2x8xf32> to vector<2x8x1xf32>
    %118 = tpu.reciprocal %117 : vector<2x8x1xf32> -> vector<2x8x1xf32>
    %119 = vector.broadcast %118 : vector<2x8x1xf32> to vector<2x8x8xf32>
    %120 = arith.mulf %115, %119 : vector<2x8x8xf32>
    %cst_40 = arith.constant dense<0.000000e+00> : vector<2x8x8xf32>
    %121 = tpu.matmul %120, %109, %cst_40 {dimension_numbers = #tpu.dot_dimension_numbers<[2], [1], [1], [2], [0, 0, 0, 1, 1, 2], [0], [0]>} : vector<2x8x8xf32>, vector<2x8x8xf32>, vector<2x8x8xf32> -> vector<2x8x8xf32>
    %122 = vector.extract_strided_slice %61 {offsets = [0, 0, 24], sizes = [2, 8, 8], strides = [1, 1, 1]} : vector<2x8x32xf32> to vector<2x8x8xf32>
    %cst_41 = arith.constant 0.353553385 : f32
    %123 = vector.broadcast %cst_41 : f32 to vector<2x8x8xf32>
    %124 = arith.mulf %122, %123 : vector<2x8x8xf32>
    %125 = vector.extract_strided_slice %63 {offsets = [0, 0, 24], sizes = [2, 8, 8], strides = [1, 1, 1]} : vector<2x8x32xf32> to vector<2x8x8xf32>
    %126 = vector.extract_strided_slice %70 {offsets = [0, 0, 24], sizes = [2, 8, 8], strides = [1, 1, 1]} : vector<2x8x32xf32> to vector<2x8x8xf32>
    %cst_42 = arith.constant dense<0.000000e+00> : vector<2x8x8xf32>
    %127 = tpu.matmul %124, %125, %cst_42 {dimension_numbers = #tpu.dot_dimension_numbers<[2], [2], [1], [1], [0, 0, 0, 1, 1, 1], [0], [0]>} : vector<2x8x8xf32>, vector<2x8x8xf32>, vector<2x8x8xf32> -> vector<2x8x8xf32>
    %cst_43 = arith.constant dense<0xFF800000> : vector<2x8xf32>
    %128 = vector.multi_reduction <maximumf>, %127, %cst_43 [2] : vector<2x8x8xf32> to vector<2x8xf32>
    %129 = vector.shape_cast %128 : vector<2x8xf32> to vector<2x8x1xf32>
    %130 = vector.broadcast %129 : vector<2x8x1xf32> to vector<2x8x8xf32>
    %131 = arith.subf %127, %130 : vector<2x8x8xf32>
    %132 = math.exp %131 : vector<2x8x8xf32>
    %cst_44 = arith.constant dense<0.000000e+00> : vector<2x8xf32>
    %133 = vector.multi_reduction <add>, %132, %cst_44 [2] : vector<2x8x8xf32> to vector<2x8xf32>
    %134 = vector.shape_cast %133 : vector<2x8xf32> to vector<2x8x1xf32>
    %135 = tpu.reciprocal %134 : vector<2x8x1xf32> -> vector<2x8x1xf32>
    %136 = vector.broadcast %135 : vector<2x8x1xf32> to vector<2x8x8xf32>
    %137 = arith.mulf %132, %136 : vector<2x8x8xf32>
    %cst_45 = arith.constant dense<0.000000e+00> : vector<2x8x8xf32>
    %138 = tpu.matmul %137, %126, %cst_45 {dimension_numbers = #tpu.dot_dimension_numbers<[2], [1], [1], [2], [0, 0, 0, 1, 1, 2], [0], [0]>} : vector<2x8x8xf32>, vector<2x8x8xf32>, vector<2x8x8xf32> -> vector<2x8x8xf32>
    %139 = tpu.concatenate %87, %104, %121, %138 in 2 : vector<2x8x8xf32>, vector<2x8x8xf32>, vector<2x8x8xf32>, vector<2x8x8xf32> -> vector<2x8x32xf32>
    %140 = vector.shape_cast %139 : vector<2x8x32xf32> to vector<16x32xf32>
    %c432 = arith.constant 432 : index
    %c0_46 = arith.constant 0 : index
    %141 = vector.load %arg2[%c432, %c0_46] : memref<808x128xf32, #tpu.memory_space<vmem>>, vector<32x32xf32>
    %cst_47 = arith.constant dense<0.000000e+00> : vector<16x32xf32>
    %142 = tpu.matmul %140, %141, %cst_47 {dimension_numbers = #tpu.dot_dimension_numbers<[1], [0], [0], [1], [0, 0, 1, 1], [], []>} : vector<16x32xf32>, vector<32x32xf32>, vector<16x32xf32> -> vector<16x32xf32>
    %c464 = arith.constant 464 : index
    %c0_48 = arith.constant 0 : index
    %143 = vector.load %arg2[%c464, %c0_48] : memref<808x128xf32, #tpu.memory_space<vmem>>, vector<1x32xf32>
    %144 = vector.broadcast %143 : vector<1x32xf32> to vector<16x32xf32>
    %145 = arith.addf %142, %144 : vector<16x32xf32>
    %146 = vector.shape_cast %145 : vector<16x32xf32> to vector<2x8x32xf32>
    %147 = arith.addf %50, %146 : vector<2x8x32xf32>
    %c472 = arith.constant 472 : index
    %c0_49 = arith.constant 0 : index
    %148 = vector.load %arg2[%c472, %c0_49] : memref<808x128xf32, #tpu.memory_space<vmem>>, vector<1x32xf32>
    %c480 = arith.constant 480 : index
    %c0_50 = arith.constant 0 : index
    %149 = vector.load %arg2[%c480, %c0_50] : memref<808x128xf32, #tpu.memory_space<vmem>>, vector<1x32xf32>
    %cst_51 = arith.constant dense<0.000000e+00> : vector<2x8xf32>
    %150 = vector.multi_reduction <add>, %147, %cst_51 [2] : vector<2x8x32xf32> to vector<2x8xf32>
    %151 = vector.shape_cast %150 : vector<2x8xf32> to vector<2x8x1xf32>
    %cst_52 = arith.constant 3.200000e+01 : f32
    %152 = vector.broadcast %cst_52 : f32 to vector<2x8x1xf32>
    %153 = arith.divf %151, %152 : vector<2x8x1xf32>
    %154 = vector.broadcast %153 : vector<2x8x1xf32> to vector<2x8x32xf32>
    %155 = arith.subf %147, %154 : vector<2x8x32xf32>
    %156 = arith.mulf %155, %155 : vector<2x8x32xf32>
    %cst_53 = arith.constant dense<0.000000e+00> : vector<2x8xf32>
    %157 = vector.multi_reduction <add>, %156, %cst_53 [2] : vector<2x8x32xf32> to vector<2x8xf32>
    %158 = vector.shape_cast %157 : vector<2x8xf32> to vector<2x8x1xf32>
    %cst_54 = arith.constant 3.200000e+01 : f32
    %159 = vector.broadcast %cst_54 : f32 to vector<2x8x1xf32>
    %160 = arith.divf %158, %159 : vector<2x8x1xf32>
    %161 = vector.broadcast %153 : vector<2x8x1xf32> to vector<2x8x32xf32>
    %162 = arith.subf %147, %161 : vector<2x8x32xf32>
    %cst_55 = arith.constant 9.99999974E-6 : f32
    %163 = vector.broadcast %cst_55 : f32 to vector<2x8x1xf32>
    %164 = arith.addf %160, %163 : vector<2x8x1xf32>
    %165 = math.rsqrt %164 : vector<2x8x1xf32>
    %166 = vector.broadcast %165 : vector<2x8x1xf32> to vector<2x8x32xf32>
    %167 = arith.mulf %162, %166 : vector<2x8x32xf32>
    %168 = vector.shape_cast %148 : vector<1x32xf32> to vector<1x1x32xf32>
    %169 = vector.broadcast %168 : vector<1x1x32xf32> to vector<2x8x32xf32>
    %170 = arith.mulf %167, %169 : vector<2x8x32xf32>
    %171 = vector.shape_cast %149 : vector<1x32xf32> to vector<1x1x32xf32>
    %172 = vector.broadcast %171 : vector<1x1x32xf32> to vector<2x8x32xf32>
    %173 = arith.addf %170, %172 : vector<2x8x32xf32>
    %174 = vector.shape_cast %49 : vector<8x32xf32> to vector<1x8x32xf32>
    %175 = vector.broadcast %174 : vector<1x8x32xf32> to vector<2x8x32xf32>
    %176 = arith.addf %173, %175 : vector<2x8x32xf32>
    %177 = vector.shape_cast %176 : vector<2x8x32xf32> to vector<16x32xf32>
    %c488 = arith.constant 488 : index
    %c0_56 = arith.constant 0 : index
    %178 = vector.load %arg2[%c488, %c0_56] : memref<808x128xf32, #tpu.memory_space<vmem>>, vector<32x32xf32>
    %cst_57 = arith.constant dense<0.000000e+00> : vector<16x32xf32>
    %179 = tpu.matmul %177, %178, %cst_57 {dimension_numbers = #tpu.dot_dimension_numbers<[1], [0], [0], [1], [0, 0, 1, 1], [], []>} : vector<16x32xf32>, vector<32x32xf32>, vector<16x32xf32> -> vector<16x32xf32>
    %c520 = arith.constant 520 : index
    %c0_58 = arith.constant 0 : index
    %180 = vector.load %arg2[%c520, %c0_58] : memref<808x128xf32, #tpu.memory_space<vmem>>, vector<1x32xf32>
    %181 = vector.broadcast %180 : vector<1x32xf32> to vector<16x32xf32>
    %182 = arith.addf %179, %181 : vector<16x32xf32>
    %183 = vector.shape_cast %182 : vector<16x32xf32> to vector<2x8x32xf32>
    %184 = vector.shape_cast %42 : vector<2x8x32xf32> to vector<16x32xf32>
    %c528 = arith.constant 528 : index
    %c0_59 = arith.constant 0 : index
    %185 = vector.load %arg2[%c528, %c0_59] : memref<808x128xf32, #tpu.memory_space<vmem>>, vector<32x32xf32>
    %cst_60 = arith.constant dense<0.000000e+00> : vector<16x32xf32>
    %186 = tpu.matmul %184, %185, %cst_60 {dimension_numbers = #tpu.dot_dimension_numbers<[1], [0], [0], [1], [0, 0, 1, 1], [], []>} : vector<16x32xf32>, vector<32x32xf32>, vector<16x32xf32> -> vector<16x32xf32>
    %c560 = arith.constant 560 : index
    %c0_61 = arith.constant 0 : index
    %187 = vector.load %arg2[%c560, %c0_61] : memref<808x128xf32, #tpu.memory_space<vmem>>, vector<1x32xf32>
    %188 = vector.broadcast %187 : vector<1x32xf32> to vector<16x32xf32>
    %189 = arith.addf %186, %188 : vector<16x32xf32>
    %190 = vector.shape_cast %189 : vector<16x32xf32> to vector<2x8x32xf32>
    %191 = vector.shape_cast %38 : vector<2x8x32xf32> to vector<16x32xf32>
    %c568 = arith.constant 568 : index
    %c0_62 = arith.constant 0 : index
    %192 = vector.load %arg2[%c568, %c0_62] : memref<808x128xf32, #tpu.memory_space<vmem>>, vector<32x32xf32>
    %cst_63 = arith.constant dense<0.000000e+00> : vector<16x32xf32>
    %193 = tpu.matmul %191, %192, %cst_63 {dimension_numbers = #tpu.dot_dimension_numbers<[1], [0], [0], [1], [0, 0, 1, 1], [], []>} : vector<16x32xf32>, vector<32x32xf32>, vector<16x32xf32> -> vector<16x32xf32>
    %c600 = arith.constant 600 : index
    %c0_64 = arith.constant 0 : index
    %194 = vector.load %arg2[%c600, %c0_64] : memref<808x128xf32, #tpu.memory_space<vmem>>, vector<1x32xf32>
    %195 = vector.broadcast %194 : vector<1x32xf32> to vector<16x32xf32>
    %196 = arith.addf %193, %195 : vector<16x32xf32>
    %197 = vector.shape_cast %196 : vector<16x32xf32> to vector<2x8x32xf32>
    %198 = vector.extract_strided_slice %183 {offsets = [0, 0, 0], sizes = [2, 8, 8], strides = [1, 1, 1]} : vector<2x8x32xf32> to vector<2x8x8xf32>
    %cst_65 = arith.constant 0.353553385 : f32
    %199 = vector.broadcast %cst_65 : f32 to vector<2x8x8xf32>
    %200 = arith.mulf %198, %199 : vector<2x8x8xf32>
    %201 = vector.extract_strided_slice %190 {offsets = [0, 0, 0], sizes = [2, 8, 8], strides = [1, 1, 1]} : vector<2x8x32xf32> to vector<2x8x8xf32>
    %202 = vector.extract_strided_slice %197 {offsets = [0, 0, 0], sizes = [2, 8, 8], strides = [1, 1, 1]} : vector<2x8x32xf32> to vector<2x8x8xf32>
    %cst_66 = arith.constant dense<0.000000e+00> : vector<2x8x8xf32>
    %203 = tpu.matmul %200, %201, %cst_66 {dimension_numbers = #tpu.dot_dimension_numbers<[2], [2], [1], [1], [0, 0, 0, 1, 1, 1], [0], [0]>} : vector<2x8x8xf32>, vector<2x8x8xf32>, vector<2x8x8xf32> -> vector<2x8x8xf32>
    %204 = vector.broadcast %48 : vector<1x1x8xf32> to vector<2x8x8xf32>
    %205 = arith.addf %203, %204 : vector<2x8x8xf32>
    %cst_67 = arith.constant dense<0xFF800000> : vector<2x8xf32>
    %206 = vector.multi_reduction <maximumf>, %205, %cst_67 [2] : vector<2x8x8xf32> to vector<2x8xf32>
    %207 = vector.shape_cast %206 : vector<2x8xf32> to vector<2x8x1xf32>
    %208 = vector.broadcast %207 : vector<2x8x1xf32> to vector<2x8x8xf32>
    %209 = arith.subf %205, %208 : vector<2x8x8xf32>
    %210 = math.exp %209 : vector<2x8x8xf32>
    %cst_68 = arith.constant dense<0.000000e+00> : vector<2x8xf32>
    %211 = vector.multi_reduction <add>, %210, %cst_68 [2] : vector<2x8x8xf32> to vector<2x8xf32>
    %212 = vector.shape_cast %211 : vector<2x8xf32> to vector<2x8x1xf32>
    %213 = tpu.reciprocal %212 : vector<2x8x1xf32> -> vector<2x8x1xf32>
    %214 = vector.broadcast %213 : vector<2x8x1xf32> to vector<2x8x8xf32>
    %215 = arith.mulf %210, %214 : vector<2x8x8xf32>
    %cst_69 = arith.constant dense<0.000000e+00> : vector<2x8x8xf32>
    %216 = tpu.matmul %215, %202, %cst_69 {dimension_numbers = #tpu.dot_dimension_numbers<[2], [1], [1], [2], [0, 0, 0, 1, 1, 2], [0], [0]>} : vector<2x8x8xf32>, vector<2x8x8xf32>, vector<2x8x8xf32> -> vector<2x8x8xf32>
    %217 = vector.extract_strided_slice %183 {offsets = [0, 0, 8], sizes = [2, 8, 8], strides = [1, 1, 1]} : vector<2x8x32xf32> to vector<2x8x8xf32>
    %cst_70 = arith.constant 0.353553385 : f32
    %218 = vector.broadcast %cst_70 : f32 to vector<2x8x8xf32>
    %219 = arith.mulf %217, %218 : vector<2x8x8xf32>
    %220 = vector.extract_strided_slice %190 {offsets = [0, 0, 8], sizes = [2, 8, 8], strides = [1, 1, 1]} : vector<2x8x32xf32> to vector<2x8x8xf32>
    %221 = vector.extract_strided_slice %197 {offsets = [0, 0, 8], sizes = [2, 8, 8], strides = [1, 1, 1]} : vector<2x8x32xf32> to vector<2x8x8xf32>
    %cst_71 = arith.constant dense<0.000000e+00> : vector<2x8x8xf32>
    %222 = tpu.matmul %219, %220, %cst_71 {dimension_numbers = #tpu.dot_dimension_numbers<[2], [2], [1], [1], [0, 0, 0, 1, 1, 1], [0], [0]>} : vector<2x8x8xf32>, vector<2x8x8xf32>, vector<2x8x8xf32> -> vector<2x8x8xf32>
    %223 = vector.broadcast %48 : vector<1x1x8xf32> to vector<2x8x8xf32>
    %224 = arith.addf %222, %223 : vector<2x8x8xf32>
    %cst_72 = arith.constant dense<0xFF800000> : vector<2x8xf32>
    %225 = vector.multi_reduction <maximumf>, %224, %cst_72 [2] : vector<2x8x8xf32> to vector<2x8xf32>
    %226 = vector.shape_cast %225 : vector<2x8xf32> to vector<2x8x1xf32>
    %227 = vector.broadcast %226 : vector<2x8x1xf32> to vector<2x8x8xf32>
    %228 = arith.subf %224, %227 : vector<2x8x8xf32>
    %229 = math.exp %228 : vector<2x8x8xf32>
    %cst_73 = arith.constant dense<0.000000e+00> : vector<2x8xf32>
    %230 = vector.multi_reduction <add>, %229, %cst_73 [2] : vector<2x8x8xf32> to vector<2x8xf32>
    %231 = vector.shape_cast %230 : vector<2x8xf32> to vector<2x8x1xf32>
    %232 = tpu.reciprocal %231 : vector<2x8x1xf32> -> vector<2x8x1xf32>
    %233 = vector.broadcast %232 : vector<2x8x1xf32> to vector<2x8x8xf32>
    %234 = arith.mulf %229, %233 : vector<2x8x8xf32>
    %cst_74 = arith.constant dense<0.000000e+00> : vector<2x8x8xf32>
    %235 = tpu.matmul %234, %221, %cst_74 {dimension_numbers = #tpu.dot_dimension_numbers<[2], [1], [1], [2], [0, 0, 0, 1, 1, 2], [0], [0]>} : vector<2x8x8xf32>, vector<2x8x8xf32>, vector<2x8x8xf32> -> vector<2x8x8xf32>
    %236 = vector.extract_strided_slice %183 {offsets = [0, 0, 16], sizes = [2, 8, 8], strides = [1, 1, 1]} : vector<2x8x32xf32> to vector<2x8x8xf32>
    %cst_75 = arith.constant 0.353553385 : f32
    %237 = vector.broadcast %cst_75 : f32 to vector<2x8x8xf32>
    %238 = arith.mulf %236, %237 : vector<2x8x8xf32>
    %239 = vector.extract_strided_slice %190 {offsets = [0, 0, 16], sizes = [2, 8, 8], strides = [1, 1, 1]} : vector<2x8x32xf32> to vector<2x8x8xf32>
    %240 = vector.extract_strided_slice %197 {offsets = [0, 0, 16], sizes = [2, 8, 8], strides = [1, 1, 1]} : vector<2x8x32xf32> to vector<2x8x8xf32>
    %cst_76 = arith.constant dense<0.000000e+00> : vector<2x8x8xf32>
    %241 = tpu.matmul %238, %239, %cst_76 {dimension_numbers = #tpu.dot_dimension_numbers<[2], [2], [1], [1], [0, 0, 0, 1, 1, 1], [0], [0]>} : vector<2x8x8xf32>, vector<2x8x8xf32>, vector<2x8x8xf32> -> vector<2x8x8xf32>
    %242 = vector.broadcast %48 : vector<1x1x8xf32> to vector<2x8x8xf32>
    %243 = arith.addf %241, %242 : vector<2x8x8xf32>
    %cst_77 = arith.constant dense<0xFF800000> : vector<2x8xf32>
    %244 = vector.multi_reduction <maximumf>, %243, %cst_77 [2] : vector<2x8x8xf32> to vector<2x8xf32>
    %245 = vector.shape_cast %244 : vector<2x8xf32> to vector<2x8x1xf32>
    %246 = vector.broadcast %245 : vector<2x8x1xf32> to vector<2x8x8xf32>
    %247 = arith.subf %243, %246 : vector<2x8x8xf32>
    %248 = math.exp %247 : vector<2x8x8xf32>
    %cst_78 = arith.constant dense<0.000000e+00> : vector<2x8xf32>
    %249 = vector.multi_reduction <add>, %248, %cst_78 [2] : vector<2x8x8xf32> to vector<2x8xf32>
    %250 = vector.shape_cast %249 : vector<2x8xf32> to vector<2x8x1xf32>
    %251 = tpu.reciprocal %250 : vector<2x8x1xf32> -> vector<2x8x1xf32>
    %252 = vector.broadcast %251 : vector<2x8x1xf32> to vector<2x8x8xf32>
    %253 = arith.mulf %248, %252 : vector<2x8x8xf32>
    %cst_79 = arith.constant dense<0.000000e+00> : vector<2x8x8xf32>
    %254 = tpu.matmul %253, %240, %cst_79 {dimension_numbers = #tpu.dot_dimension_numbers<[2], [1], [1], [2], [0, 0, 0, 1, 1, 2], [0], [0]>} : vector<2x8x8xf32>, vector<2x8x8xf32>, vector<2x8x8xf32> -> vector<2x8x8xf32>
    %255 = vector.extract_strided_slice %183 {offsets = [0, 0, 24], sizes = [2, 8, 8], strides = [1, 1, 1]} : vector<2x8x32xf32> to vector<2x8x8xf32>
    %cst_80 = arith.constant 0.353553385 : f32
    %256 = vector.broadcast %cst_80 : f32 to vector<2x8x8xf32>
    %257 = arith.mulf %255, %256 : vector<2x8x8xf32>
    %258 = vector.extract_strided_slice %190 {offsets = [0, 0, 24], sizes = [2, 8, 8], strides = [1, 1, 1]} : vector<2x8x32xf32> to vector<2x8x8xf32>
    %259 = vector.extract_strided_slice %197 {offsets = [0, 0, 24], sizes = [2, 8, 8], strides = [1, 1, 1]} : vector<2x8x32xf32> to vector<2x8x8xf32>
    %cst_81 = arith.constant dense<0.000000e+00> : vector<2x8x8xf32>
    %260 = tpu.matmul %257, %258, %cst_81 {dimension_numbers = #tpu.dot_dimension_numbers<[2], [2], [1], [1], [0, 0, 0, 1, 1, 1], [0], [0]>} : vector<2x8x8xf32>, vector<2x8x8xf32>, vector<2x8x8xf32> -> vector<2x8x8xf32>
    %261 = vector.broadcast %48 : vector<1x1x8xf32> to vector<2x8x8xf32>
    %262 = arith.addf %260, %261 : vector<2x8x8xf32>
    %cst_82 = arith.constant dense<0xFF800000> : vector<2x8xf32>
    %263 = vector.multi_reduction <maximumf>, %262, %cst_82 [2] : vector<2x8x8xf32> to vector<2x8xf32>
    %264 = vector.shape_cast %263 : vector<2x8xf32> to vector<2x8x1xf32>
    %265 = vector.broadcast %264 : vector<2x8x1xf32> to vector<2x8x8xf32>
    %266 = arith.subf %262, %265 : vector<2x8x8xf32>
    %267 = math.exp %266 : vector<2x8x8xf32>
    %cst_83 = arith.constant dense<0.000000e+00> : vector<2x8xf32>
    %268 = vector.multi_reduction <add>, %267, %cst_83 [2] : vector<2x8x8xf32> to vector<2x8xf32>
    %269 = vector.shape_cast %268 : vector<2x8xf32> to vector<2x8x1xf32>
    %270 = tpu.reciprocal %269 : vector<2x8x1xf32> -> vector<2x8x1xf32>
    %271 = vector.broadcast %270 : vector<2x8x1xf32> to vector<2x8x8xf32>
    %272 = arith.mulf %267, %271 : vector<2x8x8xf32>
    %cst_84 = arith.constant dense<0.000000e+00> : vector<2x8x8xf32>
    %273 = tpu.matmul %272, %259, %cst_84 {dimension_numbers = #tpu.dot_dimension_numbers<[2], [1], [1], [2], [0, 0, 0, 1, 1, 2], [0], [0]>} : vector<2x8x8xf32>, vector<2x8x8xf32>, vector<2x8x8xf32> -> vector<2x8x8xf32>
    %274 = tpu.concatenate %216, %235, %254, %273 in 2 : vector<2x8x8xf32>, vector<2x8x8xf32>, vector<2x8x8xf32>, vector<2x8x8xf32> -> vector<2x8x32xf32>
    %275 = vector.shape_cast %274 : vector<2x8x32xf32> to vector<16x32xf32>
    %c608 = arith.constant 608 : index
    %c0_85 = arith.constant 0 : index
    %276 = vector.load %arg2[%c608, %c0_85] : memref<808x128xf32, #tpu.memory_space<vmem>>, vector<32x32xf32>
    %cst_86 = arith.constant dense<0.000000e+00> : vector<16x32xf32>
    %277 = tpu.matmul %275, %276, %cst_86 {dimension_numbers = #tpu.dot_dimension_numbers<[1], [0], [0], [1], [0, 0, 1, 1], [], []>} : vector<16x32xf32>, vector<32x32xf32>, vector<16x32xf32> -> vector<16x32xf32>
    %c640 = arith.constant 640 : index
    %c0_87 = arith.constant 0 : index
    %278 = vector.load %arg2[%c640, %c0_87] : memref<808x128xf32, #tpu.memory_space<vmem>>, vector<1x32xf32>
    %279 = vector.broadcast %278 : vector<1x32xf32> to vector<16x32xf32>
    %280 = arith.addf %277, %279 : vector<16x32xf32>
    %281 = vector.shape_cast %280 : vector<16x32xf32> to vector<2x8x32xf32>
    %282 = arith.addf %173, %281 : vector<2x8x32xf32>
    %c648 = arith.constant 648 : index
    %c0_88 = arith.constant 0 : index
    %283 = vector.load %arg2[%c648, %c0_88] : memref<808x128xf32, #tpu.memory_space<vmem>>, vector<1x32xf32>
    %c656 = arith.constant 656 : index
    %c0_89 = arith.constant 0 : index
    %284 = vector.load %arg2[%c656, %c0_89] : memref<808x128xf32, #tpu.memory_space<vmem>>, vector<1x32xf32>
    %cst_90 = arith.constant dense<0.000000e+00> : vector<2x8xf32>
    %285 = vector.multi_reduction <add>, %282, %cst_90 [2] : vector<2x8x32xf32> to vector<2x8xf32>
    %286 = vector.shape_cast %285 : vector<2x8xf32> to vector<2x8x1xf32>
    %cst_91 = arith.constant 3.200000e+01 : f32
    %287 = vector.broadcast %cst_91 : f32 to vector<2x8x1xf32>
    %288 = arith.divf %286, %287 : vector<2x8x1xf32>
    %289 = vector.broadcast %288 : vector<2x8x1xf32> to vector<2x8x32xf32>
    %290 = arith.subf %282, %289 : vector<2x8x32xf32>
    %291 = arith.mulf %290, %290 : vector<2x8x32xf32>
    %cst_92 = arith.constant dense<0.000000e+00> : vector<2x8xf32>
    %292 = vector.multi_reduction <add>, %291, %cst_92 [2] : vector<2x8x32xf32> to vector<2x8xf32>
    %293 = vector.shape_cast %292 : vector<2x8xf32> to vector<2x8x1xf32>
    %cst_93 = arith.constant 3.200000e+01 : f32
    %294 = vector.broadcast %cst_93 : f32 to vector<2x8x1xf32>
    %295 = arith.divf %293, %294 : vector<2x8x1xf32>
    %296 = vector.broadcast %288 : vector<2x8x1xf32> to vector<2x8x32xf32>
    %297 = arith.subf %282, %296 : vector<2x8x32xf32>
    %cst_94 = arith.constant 9.99999974E-6 : f32
    %298 = vector.broadcast %cst_94 : f32 to vector<2x8x1xf32>
    %299 = arith.addf %295, %298 : vector<2x8x1xf32>
    %300 = math.rsqrt %299 : vector<2x8x1xf32>
    %301 = vector.broadcast %300 : vector<2x8x1xf32> to vector<2x8x32xf32>
    %302 = arith.mulf %297, %301 : vector<2x8x32xf32>
    %303 = vector.shape_cast %283 : vector<1x32xf32> to vector<1x1x32xf32>
    %304 = vector.broadcast %303 : vector<1x1x32xf32> to vector<2x8x32xf32>
    %305 = arith.mulf %302, %304 : vector<2x8x32xf32>
    %306 = vector.shape_cast %284 : vector<1x32xf32> to vector<1x1x32xf32>
    %307 = vector.broadcast %306 : vector<1x1x32xf32> to vector<2x8x32xf32>
    %308 = arith.addf %305, %307 : vector<2x8x32xf32>
    %309 = vector.shape_cast %308 : vector<2x8x32xf32> to vector<16x32xf32>
    %c664 = arith.constant 664 : index
    %c0_95 = arith.constant 0 : index
    %310 = vector.load %arg2[%c664, %c0_95] : memref<808x128xf32, #tpu.memory_space<vmem>>, vector<32x64xf32>
    %cst_96 = arith.constant dense<0.000000e+00> : vector<16x64xf32>
    %311 = tpu.matmul %309, %310, %cst_96 {dimension_numbers = #tpu.dot_dimension_numbers<[1], [0], [0], [1], [0, 0, 1, 1], [], []>} : vector<16x32xf32>, vector<32x64xf32>, vector<16x64xf32> -> vector<16x64xf32>
    %c696 = arith.constant 696 : index
    %c0_97 = arith.constant 0 : index
    %312 = vector.load %arg2[%c696, %c0_97] : memref<808x128xf32, #tpu.memory_space<vmem>>, vector<1x64xf32>
    %313 = vector.broadcast %312 : vector<1x64xf32> to vector<16x64xf32>
    %314 = arith.addf %311, %313 : vector<16x64xf32>
    %cst_98 = arith.constant 0.000000e+00 : f32
    %315 = vector.broadcast %cst_98 : f32 to vector<16x64xf32>
    %316 = arith.maximumf %314, %315 : vector<16x64xf32>
    %c704 = arith.constant 704 : index
    %c0_99 = arith.constant 0 : index
    %317 = vector.load %arg2[%c704, %c0_99] : memref<808x128xf32, #tpu.memory_space<vmem>>, vector<64x32xf32>
    %cst_100 = arith.constant dense<0.000000e+00> : vector<16x32xf32>
    %318 = tpu.matmul %316, %317, %cst_100 {dimension_numbers = #tpu.dot_dimension_numbers<[1], [0], [0], [1], [0, 0, 1, 1], [], []>} : vector<16x64xf32>, vector<64x32xf32>, vector<16x32xf32> -> vector<16x32xf32>
    %c768 = arith.constant 768 : index
    %c0_101 = arith.constant 0 : index
    %319 = vector.load %arg2[%c768, %c0_101] : memref<808x128xf32, #tpu.memory_space<vmem>>, vector<1x32xf32>
    %320 = vector.broadcast %319 : vector<1x32xf32> to vector<16x32xf32>
    %321 = arith.addf %318, %320 : vector<16x32xf32>
    %322 = vector.shape_cast %321 : vector<16x32xf32> to vector<2x8x32xf32>
    %323 = arith.addf %308, %322 : vector<2x8x32xf32>
    %c776 = arith.constant 776 : index
    %c0_102 = arith.constant 0 : index
    %324 = vector.load %arg2[%c776, %c0_102] : memref<808x128xf32, #tpu.memory_space<vmem>>, vector<1x32xf32>
    %c784 = arith.constant 784 : index
    %c0_103 = arith.constant 0 : index
    %325 = vector.load %arg2[%c784, %c0_103] : memref<808x128xf32, #tpu.memory_space<vmem>>, vector<1x32xf32>
    %cst_104 = arith.constant dense<0.000000e+00> : vector<2x8xf32>
    %326 = vector.multi_reduction <add>, %323, %cst_104 [2] : vector<2x8x32xf32> to vector<2x8xf32>
    %327 = vector.shape_cast %326 : vector<2x8xf32> to vector<2x8x1xf32>
    %cst_105 = arith.constant 3.200000e+01 : f32
    %328 = vector.broadcast %cst_105 : f32 to vector<2x8x1xf32>
    %329 = arith.divf %327, %328 : vector<2x8x1xf32>
    %330 = vector.broadcast %329 : vector<2x8x1xf32> to vector<2x8x32xf32>
    %331 = arith.subf %323, %330 : vector<2x8x32xf32>
    %332 = arith.mulf %331, %331 : vector<2x8x32xf32>
    %cst_106 = arith.constant dense<0.000000e+00> : vector<2x8xf32>
    %333 = vector.multi_reduction <add>, %332, %cst_106 [2] : vector<2x8x32xf32> to vector<2x8xf32>
    %334 = vector.shape_cast %333 : vector<2x8xf32> to vector<2x8x1xf32>
    %cst_107 = arith.constant 3.200000e+01 : f32
    %335 = vector.broadcast %cst_107 : f32 to vector<2x8x1xf32>
    %336 = arith.divf %334, %335 : vector<2x8x1xf32>
    %337 = vector.broadcast %329 : vector<2x8x1xf32> to vector<2x8x32xf32>
    %338 = arith.subf %323, %337 : vector<2x8x32xf32>
    %cst_108 = arith.constant 9.99999974E-6 : f32
    %339 = vector.broadcast %cst_108 : f32 to vector<2x8x1xf32>
    %340 = arith.addf %336, %339 : vector<2x8x1xf32>
    %341 = math.rsqrt %340 : vector<2x8x1xf32>
    %342 = vector.broadcast %341 : vector<2x8x1xf32> to vector<2x8x32xf32>
    %343 = arith.mulf %338, %342 : vector<2x8x32xf32>
    %344 = vector.shape_cast %324 : vector<1x32xf32> to vector<1x1x32xf32>
    %345 = vector.broadcast %344 : vector<1x1x32xf32> to vector<2x8x32xf32>
    %346 = arith.mulf %343, %345 : vector<2x8x32xf32>
    %347 = vector.shape_cast %325 : vector<1x32xf32> to vector<1x1x32xf32>
    %348 = vector.broadcast %347 : vector<1x1x32xf32> to vector<2x8x32xf32>
    %349 = arith.addf %346, %348 : vector<2x8x32xf32>
    %c792 = arith.constant 792 : index
    %c0_109 = arith.constant 0 : index
    %350 = vector.load %arg2[%c792, %c0_109] : memref<808x128xf32, #tpu.memory_space<vmem>>, vector<1x32xf32>
    %c800 = arith.constant 800 : index
    %c0_110 = arith.constant 0 : index
    %351 = vector.load %arg2[%c800, %c0_110] : memref<808x128xf32, #tpu.memory_space<vmem>>, vector<1x32xf32>
    %cst_111 = arith.constant dense<0.000000e+00> : vector<2x8xf32>
    %352 = vector.multi_reduction <add>, %349, %cst_111 [2] : vector<2x8x32xf32> to vector<2x8xf32>
    %353 = vector.shape_cast %352 : vector<2x8xf32> to vector<2x8x1xf32>
    %cst_112 = arith.constant 3.200000e+01 : f32
    %354 = vector.broadcast %cst_112 : f32 to vector<2x8x1xf32>
    %355 = arith.divf %353, %354 : vector<2x8x1xf32>
    %356 = vector.broadcast %355 : vector<2x8x1xf32> to vector<2x8x32xf32>
    %357 = arith.subf %349, %356 : vector<2x8x32xf32>
    %358 = arith.mulf %357, %357 : vector<2x8x32xf32>
    %cst_113 = arith.constant dense<0.000000e+00> : vector<2x8xf32>
    %359 = vector.multi_reduction <add>, %358, %cst_113 [2] : vector<2x8x32xf32> to vector<2x8xf32>
    %360 = vector.shape_cast %359 : vector<2x8xf32> to vector<2x8x1xf32>
    %cst_114 = arith.constant 3.200000e+01 : f32
    %361 = vector.broadcast %cst_114 : f32 to vector<2x8x1xf32>
    %362 = arith.divf %360, %361 : vector<2x8x1xf32>
    %363 = vector.broadcast %355 : vector<2x8x1xf32> to vector<2x8x32xf32>
    %364 = arith.subf %349, %363 : vector<2x8x32xf32>
    %cst_115 = arith.constant 9.99999974E-6 : f32
    %365 = vector.broadcast %cst_115 : f32 to vector<2x8x1xf32>
    %366 = arith.addf %362, %365 : vector<2x8x1xf32>
    %367 = math.rsqrt %366 : vector<2x8x1xf32>
    %368 = vector.broadcast %367 : vector<2x8x1xf32> to vector<2x8x32xf32>
    %369 = arith.mulf %364, %368 : vector<2x8x32xf32>
    %370 = vector.shape_cast %350 : vector<1x32xf32> to vector<1x1x32xf32>
    %371 = vector.broadcast %370 : vector<1x1x32xf32> to vector<2x8x32xf32>
    %372 = arith.mulf %369, %371 : vector<2x8x32xf32>
    %373 = vector.shape_cast %351 : vector<1x32xf32> to vector<1x1x32xf32>
    %374 = vector.broadcast %373 : vector<1x1x32xf32> to vector<2x8x32xf32>
    %375 = arith.addf %372, %374 : vector<2x8x32xf32>
    %376 = tpu.concatenate %375, %38 in 1 : vector<2x8x32xf32>, vector<2x8x32xf32> -> vector<2x16x32xf32>
    %c0_116 = arith.constant 0 : index
    %c0_117 = arith.constant 0 : index
    %c0_118 = arith.constant 0 : index
    %377 = vector.load %arg3[%c0_116, %c0_117, %c0_118] : memref<2x16x32xf32, #tpu.memory_space<vmem>>, vector<2x16x32xf32>
    tpu.vector_store %arg3[%c0_116, %c0_117, %c0_118], %376 {strides = array<i32>} : memref<2x16x32xf32, #tpu.memory_space<vmem>>, vector<2x16x32xf32>,
    return
  }
}

</mosaic_0001>

<llo_original>
// kernel: forward.1
$region0: #{forward.1}
  #allocation0 [shape = 'u32[]', space=smem, size = 0x4, offset = 0x4, fixed_abs, tag = 'smem constant byte address 0x4 - core index']
  #allocation1 [shape = 'u32[144,128]{1,0:T(1,128)}', space=vmem, size = 0x12000, scoped, tag = 'internal scratch']
  %s0 = inlined_call_operand.vmem [shape: f32[2,8,256], index: 0, kind: input, shape index: {}]
  %s1 = inlined_call_operand.vmem [shape: f32[8,32], index: 1, kind: input, shape index: {}]
  %s2 = inlined_call_operand.vmem [shape: f32[808,128], index: 2, kind: input, shape index: {}]
  %s3 = inlined_call_operand.vmem [shape: f32[2,16,32], index: 3, kind: output, shape index: {}]
  %s4 = sld [smem:[#allocation0]]
  $region22: #{forward.1} parent=0
    _
  %s6 = ssub.s32 1, %s4
  %s7 = scalar_select 0, %s6, %s4
  // Predicated region
  $region2: #{forward.1} parent=0 // pred_check
    _
  $region3: #{forward.1} parent=0 // pred_check_branch
    %9 = sbr.rel (0) target = $region5
  $region4: #{forward.1} parent=0 // pred_region
    _
  $region5: #{forward.1} parent=0 // pred_fallthru
    _
  // Predicated region
  $region6: #{forward.1} parent=0 // pred_check
    _
  $region7: #{forward.1} parent=0 // pred_check_branch
    %11 = sbr.rel (0) target = $region9
  $region8: #{forward.1} parent=0 // pred_region
    _
  $region9: #{forward.1} parent=0 // pred_fallthru
    _
  // Predicated region
  $region10: #{forward.1} parent=0 // pred_check
    _
  $region11: #{forward.1} parent=0 // pred_check_branch
    %13 = sbr.rel (0) target = $region13
  $region12: #{forward.1} parent=0 // pred_region
    _
  $region13: #{forward.1} parent=0 // pred_fallthru
    _
  %v14 = vld [vmem:[%s0] sm:$0xff]
  %v15 = vld [vmem:[%s0 + $0x8] sm:$0xff]
  %v16 = vld [vmem:[%s0 + $0x10] sm:$0xff]
  %v17 = vld [vmem:[%s0 + $0x18] sm:$0xff]
  %v18 = vld [vmem:[%s2] sm:$0xff]
  %v19 = vld [vmem:[%s2 + $0x8] sm:$0xff]
  %v20 = vld [vmem:[%s2 + $0x10] sm:$0xff]
  %v21 = vld [vmem:[%s2 + $0x18] sm:$0xff]
  %v22 = vld [vmem:[%s2 + $0x20] sm:$0xff]
  %v23 = vld [vmem:[%s2 + $0x28] sm:$0xff]
  %v24 = vld [vmem:[%s2 + $0x30] sm:$0xff]
  %v25 = vld [vmem:[%s2 + $0x38] sm:$0xff]
  %v26 = vld [vmem:[%s2 + $0x40] sm:$0xff]
  %v27 = vld [vmem:[%s2 + $0x48] sm:$0xff]
  %v28 = vld [vmem:[%s2 + $0x50] sm:$0xff]
  %v29 = vld [vmem:[%s2 + $0x58] sm:$0xff]
  %v30 = vld [vmem:[%s2 + $0x60] sm:$0xff]
  %v31 = vld [vmem:[%s2 + $0x68] sm:$0xff]
  %v32 = vld [vmem:[%s2 + $0x70] sm:$0xff]
  %v33 = vld [vmem:[%s2 + $0x78] sm:$0xff]
  %v34 = vld [vmem:[%s2 + $0x80] sm:$0xff]
  %v35 = vld [vmem:[%s2 + $0x88] sm:$0xff]
  %v36 = vld [vmem:[%s2 + $0x90] sm:$0xff]
  %v37 = vld [vmem:[%s2 + $0x98] sm:$0xff]
  %v38 = vld [vmem:[%s2 + $0xa0] sm:$0xff]
  %v39 = vld [vmem:[%s2 + $0xa8] sm:$0xff]
  %v40 = vld [vmem:[%s2 + $0xb0] sm:$0xff]
  %v41 = vld [vmem:[%s2 + $0xb8] sm:$0xff]
  %v42 = vld [vmem:[%s2 + $0xc0] sm:$0xff]
  %v43 = vld [vmem:[%s2 + $0xc8] sm:$0xff]
  %v44 = vld [vmem:[%s2 + $0xd0] sm:$0xff]
  %v45 = vld [vmem:[%s2 + $0xd8] sm:$0xff]
  %v46 = vld [vmem:[%s2 + $0xe0] sm:$0xff]
  %v47 = vld [vmem:[%s2 + $0xe8] sm:$0xff]
  %v48 = vld [vmem:[%s2 + $0xf0] sm:$0xff]
  %v49 = vld [vmem:[%s2 + $0xf8] sm:$0xff]
  %50 = vmatprep.subr.mxu0 0.0
  %51 = vmatpush1.msra.mxu0 %v18
  %52 = vmatprep.subr.mxu0 0.0
  %53 = vmatpush1.msra.mxu0 %v19
  %54 = vmatprep.subr.mxu0 0.0
  %55 = vmatpush1.msra.mxu0 %v20
  %56 = vmatprep.subr.mxu0 0.0
  %57 = vmatpush1.msra.mxu0 %v21
  %58 = vmatprep.subr.mxu0 0.0
  %59 = vmatpush1.msra.mxu0 %v22
  %60 = vmatprep.subr.mxu0 0.0
  %61 = vmatpush1.msra.mxu0 %v23
  %62 = vmatprep.subr.mxu0 0.0
  %63 = vmatpush1.msra.mxu0 %v24
  %64 = vmatprep.subr.mxu0 0.0
  %65 = vmatpush1.msra.mxu0 %v25
  %66 = vmatprep.subr.mxu0 0.0
  %67 = vmatpush1.msra.mxu0 %v26
  %68 = vmatprep.subr.mxu0 0.0
  %69 = vmatpush1.msra.mxu0 %v27
  %70 = vmatprep.subr.mxu0 0.0
  %71 = vmatpush1.msra.mxu0 %v28
  %72 = vmatprep.subr.mxu0 0.0
  %73 = vmatpush1.msra.mxu0 %v29
  %74 = vmatprep.subr.mxu0 0.0
  %75 = vmatpush1.msra.mxu0 %v30
  %76 = vmatprep.subr.mxu0 0.0
  %77 = vmatpush1.msra.mxu0 %v31
  %78 = vmatprep.subr.mxu0 0.0
  %79 = vmatpush1.msra.mxu0 %v32
  %80 = vmatprep.subr.mxu0 0.0
  %81 = vmatpush1.msra.mxu0 %v33
  %82 = vmatprep.subr.mxu0 0.0
  %83 = vmatpush1.msra.mxu0 %v34
  %84 = vmatprep.subr.mxu0 0.0
  %85 = vmatpush1.msra.mxu0 %v35
  %86 = vmatprep.subr.mxu0 0.0
  %87 = vmatpush1.msra.mxu0 %v36
  %88 = vmatprep.subr.mxu0 0.0
  %89 = vmatpush1.msra.mxu0 %v37
  %90 = vmatprep.subr.mxu0 0.0
  %91 = vmatpush1.msra.mxu0 %v38
  %92 = vmatprep.subr.mxu0 0.0
  %93 = vmatpush1.msra.mxu0 %v39
  %94 = vmatprep.subr.mxu0 0.0
  %95 = vmatpush1.msra.mxu0 %v40
  %96 = vmatprep.subr.mxu0 0.0
  %97 = vmatpush1.msra.mxu0 %v41
  %98 = vmatprep.subr.mxu0 0.0
  %99 = vmatpush1.msra.mxu0 %v42
  %100 = vmatprep.subr.mxu0 0.0
  %101 = vmatpush1.msra.mxu0 %v43
  %102 = vmatprep.subr.mxu0 0.0
  %103 = vmatpush1.msra.mxu0 %v44
  %104 = vmatprep.subr.mxu0 0.0
  %105 = vmatpush1.msra.mxu0 %v45
  %106 = vmatprep.subr.mxu0 0.0
  %107 = vmatpush1.msra.mxu0 %v46
  %108 = vmatprep.subr.mxu0 0.0
  %109 = vmatpush1.msra.mxu0 %v47
  %110 = vmatprep.subr.mxu0 0.0
  %111 = vmatpush1.msra.mxu0 %v48
  %112 = vmatprep.subr.mxu0 0.0
  %113 = vmatpush1.msra.mxu0 %v49
  %114 = vmatprep.mubr.f32.mxu0 %v15
  %115 = vmatmul.mubr.f32.gmra.mrb[0].mxu0 %v14
  %v116 = vpop.f32.mrb[0].mxu0
  %v117 = vadd.f32 0.0, %v116
  %v118 = vpop.f32.mrb[0].mxu0
  %119 = vmatprep.mubr.f32.mxu0 %v17
  %120 = vmatmul.mubr.f32.gmra.mrb[0].mxu0 %v16
  %v121 = vpop.f32.mrb[0].mxu0
  %v122 = vadd.f32 0.0, %v121
  %v123 = vpop.f32.mrb[0].mxu0
  %124 = vdwg.mxu0
  %v125 = vld [vmem:[%s2 + $0x100] sm:$0xff]
  %v126 = vadd.f32 %v117, %v125
  %v127 = vadd.f32 %v122, %v125
  %v128 = vld [vmem:[%s2 + $0x108] sm:$0xff]
  %v129 = vld [vmem:[%s2 + $0x110] sm:$0xff]
  %v130 = vld [vmem:[%s2 + $0x118] sm:$0xff]
  %v131 = vld [vmem:[%s2 + $0x120] sm:$0xff]
  %v132 = vld [vmem:[%s2 + $0x128] sm:$0xff]
  %v133 = vld [vmem:[%s2 + $0x130] sm:$0xff]
  %v134 = vld [vmem:[%s2 + $0x138] sm:$0xff]
  %v135 = vld [vmem:[%s2 + $0x140] sm:$0xff]
  %vm136 = vcmask 523264
  %v138 = vsel %vm136, %v126, 0
  %v141 = vsel %vm136, %v127, 0
  %143 = vmatprep.subr.mxu0 0.0
  %144 = vmatpush1.msra.mxu0 %v128
  %145 = vmatprep.subr.mxu0 0.0
  %146 = vmatpush1.msra.mxu0 %v129
  %147 = vmatprep.subr.mxu0 0.0
  %148 = vmatpush1.msra.mxu0 %v130
  %149 = vmatprep.subr.mxu0 0.0
  %150 = vmatpush1.msra.mxu0 %v131
  %151 = vmatprep.subr.mxu0 0.0
  %152 = vmatpush1.msra.mxu0 %v132
  %153 = vmatprep.subr.mxu0 0.0
  %154 = vmatpush1.msra.mxu0 %v133
  %155 = vmatprep.subr.mxu0 0.0
  %156 = vmatpush1.msra.mxu0 %v134
  %157 = vmatprep.subr.mxu0 0.0
  %158 = vmatpush1.msra.mxu0 %v135
  %159 = vmatprep.subr.mxu0 0.0
  %160 = vmatpush1.msra.mxu0 0.0
  %161 = vmatprep.subr.mxu0 0.0
  %162 = vmatpush1.msra.mxu0 0.0
  %163 = vmatprep.subr.mxu0 0.0
  %164 = vmatpush1.msra.mxu0 0.0
  %165 = vmatprep.subr.mxu0 0.0
  %166 = vmatpush1.msra.mxu0 0.0
  %167 = vmatprep.subr.mxu0 0.0
  %168 = vmatpush1.msra.mxu0 0.0
  %169 = vmatprep.subr.mxu0 0.0
  %170 = vmatpush1.msra.mxu0 0.0
  %171 = vmatprep.subr.mxu0 0.0
  %172 = vmatpush1.msra.mxu0 0.0
  %173 = vmatprep.subr.mxu0 0.0
  %174 = vmatpush1.msra.mxu0 0.0
  %175 = vmatprep.subr.mxu0 0.0
  %176 = vmatpush1.msra.mxu0 0.0
  %177 = vmatprep.subr.mxu0 0.0
  %178 = vmatpush1.msra.mxu0 0.0
  %179 = vmatprep.subr.mxu0 0.0
  %180 = vmatpush1.msra.mxu0 0.0
  %181 = vmatprep.subr.mxu0 0.0
  %182 = vmatpush1.msra.mxu0 0.0
  %183 = vmatprep.subr.mxu0 0.0
  %184 = vmatpush1.msra.mxu0 0.0
  %185 = vmatprep.subr.mxu0 0.0
  %186 = vmatpush1.msra.mxu0 0.0
  %187 = vmatprep.subr.mxu0 0.0
  %188 = vmatpush1.msra.mxu0 0.0
  %189 = vmatprep.subr.mxu0 0.0
  %190 = vmatpush1.msra.mxu0 0.0
  %191 = vmatprep.subr.mxu0 0.0
  %192 = vmatpush1.msra.mxu0 0.0
  %193 = vmatprep.subr.mxu0 0.0
  %194 = vmatpush1.msra.mxu0 0.0
  %195 = vmatprep.subr.mxu0 0.0
  %196 = vmatpush1.msra.mxu0 0.0
  %197 = vmatprep.subr.mxu0 0.0
  %198 = vmatpush1.msra.mxu0 0.0
  %199 = vmatprep.subr.mxu0 0.0
  %200 = vmatpush1.msra.mxu0 0.0
  %201 = vmatprep.subr.mxu0 0.0
  %202 = vmatpush1.msra.mxu0 0.0
  %203 = vmatprep.subr.mxu0 0.0
  %204 = vmatpush1.msra.mxu0 0.0
  %205 = vmatprep.subr.mxu0 0.0
  %206 = vmatpush1.msra.mxu0 0.0
  %207 = vmatprep.mubr.f32.mxu0 0.0
  %208 = vmatmul.mubr.f32.gmra.mrb[0].mxu0 %v138
  %v209 = vpop.f32.mrb[0].mxu0
  %v210 = vadd.f32 0.0, %v209
  %v211 = vpop.f32.mrb[0].mxu0
  %212 = vmatprep.mubr.f32.mxu0 0.0
  %213 = vmatmul.mubr.f32.gmra.mrb[0].mxu0 %v141
  %v214 = vpop.f32.mrb[0].mxu0
  %v215 = vadd.f32 0.0, %v214
  %v216 = vpop.f32.mrb[0].mxu0
  %217 = vdwg.mxu0
  %v218 = vld [vmem:[%s2 + $0x148] sm:$0x1]
  %v219 = vld [vmem:[%s2 + $0x150] sm:$0x1]
  %vm220 = vcmask 261120
  %v221 = vsel %vm220, %v210, 0.0
  %222 = vadd.xlane.f32.xlu0 %v221
  %v223 = vpop.xlane.xlu0 %222
  %v224 = vsel %vm220, %v215, 0.0
  %225 = vadd.xlane.f32.xlu0 %v224
  %v226 = vpop.xlane.xlu0 %225
  %v227 = vrcp.pop 32.0
  %v228 = vmul.f32 %v223, %v227
  %v229 = vmul.f32 %v226, %v227
  %v230 = vsub.f32 %v210, %v228
  %v231 = vsub.f32 %v215, %v229
  %v232 = vmul.f32 %v230, %v230
  %v233 = vmul.f32 %v231, %v231
  %v234 = vsel %vm220, %v232, 0.0
  %235 = vadd.xlane.f32.xlu0 %v234
  %v236 = vpop.xlane.xlu0 %235
  %v237 = vsel %vm220, %v233, 0.0
  %238 = vadd.xlane.f32.xlu0 %v237
  %v239 = vpop.xlane.xlu0 %238
  %v240 = vmul.f32 %v236, %v227
  %v241 = vmul.f32 %v239, %v227
  %v242 = vadd.f32 %v240, 1e-05
  %v243 = vadd.f32 %v241, 1e-05
  %v244 = vrsqrt.pop %v242
  %v245 = vrsqrt.pop %v243
  %v246 = vmul.f32 %v230, %v244
  %v247 = vmul.f32 %v231, %v245
  %v248 = vlaneseq
  %v249 = vshrl.u32 %v248, 7
  %v250 = vsub.s32 0, %v249
  %v251 = vrot.slane %v218, %v250
  %v252 = vmul.f32 %v246, %v251
  %v253 = vmul.f32 %v247, %v251
  %v254 = vlaneseq
  %v255 = vshrl.u32 %v254, 7
  %v256 = vsub.s32 0, %v255
  %v257 = vrot.slane %v219, %v256
  %v258 = vadd.f32 %v252, %v257
  %v259 = vadd.f32 %v253, %v257
  %v260 = vld [vmem:[%s2 + $0x158] sm:$0xff]
  %v261 = vadd.f32 %v258, %v260
  %v262 = vadd.f32 %v259, %v260
  %v263 = vlaneseq
  %v264 = vand.u32 %v263, 127
  %vm265 = vcmp.lt.s32.totalorder %v264, 5
  %v266 = vsel %vm265, 0.0, -1e+30
  %v267 = vld [vmem:[%s1] sm:$0xff]
  %v268 = vadd.f32 %v267, 0.0
  %v269 = vld [vmem:[%s2 + $0x160] sm:$0xff]
  %v270 = vld [vmem:[%s2 + $0x168] sm:$0xff]
  %v271 = vld [vmem:[%s2 + $0x170] sm:$0xff]
  %v272 = vld [vmem:[%s2 + $0x178] sm:$0xff]
  %v273 = vld [vmem:[%s2 + $0x180] sm:$0x1]
  %v274 = vlaneseq
  %v275 = vshrl.u32 %v274, 7
  %v276 = vsub.s32 0, %v275
  %v277 = vrot.slane %v273, %v276
  %v279 = vsel %vm220, %v268, 0
  %281 = vmatprep.subr.mxu0 0.0
  %282 = vmatpush1.msra.mxu0 %v269
  %283 = vmatprep.subr.mxu0 0.0
  %284 = vmatpush1.msra.mxu0 %v270
  %285 = vmatprep.subr.mxu0 0.0
  %286 = vmatpush1.msra.mxu0 %v271
  %287 = vmatprep.subr.mxu0 0.0
  %288 = vmatpush1.msra.mxu0 %v272
  %289 = vmatprep.subr.mxu0 0.0
  %290 = vmatpush1.msra.mxu0 0.0
  %291 = vmatprep.subr.mxu0 0.0
  %292 = vmatpush1.msra.mxu0 0.0
  %293 = vmatprep.subr.mxu0 0.0
  %294 = vmatpush1.msra.mxu0 0.0
  %295 = vmatprep.subr.mxu0 0.0
  %296 = vmatpush1.msra.mxu0 0.0
  %297 = vmatprep.subr.mxu0 0.0
  %298 = vmatpush1.msra.mxu0 0.0
  %299 = vmatprep.subr.mxu0 0.0
  %300 = vmatpush1.msra.mxu0 0.0
  %301 = vmatprep.subr.mxu0 0.0
  %302 = vmatpush1.msra.mxu0 0.0
  %303 = vmatprep.subr.mxu0 0.0
  %304 = vmatpush1.msra.mxu0 0.0
  %305 = vmatprep.subr.mxu0 0.0
  %306 = vmatpush1.msra.mxu0 0.0
  %307 = vmatprep.subr.mxu0 0.0
  %308 = vmatpush1.msra.mxu0 0.0
  %309 = vmatprep.subr.mxu0 0.0
  %310 = vmatpush1.msra.mxu0 0.0
  %311 = vmatprep.subr.mxu0 0.0
  %312 = vmatpush1.msra.mxu0 0.0
  %313 = vmatprep.subr.mxu0 0.0
  %314 = vmatpush1.msra.mxu0 0.0
  %315 = vmatprep.subr.mxu0 0.0
  %316 = vmatpush1.msra.mxu0 0.0
  %317 = vmatprep.subr.mxu0 0.0
  %318 = vmatpush1.msra.mxu0 0.0
  %319 = vmatprep.subr.mxu0 0.0
  %320 = vmatpush1.msra.mxu0 0.0
  %321 = vmatprep.subr.mxu0 0.0
  %322 = vmatpush1.msra.mxu0 0.0
  %323 = vmatprep.subr.mxu0 0.0
  %324 = vmatpush1.msra.mxu0 0.0
  %325 = vmatprep.subr.mxu0 0.0
  %326 = vmatpush1.msra.mxu0 0.0
  %327 = vmatprep.subr.mxu0 0.0
  %328 = vmatpush1.msra.mxu0 0.0
  %329 = vmatprep.subr.mxu0 0.0
  %330 = vmatpush1.msra.mxu0 0.0
  %331 = vmatprep.subr.mxu0 0.0
  %332 = vmatpush1.msra.mxu0 0.0
  %333 = vmatprep.subr.mxu0 0.0
  %334 = vmatpush1.msra.mxu0 0.0
  %335 = vmatprep.subr.mxu0 0.0
  %336 = vmatpush1.msra.mxu0 0.0
  %337 = vmatprep.subr.mxu0 0.0
  %338 = vmatpush1.msra.mxu0 0.0
  %339 = vmatprep.subr.mxu0 0.0
  %340 = vmatpush1.msra.mxu0 0.0
  %341 = vmatprep.subr.mxu0 0.0
  %342 = vmatpush1.msra.mxu0 0.0
  %343 = vmatprep.subr.mxu0 0.0
  %344 = vmatpush1.msra.mxu0 0.0
  %345 = vmatprep.mubr.f32.mxu0 0.0
  %346 = vmatmul.mubr.f32.gmra.mrb[0].mxu0 %v279
  %v347 = vpop.f32.mrb[0].mxu0
  %v348 = vadd.f32 %v277, %v347
  %v349 = vpop.f32.mrb[0].mxu0
  %350 = vmatprep.mubr.f32.mxu0 0.0
  %351 = vmatmul.mubr.f32.gmra.mrb[0].mxu0 %v279
  %v352 = vpop.f32.mrb[0].mxu0
  %v353 = vadd.f32 %v277, %v352
  %v354 = vpop.f32.mrb[0].mxu0
  %355 = vdwg.mxu0
  %v356 = vld [vmem:[%s2 + $0x188] sm:$0xff]
  %v357 = vld [vmem:[%s2 + $0x190] sm:$0xff]
  %v358 = vld [vmem:[%s2 + $0x198] sm:$0xff]
  %v359 = vld [vmem:[%s2 + $0x1a0] sm:$0xff]
  %v360 = vld [vmem:[%s2 + $0x1a8] sm:$0x1]
  %v361 = vlaneseq
  %v362 = vshrl.u32 %v361, 7
  %v363 = vsub.s32 0, %v362
  %v364 = vrot.slane %v360, %v363
  %v366 = vsel %vm220, 0.0, 0
  %368 = vmatprep.subr.mxu0 0.0
  %369 = vmatpush1.msra.mxu0 %v356
  %370 = vmatprep.subr.mxu0 0.0
  %371 = vmatpush1.msra.mxu0 %v357
  %372 = vmatprep.subr.mxu0 0.0
  %373 = vmatpush1.msra.mxu0 %v358
  %374 = vmatprep.subr.mxu0 0.0
  %375 = vmatpush1.msra.mxu0 %v359
  %376 = vmatprep.subr.mxu0 0.0
  %377 = vmatpush1.msra.mxu0 0.0
  %378 = vmatprep.subr.mxu0 0.0
  %379 = vmatpush1.msra.mxu0 0.0
  %380 = vmatprep.subr.mxu0 0.0
  %381 = vmatpush1.msra.mxu0 0.0
  %382 = vmatprep.subr.mxu0 0.0
  %383 = vmatpush1.msra.mxu0 0.0
  %384 = vmatprep.subr.mxu0 0.0
  %385 = vmatpush1.msra.mxu0 0.0
  %386 = vmatprep.subr.mxu0 0.0
  %387 = vmatpush1.msra.mxu0 0.0
  %388 = vmatprep.subr.mxu0 0.0
  %389 = vmatpush1.msra.mxu0 0.0
  %390 = vmatprep.subr.mxu0 0.0
  %391 = vmatpush1.msra.mxu0 0.0
  %392 = vmatprep.subr.mxu0 0.0
  %393 = vmatpush1.msra.mxu0 0.0
  %394 = vmatprep.subr.mxu0 0.0
  %395 = vmatpush1.msra.mxu0 0.0
  %396 = vmatprep.subr.mxu0 0.0
  %397 = vmatpush1.msra.mxu0 0.0
  %398 = vmatprep.subr.mxu0 0.0
  %399 = vmatpush1.msra.mxu0 0.0
  %400 = vmatprep.subr.mxu0 0.0
  %401 = vmatpush1.msra.mxu0 0.0
  %402 = vmatprep.subr.mxu0 0.0
  %403 = vmatpush1.msra.mxu0 0.0
  %404 = vmatprep.subr.mxu0 0.0
  %405 = vmatpush1.msra.mxu0 0.0
  %406 = vmatprep.subr.mxu0 0.0
  %407 = vmatpush1.msra.mxu0 0.0
  %408 = vmatprep.subr.mxu0 0.0
  %409 = vmatpush1.msra.mxu0 0.0
  %410 = vmatprep.subr.mxu0 0.0
  %411 = vmatpush1.msra.mxu0 0.0
  %412 = vmatprep.subr.mxu0 0.0
  %413 = vmatpush1.msra.mxu0 0.0
  %414 = vmatprep.subr.mxu0 0.0
  %415 = vmatpush1.msra.mxu0 0.0
  %416 = vmatprep.subr.mxu0 0.0
  %417 = vmatpush1.msra.mxu0 0.0
  %418 = vmatprep.subr.mxu0 0.0
  %419 = vmatpush1.msra.mxu0 0.0
  %420 = vmatprep.subr.mxu0 0.0
  %421 = vmatpush1.msra.mxu0 0.0
  %422 = vmatprep.subr.mxu0 0.0
  %423 = vmatpush1.msra.mxu0 0.0
  %424 = vmatprep.subr.mxu0 0.0
  %425 = vmatpush1.msra.mxu0 0.0
  %426 = vmatprep.subr.mxu0 0.0
  %427 = vmatpush1.msra.mxu0 0.0
  %428 = vmatprep.subr.mxu0 0.0
  %429 = vmatpush1.msra.mxu0 0.0
  %430 = vmatprep.subr.mxu0 0.0
  %431 = vmatpush1.msra.mxu0 0.0
  %432 = vmatprep.mubr.f32.mxu0 0.0
  %433 = vmatmul.mubr.f32.gmra.mrb[0].mxu0 %v366
  %v434 = vpop.f32.mrb[0].mxu0
  %v435 = vadd.f32 %v364, %v434
  %v436 = vpop.f32.mrb[0].mxu0
  %437 = vmatprep.mubr.f32.mxu0 0.0
  %438 = vmatmul.mubr.f32.gmra.mrb[0].mxu0 %v366
  %v439 = vpop.f32.mrb[0].mxu0
  %v440 = vadd.f32 %v364, %v439
  %v441 = vpop.f32.mrb[0].mxu0
  %442 = vdwg.mxu0
  %v443 = vmul.f32 %v348, 0.35355338
  %v444 = vmul.f32 %v353, 0.35355338
  %446 = vrot.lane.b32.xlu0 %v348, 96
  %v447 = vpop.permute.xlu0 %446
  %vm448 = vcmask 64512
  %v450 = vsel %vm448, %v443, 0
  %v452 = vsel %vm448, %v447, 0
  %454 = vmatprep.subr.mxu0 0.0
  %455 = vmatpush1.xpose.msra.mxu0 %v452
  %456 = vmatprep.subr.mxu0 0.0
  %457 = vmatpush1.xpose.msra.mxu0 0.0
  %458 = vmatprep.subr.mxu0 0.0
  %459 = vmatpush1.xpose.msra.mxu0 0.0
  %460 = vmatprep.subr.mxu0 0.0
  %461 = vmatpush1.xpose.msra.mxu0 0.0
  %462 = vmatprep.subr.mxu0 0.0
  %463 = vmatpush1.xpose.msra.mxu0 0.0
  %464 = vmatprep.subr.mxu0 0.0
  %465 = vmatpush1.xpose.msra.mxu0 0.0
  %466 = vmatprep.subr.mxu0 0.0
  %467 = vmatpush1.xpose.msra.mxu0 0.0
  %468 = vmatprep.subr.mxu0 0.0
  %469 = vmatpush1.xpose.msra.mxu0 0.0
  %470 = vmatprep.subr.mxu0 0.0
  %471 = vmatpush1.xpose.msra.mxu0 0.0
  %472 = vmatprep.subr.mxu0 0.0
  %473 = vmatpush1.xpose.msra.mxu0 0.0
  %474 = vmatprep.subr.mxu0 0.0
  %475 = vmatpush1.xpose.msra.mxu0 0.0
  %476 = vmatprep.subr.mxu0 0.0
  %477 = vmatpush1.xpose.msra.mxu0 0.0
  %478 = vmatprep.subr.mxu0 0.0
  %479 = vmatpush1.xpose.msra.mxu0 0.0
  %480 = vmatprep.subr.mxu0 0.0
  %481 = vmatpush1.xpose.msra.mxu0 0.0
  %482 = vmatprep.subr.mxu0 0.0
  %483 = vmatpush1.xpose.msra.mxu0 0.0
  %484 = vmatprep.subr.mxu0 0.0
  %485 = vmatpush1.xpose.msra.mxu0 0.0
  %486 = vmatprep.subr.mxu0 0.0
  %487 = vmatpush1.xpose.msra.mxu0 0.0
  %488 = vmatprep.subr.mxu0 0.0
  %489 = vmatpush1.xpose.msra.mxu0 0.0
  %490 = vmatprep.subr.mxu0 0.0
  %491 = vmatpush1.xpose.msra.mxu0 0.0
  %492 = vmatprep.subr.mxu0 0.0
  %493 = vmatpush1.xpose.msra.mxu0 0.0
  %494 = vmatprep.subr.mxu0 0.0
  %495 = vmatpush1.xpose.msra.mxu0 0.0
  %496 = vmatprep.subr.mxu0 0.0
  %497 = vmatpush1.xpose.msra.mxu0 0.0
  %498 = vmatprep.subr.mxu0 0.0
  %499 = vmatpush1.xpose.msra.mxu0 0.0
  %500 = vmatprep.subr.mxu0 0.0
  %501 = vmatpush1.xpose.msra.mxu0 0.0
  %502 = vmatprep.subr.mxu0 0.0
  %503 = vmatpush1.xpose.msra.mxu0 0.0
  %504 = vmatprep.subr.mxu0 0.0
  %505 = vmatpush1.xpose.msra.mxu0 0.0
  %506 = vmatprep.subr.mxu0 0.0
  %507 = vmatpush1.xpose.msra.mxu0 0.0
  %508 = vmatprep.subr.mxu0 0.0
  %509 = vmatpush1.xpose.msra.mxu0 0.0
  %510 = vmatprep.subr.mxu0 0.0
  %511 = vmatpush1.xpose.msra.mxu0 0.0
  %512 = vmatprep.subr.mxu0 0.0
  %513 = vmatpush1.xpose.msra.mxu0 0.0
  %514 = vmatprep.subr.mxu0 0.0
  %515 = vmatpush1.xpose.msra.mxu0 0.0
  %516 = vmatprep.subr.mxu0 0.0
  %517 = vmatpush1.xpose.msra.mxu0 0.0
  %518 = vmatprep.mubr.f32.mxu0 0.0
  %519 = vmatmul.mubr.f32.gmra.mrb[0].mxu0 %v450
  %v520 = vpop.f32.mrb[0].mxu0
  %v521 = vadd.f32 0.0, %v520
  %v522 = vpop.f32.mrb[0].mxu0
  %523 = vdwg.mxu0
  %525 = vrot.lane.b32.xlu0 %v353, 96
  %v526 = vpop.permute.xlu0 %525
  %v528 = vsel %vm448, %v444, 0
  %v530 = vsel %vm448, %v526, 0
  %532 = vmatprep.subr.mxu0 0.0
  %533 = vmatpush1.xpose.msra.mxu0 %v530
  %534 = vmatprep.subr.mxu0 0.0
  %535 = vmatpush1.xpose.msra.mxu0 0.0
  %536 = vmatprep.subr.mxu0 0.0
  %537 = vmatpush1.xpose.msra.mxu0 0.0
  %538 = vmatprep.subr.mxu0 0.0
  %539 = vmatpush1.xpose.msra.mxu0 0.0
  %540 = vmatprep.subr.mxu0 0.0
  %541 = vmatpush1.xpose.msra.mxu0 0.0
  %542 = vmatprep.subr.mxu0 0.0
  %543 = vmatpush1.xpose.msra.mxu0 0.0
  %544 = vmatprep.subr.mxu0 0.0
  %545 = vmatpush1.xpose.msra.mxu0 0.0
  %546 = vmatprep.subr.mxu0 0.0
  %547 = vmatpush1.xpose.msra.mxu0 0.0
  %548 = vmatprep.subr.mxu0 0.0
  %549 = vmatpush1.xpose.msra.mxu0 0.0
  %550 = vmatprep.subr.mxu0 0.0
  %551 = vmatpush1.xpose.msra.mxu0 0.0
  %552 = vmatprep.subr.mxu0 0.0
  %553 = vmatpush1.xpose.msra.mxu0 0.0
  %554 = vmatprep.subr.mxu0 0.0
  %555 = vmatpush1.xpose.msra.mxu0 0.0
  %556 = vmatprep.subr.mxu0 0.0
  %557 = vmatpush1.xpose.msra.mxu0 0.0
  %558 = vmatprep.subr.mxu0 0.0
  %559 = vmatpush1.xpose.msra.mxu0 0.0
  %560 = vmatprep.subr.mxu0 0.0
  %561 = vmatpush1.xpose.msra.mxu0 0.0
  %562 = vmatprep.subr.mxu0 0.0
  %563 = vmatpush1.xpose.msra.mxu0 0.0
  %564 = vmatprep.subr.mxu0 0.0
  %565 = vmatpush1.xpose.msra.mxu0 0.0
  %566 = vmatprep.subr.mxu0 0.0
  %567 = vmatpush1.xpose.msra.mxu0 0.0
  %568 = vmatprep.subr.mxu0 0.0
  %569 = vmatpush1.xpose.msra.mxu0 0.0
  %570 = vmatprep.subr.mxu0 0.0
  %571 = vmatpush1.xpose.msra.mxu0 0.0
  %572 = vmatprep.subr.mxu0 0.0
  %573 = vmatpush1.xpose.msra.mxu0 0.0
  %574 = vmatprep.subr.mxu0 0.0
  %575 = vmatpush1.xpose.msra.mxu0 0.0
  %576 = vmatprep.subr.mxu0 0.0
  %577 = vmatpush1.xpose.msra.mxu0 0.0
  %578 = vmatprep.subr.mxu0 0.0
  %579 = vmatpush1.xpose.msra.mxu0 0.0
  %580 = vmatprep.subr.mxu0 0.0
  %581 = vmatpush1.xpose.msra.mxu0 0.0
  %582 = vmatprep.subr.mxu0 0.0
  %583 = vmatpush1.xpose.msra.mxu0 0.0
  %584 = vmatprep.subr.mxu0 0.0
  %585 = vmatpush1.xpose.msra.mxu0 0.0
  %586 = vmatprep.subr.mxu0 0.0
  %587 = vmatpush1.xpose.msra.mxu0 0.0
  %588 = vmatprep.subr.mxu0 0.0
  %589 = vmatpush1.xpose.msra.mxu0 0.0
  %590 = vmatprep.subr.mxu0 0.0
  %591 = vmatpush1.xpose.msra.mxu0 0.0
  %592 = vmatprep.subr.mxu0 0.0
  %593 = vmatpush1.xpose.msra.mxu0 0.0
  %594 = vmatprep.subr.mxu0 0.0
  %595 = vmatpush1.xpose.msra.mxu0 0.0
  %596 = vmatprep.mubr.f32.mxu0 0.0
  %597 = vmatmul.mubr.f32.gmra.mrb[0].mxu0 %v528
  %v598 = vpop.f32.mrb[0].mxu0
  %v599 = vadd.f32 0.0, %v598
  %v600 = vpop.f32.mrb[0].mxu0
  %601 = vdwg.mxu0
  %v602 = vsel %vm448, %v521, -inf
  %603 = vmax.xlane.f32.xlu0 %v602
  %v604 = vpop.xlane.xlu0 %603
  %v605 = vsel %vm448, %v599, -inf
  %606 = vmax.xlane.f32.xlu0 %v605
  %v607 = vpop.xlane.xlu0 %606
  %v608 = vsub.f32 %v521, %v604
  %v609 = vsub.f32 %v599, %v607
  %v610 = vmul.f32 %v608, 1.442695
  %v611 = vpow.pop %v610
  %v612 = vmul.f32 %v609, 1.442695
  %v613 = vpow.pop %v612
  %v614 = vsel %vm448, %v611, 0.0
  %615 = vadd.xlane.f32.xlu0 %v614
  %v616 = vpop.xlane.xlu0 %615
  %v617 = vsel %vm448, %v613, 0.0
  %618 = vadd.xlane.f32.xlu0 %v617
  %v619 = vpop.xlane.xlu0 %618
  %v620 = vrcp.pop %v616
  %v621 = vrcp.pop %v619
  %v622 = vmul.f32 %v611, %v620
  %v623 = vmul.f32 %v613, %v621
  %v625 = vsel %vm448, %v622, 0
  %627 = vmatprep.subr.mxu0 0.0
  %628 = vmatpush1.msra.mxu0 %v435
  %629 = vmatprep.subr.mxu0 0.0
  %630 = vmatpush1.msra.mxu0 0.0
  %631 = vmatprep.subr.mxu0 0.0
  %632 = vmatpush1.msra.mxu0 0.0
  %633 = vmatprep.subr.mxu0 0.0
  %634 = vmatpush1.msra.mxu0 0.0
  %635 = vmatprep.subr.mxu0 0.0
  %636 = vmatpush1.msra.mxu0 0.0
  %637 = vmatprep.subr.mxu0 0.0
  %638 = vmatpush1.msra.mxu0 0.0
  %639 = vmatprep.subr.mxu0 0.0
  %640 = vmatpush1.msra.mxu0 0.0
  %641 = vmatprep.subr.mxu0 0.0
  %642 = vmatpush1.msra.mxu0 0.0
  %643 = vmatprep.subr.mxu0 0.0
  %644 = vmatpush1.msra.mxu0 0.0
  %645 = vmatprep.subr.mxu0 0.0
  %646 = vmatpush1.msra.mxu0 0.0
  %647 = vmatprep.subr.mxu0 0.0
  %648 = vmatpush1.msra.mxu0 0.0
  %649 = vmatprep.subr.mxu0 0.0
  %650 = vmatpush1.msra.mxu0 0.0
  %651 = vmatprep.subr.mxu0 0.0
  %652 = vmatpush1.msra.mxu0 0.0
  %653 = vmatprep.subr.mxu0 0.0
  %654 = vmatpush1.msra.mxu0 0.0
  %655 = vmatprep.subr.mxu0 0.0
  %656 = vmatpush1.msra.mxu0 0.0
  %657 = vmatprep.subr.mxu0 0.0
  %658 = vmatpush1.msra.mxu0 0.0
  %659 = vmatprep.subr.mxu0 0.0
  %660 = vmatpush1.msra.mxu0 0.0
  %661 = vmatprep.subr.mxu0 0.0
  %662 = vmatpush1.msra.mxu0 0.0
  %663 = vmatprep.subr.mxu0 0.0
  %664 = vmatpush1.msra.mxu0 0.0
  %665 = vmatprep.subr.mxu0 0.0
  %666 = vmatpush1.msra.mxu0 0.0
  %667 = vmatprep.subr.mxu0 0.0
  %668 = vmatpush1.msra.mxu0 0.0
  %669 = vmatprep.subr.mxu0 0.0
  %670 = vmatpush1.msra.mxu0 0.0
  %671 = vmatprep.subr.mxu0 0.0
  %672 = vmatpush1.msra.mxu0 0.0
  %673 = vmatprep.subr.mxu0 0.0
  %674 = vmatpush1.msra.mxu0 0.0
  %675 = vmatprep.subr.mxu0 0.0
  %676 = vmatpush1.msra.mxu0 0.0
  %677 = vmatprep.subr.mxu0 0.0
  %678 = vmatpush1.msra.mxu0 0.0
  %679 = vmatprep.subr.mxu0 0.0
  %680 = vmatpush1.msra.mxu0 0.0
  %681 = vmatprep.subr.mxu0 0.0
  %682 = vmatpush1.msra.mxu0 0.0
  %683 = vmatprep.subr.mxu0 0.0
  %684 = vmatpush1.msra.mxu0 0.0
  %685 = vmatprep.subr.mxu0 0.0
  %686 = vmatpush1.msra.mxu0 0.0
  %687 = vmatprep.subr.mxu0 0.0
  %688 = vmatpush1.msra.mxu0 0.0
  %689 = vmatprep.subr.mxu0 0.0
  %690 = vmatpush1.msra.mxu0 0.0
  %691 = vmatprep.mubr.f32.mxu0 0.0
  %692 = vmatmul.mubr.f32.gmra.mrb[0].mxu0 %v625
  %v693 = vpop.f32.mrb[0].mxu0
  %v694 = vadd.f32 0.0, %v693
  %v695 = vpop.f32.mrb[0].mxu0
  %696 = vdwg.mxu0
  %v698 = vsel %vm448, %v623, 0
  %700 = vmatprep.subr.mxu0 0.0
  %701 = vmatpush1.msra.mxu0 %v440
  %702 = vmatprep.subr.mxu0 0.0
  %703 = vmatpush1.msra.mxu0 0.0
  %704 = vmatprep.subr.mxu0 0.0
  %705 = vmatpush1.msra.mxu0 0.0
  %706 = vmatprep.subr.mxu0 0.0
  %707 = vmatpush1.msra.mxu0 0.0
  %708 = vmatprep.subr.mxu0 0.0
  %709 = vmatpush1.msra.mxu0 0.0
  %710 = vmatprep.subr.mxu0 0.0
  %711 = vmatpush1.msra.mxu0 0.0
  %712 = vmatprep.subr.mxu0 0.0
  %713 = vmatpush1.msra.mxu0 0.0
  %714 = vmatprep.subr.mxu0 0.0
  %715 = vmatpush1.msra.mxu0 0.0
  %716 = vmatprep.subr.mxu0 0.0
  %717 = vmatpush1.msra.mxu0 0.0
  %718 = vmatprep.subr.mxu0 0.0
  %719 = vmatpush1.msra.mxu0 0.0
  %720 = vmatprep.subr.mxu0 0.0
  %721 = vmatpush1.msra.mxu0 0.0
  %722 = vmatprep.subr.mxu0 0.0
  %723 = vmatpush1.msra.mxu0 0.0
  %724 = vmatprep.subr.mxu0 0.0
  %725 = vmatpush1.msra.mxu0 0.0
  %726 = vmatprep.subr.mxu0 0.0
  %727 = vmatpush1.msra.mxu0 0.0
  %728 = vmatprep.subr.mxu0 0.0
  %729 = vmatpush1.msra.mxu0 0.0
  %730 = vmatprep.subr.mxu0 0.0
  %731 = vmatpush1.msra.mxu0 0.0
  %732 = vmatprep.subr.mxu0 0.0
  %733 = vmatpush1.msra.mxu0 0.0
  %734 = vmatprep.subr.mxu0 0.0
  %735 = vmatpush1.msra.mxu0 0.0
  %736 = vmatprep.subr.mxu0 0.0
  %737 = vmatpush1.msra.mxu0 0.0
  %738 = vmatprep.subr.mxu0 0.0
  %739 = vmatpush1.msra.mxu0 0.0
  %740 = vmatprep.subr.mxu0 0.0
  %741 = vmatpush1.msra.mxu0 0.0
  %742 = vmatprep.subr.mxu0 0.0
  %743 = vmatpush1.msra.mxu0 0.0
  %744 = vmatprep.subr.mxu0 0.0
  %745 = vmatpush1.msra.mxu0 0.0
  %746 = vmatprep.subr.mxu0 0.0
  %747 = vmatpush1.msra.mxu0 0.0
  %748 = vmatprep.subr.mxu0 0.0
  %749 = vmatpush1.msra.mxu0 0.0
  %750 = vmatprep.subr.mxu0 0.0
  %751 = vmatpush1.msra.mxu0 0.0
  %752 = vmatprep.subr.mxu0 0.0
  %753 = vmatpush1.msra.mxu0 0.0
  %754 = vmatprep.subr.mxu0 0.0
  %755 = vmatpush1.msra.mxu0 0.0
  %756 = vmatprep.subr.mxu0 0.0
  %757 = vmatpush1.msra.mxu0 0.0
  %758 = vmatprep.subr.mxu0 0.0
  %759 = vmatpush1.msra.mxu0 0.0
  %760 = vmatprep.subr.mxu0 0.0
  %761 = vmatpush1.msra.mxu0 0.0
  %762 = vmatprep.subr.mxu0 0.0
  %763 = vmatpush1.msra.mxu0 0.0
  %764 = vmatprep.mubr.f32.mxu0 0.0
  %765 = vmatmul.mubr.f32.gmra.mrb[0].mxu0 %v698
  %v766 = vpop.f32.mrb[0].mxu0
  %v767 = vadd.f32 0.0, %v766
  %v768 = vpop.f32.mrb[0].mxu0
  %769 = vdwg.mxu0
  %770 = vrot.lane.b32.xlu0 %v443, 120
  %v771 = vpop.permute.xlu0 %770
  %772 = vrot.lane.b32.xlu0 %v348, 88
  %v773 = vpop.permute.xlu0 %772
  %v774 = vsel %vm448, %v771, 0
  %v776 = vsel %vm448, %v773, 0
  %778 = vmatprep.subr.mxu0 0.0
  %779 = vmatpush1.xpose.msra.mxu0 %v776
  %780 = vmatprep.subr.mxu0 0.0
  %781 = vmatpush1.xpose.msra.mxu0 0.0
  %782 = vmatprep.subr.mxu0 0.0
  %783 = vmatpush1.xpose.msra.mxu0 0.0
  %784 = vmatprep.subr.mxu0 0.0
  %785 = vmatpush1.xpose.msra.mxu0 0.0
  %786 = vmatprep.subr.mxu0 0.0
  %787 = vmatpush1.xpose.msra.mxu0 0.0
  %788 = vmatprep.subr.mxu0 0.0
  %789 = vmatpush1.xpose.msra.mxu0 0.0
  %790 = vmatprep.subr.mxu0 0.0
  %791 = vmatpush1.xpose.msra.mxu0 0.0
  %792 = vmatprep.subr.mxu0 0.0
  %793 = vmatpush1.xpose.msra.mxu0 0.0
  %794 = vmatprep.subr.mxu0 0.0
  %795 = vmatpush1.xpose.msra.mxu0 0.0
  %796 = vmatprep.subr.mxu0 0.0
  %797 = vmatpush1.xpose.msra.mxu0 0.0
  %798 = vmatprep.subr.mxu0 0.0
  %799 = vmatpush1.xpose.msra.mxu0 0.0
  %800 = vmatprep.subr.mxu0 0.0
  %801 = vmatpush1.xpose.msra.mxu0 0.0
  %802 = vmatprep.subr.mxu0 0.0
  %803 = vmatpush1.xpose.msra.mxu0 0.0
  %804 = vmatprep.subr.mxu0 0.0
  %805 = vmatpush1.xpose.msra.mxu0 0.0
  %806 = vmatprep.subr.mxu0 0.0
  %807 = vmatpush1.xpose.msra.mxu0 0.0
  %808 = vmatprep.subr.mxu0 0.0
  %809 = vmatpush1.xpose.msra.mxu0 0.0
  %810 = vmatprep.subr.mxu0 0.0
  %811 = vmatpush1.xpose.msra.mxu0 0.0
  %812 = vmatprep.subr.mxu0 0.0
  %813 = vmatpush1.xpose.msra.mxu0 0.0
  %814 = vmatprep.subr.mxu0 0.0
  %815 = vmatpush1.xpose.msra.mxu0 0.0
  %816 = vmatprep.subr.mxu0 0.0
  %817 = vmatpush1.xpose.msra.mxu0 0.0
  %818 = vmatprep.subr.mxu0 0.0
  %819 = vmatpush1.xpose.msra.mxu0 0.0
  %820 = vmatprep.subr.mxu0 0.0
  %821 = vmatpush1.xpose.msra.mxu0 0.0
  %822 = vmatprep.subr.mxu0 0.0
  %823 = vmatpush1.xpose.msra.mxu0 0.0
  %824 = vmatprep.subr.mxu0 0.0
  %825 = vmatpush1.xpose.msra.mxu0 0.0
  %826 = vmatprep.subr.mxu0 0.0
  %827 = vmatpush1.xpose.msra.mxu0 0.0
  %828 = vmatprep.subr.mxu0 0.0
  %829 = vmatpush1.xpose.msra.mxu0 0.0
  %830 = vmatprep.subr.mxu0 0.0
  %831 = vmatpush1.xpose.msra.mxu0 0.0
  %832 = vmatprep.subr.mxu0 0.0
  %833 = vmatpush1.xpose.msra.mxu0 0.0
  %834 = vmatprep.subr.mxu0 0.0
  %835 = vmatpush1.xpose.msra.mxu0 0.0
  %836 = vmatprep.subr.mxu0 0.0
  %837 = vmatpush1.xpose.msra.mxu0 0.0
  %838 = vmatprep.subr.mxu0 0.0
  %839 = vmatpush1.xpose.msra.mxu0 0.0
  %840 = vmatprep.subr.mxu0 0.0
  %841 = vmatpush1.xpose.msra.mxu0 0.0
  %842 = vmatprep.mubr.f32.mxu0 0.0
  %843 = vmatmul.mubr.f32.gmra.mrb[0].mxu0 %v774
  %v844 = vpop.f32.mrb[0].mxu0
  %v845 = vadd.f32 0.0, %v844
  %v846 = vpop.f32.mrb[0].mxu0
  %847 = vdwg.mxu0
  %848 = vrot.lane.b32.xlu0 %v444, 120
  %v849 = vpop.permute.xlu0 %848
  %850 = vrot.lane.b32.xlu0 %v353, 88
  %v851 = vpop.permute.xlu0 %850
  %v852 = vsel %vm448, %v849, 0
  %v854 = vsel %vm448, %v851, 0
  %856 = vmatprep.subr.mxu0 0.0
  %857 = vmatpush1.xpose.msra.mxu0 %v854
  %858 = vmatprep.subr.mxu0 0.0
  %859 = vmatpush1.xpose.msra.mxu0 0.0
  %860 = vmatprep.subr.mxu0 0.0
  %861 = vmatpush1.xpose.msra.mxu0 0.0
  %862 = vmatprep.subr.mxu0 0.0
  %863 = vmatpush1.xpose.msra.mxu0 0.0
  %864 = vmatprep.subr.mxu0 0.0
  %865 = vmatpush1.xpose.msra.mxu0 0.0
  %866 = vmatprep.subr.mxu0 0.0
  %867 = vmatpush1.xpose.msra.mxu0 0.0
  %868 = vmatprep.subr.mxu0 0.0
  %869 = vmatpush1.xpose.msra.mxu0 0.0
  %870 = vmatprep.subr.mxu0 0.0
  %871 = vmatpush1.xpose.msra.mxu0 0.0
  %872 = vmatprep.subr.mxu0 0.0
  %873 = vmatpush1.xpose.msra.mxu0 0.0
  %874 = vmatprep.subr.mxu0 0.0
  %875 = vmatpush1.xpose.msra.mxu0 0.0
  %876 = vmatprep.subr.mxu0 0.0
  %877 = vmatpush1.xpose.msra.mxu0 0.0
  %878 = vmatprep.subr.mxu0 0.0
  %879 = vmatpush1.xpose.msra.mxu0 0.0
  %880 = vmatprep.subr.mxu0 0.0
  %881 = vmatpush1.xpose.msra.mxu0 0.0
  %882 = vmatprep.subr.mxu0 0.0
  %883 = vmatpush1.xpose.msra.mxu0 0.0
  %884 = vmatprep.subr.mxu0 0.0
  %885 = vmatpush1.xpose.msra.mxu0 0.0
  %886 = vmatprep.subr.mxu0 0.0
  %887 = vmatpush1.xpose.msra.mxu0 0.0
  %888 = vmatprep.subr.mxu0 0.0
  %889 = vmatpush1.xpose.msra.mxu0 0.0
  %890 = vmatprep.subr.mxu0 0.0
  %891 = vmatpush1.xpose.msra.mxu0 0.0
  %892 = vmatprep.subr.mxu0 0.0
  %893 = vmatpush1.xpose.msra.mxu0 0.0
  %894 = vmatprep.subr.mxu0 0.0
  %895 = vmatpush1.xpose.msra.mxu0 0.0
  %896 = vmatprep.subr.mxu0 0.0
  %897 = vmatpush1.xpose.msra.mxu0 0.0
  %898 = vmatprep.subr.mxu0 0.0
  %899 = vmatpush1.xpose.msra.mxu0 0.0
  %900 = vmatprep.subr.mxu0 0.0
  %901 = vmatpush1.xpose.msra.mxu0 0.0
  %902 = vmatprep.subr.mxu0 0.0
  %903 = vmatpush1.xpose.msra.mxu0 0.0
  %904 = vmatprep.subr.mxu0 0.0
  %905 = vmatpush1.xpose.msra.mxu0 0.0
  %906 = vmatprep.subr.mxu0 0.0
  %907 = vmatpush1.xpose.msra.mxu0 0.0
  %908 = vmatprep.subr.mxu0 0.0
  %909 = vmatpush1.xpose.msra.mxu0 0.0
  %910 = vmatprep.subr.mxu0 0.0
  %911 = vmatpush1.xpose.msra.mxu0 0.0
  %912 = vmatprep.subr.mxu0 0.0
  %913 = vmatpush1.xpose.msra.mxu0 0.0
  %914 = vmatprep.subr.mxu0 0.0
  %915 = vmatpush1.xpose.msra.mxu0 0.0
  %916 = vmatprep.subr.mxu0 0.0
  %917 = vmatpush1.xpose.msra.mxu0 0.0
  %918 = vmatprep.subr.mxu0 0.0
  %919 = vmatpush1.xpose.msra.mxu0 0.0
  %920 = vmatprep.mubr.f32.mxu0 0.0
  %921 = vmatmul.mubr.f32.gmra.mrb[0].mxu0 %v852
  %v922 = vpop.f32.mrb[0].mxu0
  %v923 = vadd.f32 0.0, %v922
  %v924 = vpop.f32.mrb[0].mxu0
  %925 = vdwg.mxu0
  %v926 = vsel %vm448, %v845, -inf
  %927 = vmax.xlane.f32.xlu0 %v926
  %v928 = vpop.xlane.xlu0 %927
  %v929 = vsel %vm448, %v923, -inf
  %930 = vmax.xlane.f32.xlu0 %v929
  %v931 = vpop.xlane.xlu0 %930
  %v932 = vsub.f32 %v845, %v928
  %v933 = vsub.f32 %v923, %v931
  %v934 = vmul.f32 %v932, 1.442695
  %v935 = vpow.pop %v934
  %v936 = vmul.f32 %v933, 1.442695
  %v937 = vpow.pop %v936
  %v938 = vsel %vm448, %v935, 0.0
  %939 = vadd.xlane.f32.xlu0 %v938
  %v940 = vpop.xlane.xlu0 %939
  %v941 = vsel %vm448, %v937, 0.0
  %942 = vadd.xlane.f32.xlu0 %v941
  %v943 = vpop.xlane.xlu0 %942
  %v944 = vrcp.pop %v940
  %v945 = vrcp.pop %v943
  %v946 = vmul.f32 %v935, %v944
  %v947 = vmul.f32 %v937, %v945
  %949 = vrot.lane.b32.xlu0 %v435, 120
  %v950 = vpop.permute.xlu0 %949
  %v953 = vsel %vm448, %v946, 0
  %955 = vmatprep.subr.mxu0 0.0
  %956 = vmatpush1.msra.mxu0 %v950
  %957 = vmatprep.subr.mxu0 0.0
  %958 = vmatpush1.msra.mxu0 0.0
  %959 = vmatprep.subr.mxu0 0.0
  %960 = vmatpush1.msra.mxu0 0.0
  %961 = vmatprep.subr.mxu0 0.0
  %962 = vmatpush1.msra.mxu0 0.0
  %963 = vmatprep.subr.mxu0 0.0
  %964 = vmatpush1.msra.mxu0 0.0
  %965 = vmatprep.subr.mxu0 0.0
  %966 = vmatpush1.msra.mxu0 0.0
  %967 = vmatprep.subr.mxu0 0.0
  %968 = vmatpush1.msra.mxu0 0.0
  %969 = vmatprep.subr.mxu0 0.0
  %970 = vmatpush1.msra.mxu0 0.0
  %971 = vmatprep.subr.mxu0 0.0
  %972 = vmatpush1.msra.mxu0 0.0
  %973 = vmatprep.subr.mxu0 0.0
  %974 = vmatpush1.msra.mxu0 0.0
  %975 = vmatprep.subr.mxu0 0.0
  %976 = vmatpush1.msra.mxu0 0.0
  %977 = vmatprep.subr.mxu0 0.0
  %978 = vmatpush1.msra.mxu0 0.0
  %979 = vmatprep.subr.mxu0 0.0
  %980 = vmatpush1.msra.mxu0 0.0
  %981 = vmatprep.subr.mxu0 0.0
  %982 = vmatpush1.msra.mxu0 0.0
  %983 = vmatprep.subr.mxu0 0.0
  %984 = vmatpush1.msra.mxu0 0.0
  %985 = vmatprep.subr.mxu0 0.0
  %986 = vmatpush1.msra.mxu0 0.0
  %987 = vmatprep.subr.mxu0 0.0
  %988 = vmatpush1.msra.mxu0 0.0
  %989 = vmatprep.subr.mxu0 0.0
  %990 = vmatpush1.msra.mxu0 0.0
  %991 = vmatprep.subr.mxu0 0.0
  %992 = vmatpush1.msra.mxu0 0.0
  %993 = vmatprep.subr.mxu0 0.0
  %994 = vmatpush1.msra.mxu0 0.0
  %995 = vmatprep.subr.mxu0 0.0
  %996 = vmatpush1.msra.mxu0 0.0
  %997 = vmatprep.subr.mxu0 0.0
  %998 = vmatpush1.msra.mxu0 0.0
  %999 = vmatprep.subr.mxu0 0.0
  %1000 = vmatpush1.msra.mxu0 0.0
  %1001 = vmatprep.subr.mxu0 0.0
  %1002 = vmatpush1.msra.mxu0 0.0
  %1003 = vmatprep.subr.mxu0 0.0
  %1004 = vmatpush1.msra.mxu0 0.0
  %1005 = vmatprep.subr.mxu0 0.0
  %1006 = vmatpush1.msra.mxu0 0.0
  %1007 = vmatprep.subr.mxu0 0.0
  %1008 = vmatpush1.msra.mxu0 0.0
  %1009 = vmatprep.subr.mxu0 0.0
  %1010 = vmatpush1.msra.mxu0 0.0
  %1011 = vmatprep.subr.mxu0 0.0
  %1012 = vmatpush1.msra.mxu0 0.0
  %1013 = vmatprep.subr.mxu0 0.0
  %1014 = vmatpush1.msra.mxu0 0.0
  %1015 = vmatprep.subr.mxu0 0.0
  %1016 = vmatpush1.msra.mxu0 0.0
  %1017 = vmatprep.subr.mxu0 0.0
  %1018 = vmatpush1.msra.mxu0 0.0
  %1019 = vmatprep.mubr.f32.mxu0 0.0
  %1020 = vmatmul.mubr.f32.gmra.mrb[0].mxu0 %v953
  %v1021 = vpop.f32.mrb[0].mxu0
  %v1022 = vadd.f32 0.0, %v1021
  %v1023 = vpop.f32.mrb[0].mxu0
  %1024 = vdwg.mxu0
  %1026 = vrot.lane.b32.xlu0 %v440, 120
  %v1027 = vpop.permute.xlu0 %1026
  %v1030 = vsel %vm448, %v947, 0
  %1032 = vmatprep.subr.mxu0 0.0
  %1033 = vmatpush1.msra.mxu0 %v1027
  %1034 = vmatprep.subr.mxu0 0.0
  %1035 = vmatpush1.msra.mxu0 0.0
  %1036 = vmatprep.subr.mxu0 0.0
  %1037 = vmatpush1.msra.mxu0 0.0
  %1038 = vmatprep.subr.mxu0 0.0
  %1039 = vmatpush1.msra.mxu0 0.0
  %1040 = vmatprep.subr.mxu0 0.0
  %1041 = vmatpush1.msra.mxu0 0.0
  %1042 = vmatprep.subr.mxu0 0.0
  %1043 = vmatpush1.msra.mxu0 0.0
  %1044 = vmatprep.subr.mxu0 0.0
  %1045 = vmatpush1.msra.mxu0 0.0
  %1046 = vmatprep.subr.mxu0 0.0
  %1047 = vmatpush1.msra.mxu0 0.0
  %1048 = vmatprep.subr.mxu0 0.0
  %1049 = vmatpush1.msra.mxu0 0.0
  %1050 = vmatprep.subr.mxu0 0.0
  %1051 = vmatpush1.msra.mxu0 0.0
  %1052 = vmatprep.subr.mxu0 0.0
  %1053 = vmatpush1.msra.mxu0 0.0
  %1054 = vmatprep.subr.mxu0 0.0
  %1055 = vmatpush1.msra.mxu0 0.0
  %1056 = vmatprep.subr.mxu0 0.0
  %1057 = vmatpush1.msra.mxu0 0.0
  %1058 = vmatprep.subr.mxu0 0.0
  %1059 = vmatpush1.msra.mxu0 0.0
  %1060 = vmatprep.subr.mxu0 0.0
  %1061 = vmatpush1.msra.mxu0 0.0
  %1062 = vmatprep.subr.mxu0 0.0
  %1063 = vmatpush1.msra.mxu0 0.0
  %1064 = vmatprep.subr.mxu0 0.0
  %1065 = vmatpush1.msra.mxu0 0.0
  %1066 = vmatprep.subr.mxu0 0.0
  %1067 = vmatpush1.msra.mxu0 0.0
  %1068 = vmatprep.subr.mxu0 0.0
  %1069 = vmatpush1.msra.mxu0 0.0
  %1070 = vmatprep.subr.mxu0 0.0
  %1071 = vmatpush1.msra.mxu0 0.0
  %1072 = vmatprep.subr.mxu0 0.0
  %1073 = vmatpush1.msra.mxu0 0.0
  %1074 = vmatprep.subr.mxu0 0.0
  %1075 = vmatpush1.msra.mxu0 0.0
  %1076 = vmatprep.subr.mxu0 0.0
  %1077 = vmatpush1.msra.mxu0 0.0
  %1078 = vmatprep.subr.mxu0 0.0
  %1079 = vmatpush1.msra.mxu0 0.0
  %1080 = vmatprep.subr.mxu0 0.0
  %1081 = vmatpush1.msra.mxu0 0.0
  %1082 = vmatprep.subr.mxu0 0.0
  %1083 = vmatpush1.msra.mxu0 0.0
  %1084 = vmatprep.subr.mxu0 0.0
  %1085 = vmatpush1.msra.mxu0 0.0
  %1086 = vmatprep.subr.mxu0 0.0
  %1087 = vmatpush1.msra.mxu0 0.0
  %1088 = vmatprep.subr.mxu0 0.0
  %1089 = vmatpush1.msra.mxu0 0.0
  %1090 = vmatprep.subr.mxu0 0.0
  %1091 = vmatpush1.msra.mxu0 0.0
  %1092 = vmatprep.subr.mxu0 0.0
  %1093 = vmatpush1.msra.mxu0 0.0
  %1094 = vmatprep.subr.mxu0 0.0
  %1095 = vmatpush1.msra.mxu0 0.0
  %1096 = vmatprep.mubr.f32.mxu0 0.0
  %1097 = vmatmul.mubr.f32.gmra.mrb[0].mxu0 %v1030
  %v1098 = vpop.f32.mrb[0].mxu0
  %v1099 = vadd.f32 0.0, %v1098
  %v1100 = vpop.f32.mrb[0].mxu0
  %1101 = vdwg.mxu0
  %1102 = vrot.lane.b32.xlu0 %v443, 112
  %v1103 = vpop.permute.xlu0 %1102
  %1104 = vrot.lane.b32.xlu0 %v348, 80
  %v1105 = vpop.permute.xlu0 %1104
  %v1106 = vsel %vm448, %v1103, 0
  %v1108 = vsel %vm448, %v1105, 0
  %1110 = vmatprep.subr.mxu0 0.0
  %1111 = vmatpush1.xpose.msra.mxu0 %v1108
  %1112 = vmatprep.subr.mxu0 0.0
  %1113 = vmatpush1.xpose.msra.mxu0 0.0
  %1114 = vmatprep.subr.mxu0 0.0
  %1115 = vmatpush1.xpose.msra.mxu0 0.0
  %1116 = vmatprep.subr.mxu0 0.0
  %1117 = vmatpush1.xpose.msra.mxu0 0.0
  %1118 = vmatprep.subr.mxu0 0.0
  %1119 = vmatpush1.xpose.msra.mxu0 0.0
  %1120 = vmatprep.subr.mxu0 0.0
  %1121 = vmatpush1.xpose.msra.mxu0 0.0
  %1122 = vmatprep.subr.mxu0 0.0
  %1123 = vmatpush1.xpose.msra.mxu0 0.0
  %1124 = vmatprep.subr.mxu0 0.0
  %1125 = vmatpush1.xpose.msra.mxu0 0.0
  %1126 = vmatprep.subr.mxu0 0.0
  %1127 = vmatpush1.xpose.msra.mxu0 0.0
  %1128 = vmatprep.subr.mxu0 0.0
  %1129 = vmatpush1.xpose.msra.mxu0 0.0
  %1130 = vmatprep.subr.mxu0 0.0
  %1131 = vmatpush1.xpose.msra.mxu0 0.0
  %1132 = vmatprep.subr.mxu0 0.0
  %1133 = vmatpush1.xpose.msra.mxu0 0.0
  %1134 = vmatprep.subr.mxu0 0.0
  %1135 = vmatpush1.xpose.msra.mxu0 0.0
  %1136 = vmatprep.subr.mxu0 0.0
  %1137 = vmatpush1.xpose.msra.mxu0 0.0
  %1138 = vmatprep.subr.mxu0 0.0
  %1139 = vmatpush1.xpose.msra.mxu0 0.0
  %1140 = vmatprep.subr.mxu0 0.0
  %1141 = vmatpush1.xpose.msra.mxu0 0.0
  %1142 = vmatprep.subr.mxu0 0.0
  %1143 = vmatpush1.xpose.msra.mxu0 0.0
  %1144 = vmatprep.subr.mxu0 0.0
  %1145 = vmatpush1.xpose.msra.mxu0 0.0
  %1146 = vmatprep.subr.mxu0 0.0
  %1147 = vmatpush1.xpose.msra.mxu0 0.0
  %1148 = vmatprep.subr.mxu0 0.0
  %1149 = vmatpush1.xpose.msra.mxu0 0.0
  %1150 = vmatprep.subr.mxu0 0.0
  %1151 = vmatpush1.xpose.msra.mxu0 0.0
  %1152 = vmatprep.subr.mxu0 0.0
  %1153 = vmatpush1.xpose.msra.mxu0 0.0
  %1154 = vmatprep.subr.mxu0 0.0
  %1155 = vmatpush1.xpose.msra.mxu0 0.0
  %1156 = vmatprep.subr.mxu0 0.0
  %1157 = vmatpush1.xpose.msra.mxu0 0.0
  %1158 = vmatprep.subr.mxu0 0.0
  %1159 = vmatpush1.xpose.msra.mxu0 0.0
  %1160 = vmatprep.subr.mxu0 0.0
  %1161 = vmatpush1.xpose.msra.mxu0 0.0
  %1162 = vmatprep.subr.mxu0 0.0
  %1163 = vmatpush1.xpose.msra.mxu0 0.0
  %1164 = vmatprep.subr.mxu0 0.0
  %1165 = vmatpush1.xpose.msra.mxu0 0.0
  %1166 = vmatprep.subr.mxu0 0.0
  %1167 = vmatpush1.xpose.msra.mxu0 0.0
  %1168 = vmatprep.subr.mxu0 0.0
  %1169 = vmatpush1.xpose.msra.mxu0 0.0
  %1170 = vmatprep.subr.mxu0 0.0
  %1171 = vmatpush1.xpose.msra.mxu0 0.0
  %1172 = vmatprep.subr.mxu0 0.0
  %1173 = vmatpush1.xpose.msra.mxu0 0.0
  %1174 = vmatprep.mubr.f32.mxu0 0.0
  %1175 = vmatmul.mubr.f32.gmra.mrb[0].mxu0 %v1106
  %v1176 = vpop.f32.mrb[0].mxu0
  %v1177 = vadd.f32 0.0, %v1176
  %v1178 = vpop.f32.mrb[0].mxu0
  %1179 = vdwg.mxu0
  %1180 = vrot.lane.b32.xlu0 %v444, 112
  %v1181 = vpop.permute.xlu0 %1180
  %1182 = vrot.lane.b32.xlu0 %v353, 80
  %v1183 = vpop.permute.xlu0 %1182
  %v1184 = vsel %vm448, %v1181, 0
  %v1186 = vsel %vm448, %v1183, 0
  %1188 = vmatprep.subr.mxu0 0.0
  %1189 = vmatpush1.xpose.msra.mxu0 %v1186
  %1190 = vmatprep.subr.mxu0 0.0
  %1191 = vmatpush1.xpose.msra.mxu0 0.0
  %1192 = vmatprep.subr.mxu0 0.0
  %1193 = vmatpush1.xpose.msra.mxu0 0.0
  %1194 = vmatprep.subr.mxu0 0.0
  %1195 = vmatpush1.xpose.msra.mxu0 0.0
  %1196 = vmatprep.subr.mxu0 0.0
  %1197 = vmatpush1.xpose.msra.mxu0 0.0
  %1198 = vmatprep.subr.mxu0 0.0
  %1199 = vmatpush1.xpose.msra.mxu0 0.0
  %1200 = vmatprep.subr.mxu0 0.0
  %1201 = vmatpush1.xpose.msra.mxu0 0.0
  %1202 = vmatprep.subr.mxu0 0.0
  %1203 = vmatpush1.xpose.msra.mxu0 0.0
  %1204 = vmatprep.subr.mxu0 0.0
  %1205 = vmatpush1.xpose.msra.mxu0 0.0
  %1206 = vmatprep.subr.mxu0 0.0
  %1207 = vmatpush1.xpose.msra.mxu0 0.0
  %1208 = vmatprep.subr.mxu0 0.0
  %1209 = vmatpush1.xpose.msra.mxu0 0.0
  %1210 = vmatprep.subr.mxu0 0.0
  %1211 = vmatpush1.xpose.msra.mxu0 0.0
  %1212 = vmatprep.subr.mxu0 0.0
  %1213 = vmatpush1.xpose.msra.mxu0 0.0
  %1214 = vmatprep.subr.mxu0 0.0
  %1215 = vmatpush1.xpose.msra.mxu0 0.0
  %1216 = vmatprep.subr.mxu0 0.0
  %1217 = vmatpush1.xpose.msra.mxu0 0.0
  %1218 = vmatprep.subr.mxu0 0.0
  %1219 = vmatpush1.xpose.msra.mxu0 0.0
  %1220 = vmatprep.subr.mxu0 0.0
  %1221 = vmatpush1.xpose.msra.mxu0 0.0
  %1222 = vmatprep.subr.mxu0 0.0
  %1223 = vmatpush1.xpose.msra.mxu0 0.0
  %1224 = vmatprep.subr.mxu0 0.0
  %1225 = vmatpush1.xpose.msra.mxu0 0.0
  %1226 = vmatprep.subr.mxu0 0.0
  %1227 = vmatpush1.xpose.msra.mxu0 0.0
  %1228 = vmatprep.subr.mxu0 0.0
  %1229 = vmatpush1.xpose.msra.mxu0 0.0
  %1230 = vmatprep.subr.mxu0 0.0
  %1231 = vmatpush1.xpose.msra.mxu0 0.0
  %1232 = vmatprep.subr.mxu0 0.0
  %1233 = vmatpush1.xpose.msra.mxu0 0.0
  %1234 = vmatprep.subr.mxu0 0.0
  %1235 = vmatpush1.xpose.msra.mxu0 0.0
  %1236 = vmatprep.subr.mxu0 0.0
  %1237 = vmatpush1.xpose.msra.mxu0 0.0
  %1238 = vmatprep.subr.mxu0 0.0
  %1239 = vmatpush1.xpose.msra.mxu0 0.0
  %1240 = vmatprep.subr.mxu0 0.0
  %1241 = vmatpush1.xpose.msra.mxu0 0.0
  %1242 = vmatprep.subr.mxu0 0.0
  %1243 = vmatpush1.xpose.msra.mxu0 0.0
  %1244 = vmatprep.subr.mxu0 0.0
  %1245 = vmatpush1.xpose.msra.mxu0 0.0
  %1246 = vmatprep.subr.mxu0 0.0
  %1247 = vmatpush1.xpose.msra.mxu0 0.0
  %1248 = vmatprep.subr.mxu0 0.0
  %1249 = vmatpush1.xpose.msra.mxu0 0.0
  %1250 = vmatprep.subr.mxu0 0.0
  %1251 = vmatpush1.xpose.msra.mxu0 0.0
  %1252 = vmatprep.mubr.f32.mxu0 0.0
  %1253 = vmatmul.mubr.f32.gmra.mrb[0].mxu0 %v1184
  %v1254 = vpop.f32.mrb[0].mxu0
  %v1255 = vadd.f32 0.0, %v1254
  %v1256 = vpop.f32.mrb[0].mxu0
  %1257 = vdwg.mxu0
  %v1258 = vsel %vm448, %v1177, -inf
  %1259 = vmax.xlane.f32.xlu0 %v1258
  %v1260 = vpop.xlane.xlu0 %1259
  %v1261 = vsel %vm448, %v1255, -inf
  %1262 = vmax.xlane.f32.xlu0 %v1261
  %v1263 = vpop.xlane.xlu0 %1262
  %v1264 = vsub.f32 %v1177, %v1260
  %v1265 = vsub.f32 %v1255, %v1263
  %v1266 = vmul.f32 %v1264, 1.442695
  %v1267 = vpow.pop %v1266
  %v1268 = vmul.f32 %v1265, 1.442695
  %v1269 = vpow.pop %v1268
  %v1270 = vsel %vm448, %v1267, 0.0
  %1271 = vadd.xlane.f32.xlu0 %v1270
  %v1272 = vpop.xlane.xlu0 %1271
  %v1273 = vsel %vm448, %v1269, 0.0
  %1274 = vadd.xlane.f32.xlu0 %v1273
  %v1275 = vpop.xlane.xlu0 %1274
  %v1276 = vrcp.pop %v1272
  %v1277 = vrcp.pop %v1275
  %v1278 = vmul.f32 %v1267, %v1276
  %v1279 = vmul.f32 %v1269, %v1277
  %1280 = vrot.lane.b32.xlu0 %v435, 112
  %v1281 = vpop.permute.xlu0 %1280
  %v1284 = vsel %vm448, %v1278, 0
  %1286 = vmatprep.subr.mxu0 0.0
  %1287 = vmatpush1.msra.mxu0 %v1281
  %1288 = vmatprep.subr.mxu0 0.0
  %1289 = vmatpush1.msra.mxu0 0.0
  %1290 = vmatprep.subr.mxu0 0.0
  %1291 = vmatpush1.msra.mxu0 0.0
  %1292 = vmatprep.subr.mxu0 0.0
  %1293 = vmatpush1.msra.mxu0 0.0
  %1294 = vmatprep.subr.mxu0 0.0
  %1295 = vmatpush1.msra.mxu0 0.0
  %1296 = vmatprep.subr.mxu0 0.0
  %1297 = vmatpush1.msra.mxu0 0.0
  %1298 = vmatprep.subr.mxu0 0.0
  %1299 = vmatpush1.msra.mxu0 0.0
  %1300 = vmatprep.subr.mxu0 0.0
  %1301 = vmatpush1.msra.mxu0 0.0
  %1302 = vmatprep.subr.mxu0 0.0
  %1303 = vmatpush1.msra.mxu0 0.0
  %1304 = vmatprep.subr.mxu0 0.0
  %1305 = vmatpush1.msra.mxu0 0.0
  %1306 = vmatprep.subr.mxu0 0.0
  %1307 = vmatpush1.msra.mxu0 0.0
  %1308 = vmatprep.subr.mxu0 0.0
  %1309 = vmatpush1.msra.mxu0 0.0
  %1310 = vmatprep.subr.mxu0 0.0
  %1311 = vmatpush1.msra.mxu0 0.0
  %1312 = vmatprep.subr.mxu0 0.0
  %1313 = vmatpush1.msra.mxu0 0.0
  %1314 = vmatprep.subr.mxu0 0.0
  %1315 = vmatpush1.msra.mxu0 0.0
  %1316 = vmatprep.subr.mxu0 0.0
  %1317 = vmatpush1.msra.mxu0 0.0
  %1318 = vmatprep.subr.mxu0 0.0
  %1319 = vmatpush1.msra.mxu0 0.0
  %1320 = vmatprep.subr.mxu0 0.0
  %1321 = vmatpush1.msra.mxu0 0.0
  %1322 = vmatprep.subr.mxu0 0.0
  %1323 = vmatpush1.msra.mxu0 0.0
  %1324 = vmatprep.subr.mxu0 0.0
  %1325 = vmatpush1.msra.mxu0 0.0
  %1326 = vmatprep.subr.mxu0 0.0
  %1327 = vmatpush1.msra.mxu0 0.0
  %1328 = vmatprep.subr.mxu0 0.0
  %1329 = vmatpush1.msra.mxu0 0.0
  %1330 = vmatprep.subr.mxu0 0.0
  %1331 = vmatpush1.msra.mxu0 0.0
  %1332 = vmatprep.subr.mxu0 0.0
  %1333 = vmatpush1.msra.mxu0 0.0
  %1334 = vmatprep.subr.mxu0 0.0
  %1335 = vmatpush1.msra.mxu0 0.0
  %1336 = vmatprep.subr.mxu0 0.0
  %1337 = vmatpush1.msra.mxu0 0.0
  %1338 = vmatprep.subr.mxu0 0.0
  %1339 = vmatpush1.msra.mxu0 0.0
  %1340 = vmatprep.subr.mxu0 0.0
  %1341 = vmatpush1.msra.mxu0 0.0
  %1342 = vmatprep.subr.mxu0 0.0
  %1343 = vmatpush1.msra.mxu0 0.0
  %1344 = vmatprep.subr.mxu0 0.0
  %1345 = vmatpush1.msra.mxu0 0.0
  %1346 = vmatprep.subr.mxu0 0.0
  %1347 = vmatpush1.msra.mxu0 0.0
  %1348 = vmatprep.subr.mxu0 0.0
  %1349 = vmatpush1.msra.mxu0 0.0
  %1350 = vmatprep.mubr.f32.mxu0 0.0
  %1351 = vmatmul.mubr.f32.gmra.mrb[0].mxu0 %v1284
  %v1352 = vpop.f32.mrb[0].mxu0
  %v1353 = vadd.f32 0.0, %v1352
  %v1354 = vpop.f32.mrb[0].mxu0
  %1355 = vdwg.mxu0
  %1356 = vrot.lane.b32.xlu0 %v440, 112
  %v1357 = vpop.permute.xlu0 %1356
  %v1360 = vsel %vm448, %v1279, 0
  %1362 = vmatprep.subr.mxu0 0.0
  %1363 = vmatpush1.msra.mxu0 %v1357
  %1364 = vmatprep.subr.mxu0 0.0
  %1365 = vmatpush1.msra.mxu0 0.0
  %1366 = vmatprep.subr.mxu0 0.0
  %1367 = vmatpush1.msra.mxu0 0.0
  %1368 = vmatprep.subr.mxu0 0.0
  %1369 = vmatpush1.msra.mxu0 0.0
  %1370 = vmatprep.subr.mxu0 0.0
  %1371 = vmatpush1.msra.mxu0 0.0
  %1372 = vmatprep.subr.mxu0 0.0
  %1373 = vmatpush1.msra.mxu0 0.0
  %1374 = vmatprep.subr.mxu0 0.0
  %1375 = vmatpush1.msra.mxu0 0.0
  %1376 = vmatprep.subr.mxu0 0.0
  %1377 = vmatpush1.msra.mxu0 0.0
  %1378 = vmatprep.subr.mxu0 0.0
  %1379 = vmatpush1.msra.mxu0 0.0
  %1380 = vmatprep.subr.mxu0 0.0
  %1381 = vmatpush1.msra.mxu0 0.0
  %1382 = vmatprep.subr.mxu0 0.0
  %1383 = vmatpush1.msra.mxu0 0.0
  %1384 = vmatprep.subr.mxu0 0.0
  %1385 = vmatpush1.msra.mxu0 0.0
  %1386 = vmatprep.subr.mxu0 0.0
  %1387 = vmatpush1.msra.mxu0 0.0
  %1388 = vmatprep.subr.mxu0 0.0
  %1389 = vmatpush1.msra.mxu0 0.0
  %1390 = vmatprep.subr.mxu0 0.0
  %1391 = vmatpush1.msra.mxu0 0.0
  %1392 = vmatprep.subr.mxu0 0.0
  %1393 = vmatpush1.msra.mxu0 0.0
  %1394 = vmatprep.subr.mxu0 0.0
  %1395 = vmatpush1.msra.mxu0 0.0
  %1396 = vmatprep.subr.mxu0 0.0
  %1397 = vmatpush1.msra.mxu0 0.0
  %1398 = vmatprep.subr.mxu0 0.0
  %1399 = vmatpush1.msra.mxu0 0.0
  %1400 = vmatprep.subr.mxu0 0.0
  %1401 = vmatpush1.msra.mxu0 0.0
  %1402 = vmatprep.subr.mxu0 0.0
  %1403 = vmatpush1.msra.mxu0 0.0
  %1404 = vmatprep.subr.mxu0 0.0
  %1405 = vmatpush1.msra.mxu0 0.0
  %1406 = vmatprep.subr.mxu0 0.0
  %1407 = vmatpush1.msra.mxu0 0.0
  %1408 = vmatprep.subr.mxu0 0.0
  %1409 = vmatpush1.msra.mxu0 0.0
  %1410 = vmatprep.subr.mxu0 0.0
  %1411 = vmatpush1.msra.mxu0 0.0
  %1412 = vmatprep.subr.mxu0 0.0
  %1413 = vmatpush1.msra.mxu0 0.0
  %1414 = vmatprep.subr.mxu0 0.0
  %1415 = vmatpush1.msra.mxu0 0.0
  %1416 = vmatprep.subr.mxu0 0.0
  %1417 = vmatpush1.msra.mxu0 0.0
  %1418 = vmatprep.subr.mxu0 0.0
  %1419 = vmatpush1.msra.mxu0 0.0
  %1420 = vmatprep.subr.mxu0 0.0
  %1421 = vmatpush1.msra.mxu0 0.0
  %1422 = vmatprep.subr.mxu0 0.0
  %1423 = vmatpush1.msra.mxu0 0.0
  %1424 = vmatprep.subr.mxu0 0.0
  %1425 = vmatpush1.msra.mxu0 0.0
  %1426 = vmatprep.mubr.f32.mxu0 0.0
  %1427 = vmatmul.mubr.f32.gmra.mrb[0].mxu0 %v1360
  %v1428 = vpop.f32.mrb[0].mxu0
  %v1429 = vadd.f32 0.0, %v1428
  %v1430 = vpop.f32.mrb[0].mxu0
  %1431 = vdwg.mxu0
  %1432 = vrot.lane.b32.xlu0 %v443, 104
  %v1433 = vpop.permute.xlu0 %1432
  %1434 = vrot.lane.b32.xlu0 %v348, 72
  %v1435 = vpop.permute.xlu0 %1434
  %v1436 = vsel %vm448, %v1433, 0
  %v1438 = vsel %vm448, %v1435, 0
  %1440 = vmatprep.subr.mxu0 0.0
  %1441 = vmatpush1.xpose.msra.mxu0 %v1438
  %1442 = vmatprep.subr.mxu0 0.0
  %1443 = vmatpush1.xpose.msra.mxu0 0.0
  %1444 = vmatprep.subr.mxu0 0.0
  %1445 = vmatpush1.xpose.msra.mxu0 0.0
  %1446 = vmatprep.subr.mxu0 0.0
  %1447 = vmatpush1.xpose.msra.mxu0 0.0
  %1448 = vmatprep.subr.mxu0 0.0
  %1449 = vmatpush1.xpose.msra.mxu0 0.0
  %1450 = vmatprep.subr.mxu0 0.0
  %1451 = vmatpush1.xpose.msra.mxu0 0.0
  %1452 = vmatprep.subr.mxu0 0.0
  %1453 = vmatpush1.xpose.msra.mxu0 0.0
  %1454 = vmatprep.subr.mxu0 0.0
  %1455 = vmatpush1.xpose.msra.mxu0 0.0
  %1456 = vmatprep.subr.mxu0 0.0
  %1457 = vmatpush1.xpose.msra.mxu0 0.0
  %1458 = vmatprep.subr.mxu0 0.0
  %1459 = vmatpush1.xpose.msra.mxu0 0.0
  %1460 = vmatprep.subr.mxu0 0.0
  %1461 = vmatpush1.xpose.msra.mxu0 0.0
  %1462 = vmatprep.subr.mxu0 0.0
  %1463 = vmatpush1.xpose.msra.mxu0 0.0
  %1464 = vmatprep.subr.mxu0 0.0
  %1465 = vmatpush1.xpose.msra.mxu0 0.0
  %1466 = vmatprep.subr.mxu0 0.0
  %1467 = vmatpush1.xpose.msra.mxu0 0.0
  %1468 = vmatprep.subr.mxu0 0.0
  %1469 = vmatpush1.xpose.msra.mxu0 0.0
  %1470 = vmatprep.subr.mxu0 0.0
  %1471 = vmatpush1.xpose.msra.mxu0 0.0
  %1472 = vmatprep.subr.mxu0 0.0
  %1473 = vmatpush1.xpose.msra.mxu0 0.0
  %1474 = vmatprep.subr.mxu0 0.0
  %1475 = vmatpush1.xpose.msra.mxu0 0.0
  %1476 = vmatprep.subr.mxu0 0.0
  %1477 = vmatpush1.xpose.msra.mxu0 0.0
  %1478 = vmatprep.subr.mxu0 0.0
  %1479 = vmatpush1.xpose.msra.mxu0 0.0
  %1480 = vmatprep.subr.mxu0 0.0
  %1481 = vmatpush1.xpose.msra.mxu0 0.0
  %1482 = vmatprep.subr.mxu0 0.0
  %1483 = vmatpush1.xpose.msra.mxu0 0.0
  %1484 = vmatprep.subr.mxu0 0.0
  %1485 = vmatpush1.xpose.msra.mxu0 0.0
  %1486 = vmatprep.subr.mxu0 0.0
  %1487 = vmatpush1.xpose.msra.mxu0 0.0
  %1488 = vmatprep.subr.mxu0 0.0
  %1489 = vmatpush1.xpose.msra.mxu0 0.0
  %1490 = vmatprep.subr.mxu0 0.0
  %1491 = vmatpush1.xpose.msra.mxu0 0.0
  %1492 = vmatprep.subr.mxu0 0.0
  %1493 = vmatpush1.xpose.msra.mxu0 0.0
  %1494 = vmatprep.subr.mxu0 0.0
  %1495 = vmatpush1.xpose.msra.mxu0 0.0
  %1496 = vmatprep.subr.mxu0 0.0
  %1497 = vmatpush1.xpose.msra.mxu0 0.0
  %1498 = vmatprep.subr.mxu0 0.0
  %1499 = vmatpush1.xpose.msra.mxu0 0.0
  %1500 = vmatprep.subr.mxu0 0.0
  %1501 = vmatpush1.xpose.msra.mxu0 0.0
  %1502 = vmatprep.subr.mxu0 0.0
  %1503 = vmatpush1.xpose.msra.mxu0 0.0
  %1504 = vmatprep.mubr.f32.mxu0 0.0
  %1505 = vmatmul.mubr.f32.gmra.mrb[0].mxu0 %v1436
  %v1506 = vpop.f32.mrb[0].mxu0
  %v1507 = vadd.f32 0.0, %v1506
  %v1508 = vpop.f32.mrb[0].mxu0
  %1509 = vdwg.mxu0
  %1510 = vrot.lane.b32.xlu0 %v444, 104
  %v1511 = vpop.permute.xlu0 %1510
  %1512 = vrot.lane.b32.xlu0 %v353, 72
  %v1513 = vpop.permute.xlu0 %1512
  %v1514 = vsel %vm448, %v1511, 0
  %v1516 = vsel %vm448, %v1513, 0
  %1518 = vmatprep.subr.mxu0 0.0
  %1519 = vmatpush1.xpose.msra.mxu0 %v1516
  %1520 = vmatprep.subr.mxu0 0.0
  %1521 = vmatpush1.xpose.msra.mxu0 0.0
  %1522 = vmatprep.subr.mxu0 0.0
  %1523 = vmatpush1.xpose.msra.mxu0 0.0
  %1524 = vmatprep.subr.mxu0 0.0
  %1525 = vmatpush1.xpose.msra.mxu0 0.0
  %1526 = vmatprep.subr.mxu0 0.0
  %1527 = vmatpush1.xpose.msra.mxu0 0.0
  %1528 = vmatprep.subr.mxu0 0.0
  %1529 = vmatpush1.xpose.msra.mxu0 0.0
  %1530 = vmatprep.subr.mxu0 0.0
  %1531 = vmatpush1.xpose.msra.mxu0 0.0
  %1532 = vmatprep.subr.mxu0 0.0
  %1533 = vmatpush1.xpose.msra.mxu0 0.0
  %1534 = vmatprep.subr.mxu0 0.0
  %1535 = vmatpush1.xpose.msra.mxu0 0.0
  %1536 = vmatprep.subr.mxu0 0.0
  %1537 = vmatpush1.xpose.msra.mxu0 0.0
  %1538 = vmatprep.subr.mxu0 0.0
  %1539 = vmatpush1.xpose.msra.mxu0 0.0
  %1540 = vmatprep.subr.mxu0 0.0
  %1541 = vmatpush1.xpose.msra.mxu0 0.0
  %1542 = vmatprep.subr.mxu0 0.0
  %1543 = vmatpush1.xpose.msra.mxu0 0.0
  %1544 = vmatprep.subr.mxu0 0.0
  %1545 = vmatpush1.xpose.msra.mxu0 0.0
  %1546 = vmatprep.subr.mxu0 0.0
  %1547 = vmatpush1.xpose.msra.mxu0 0.0
  %1548 = vmatprep.subr.mxu0 0.0
  %1549 = vmatpush1.xpose.msra.mxu0 0.0
  %1550 = vmatprep.subr.mxu0 0.0
  %1551 = vmatpush1.xpose.msra.mxu0 0.0
  %1552 = vmatprep.subr.mxu0 0.0
  %1553 = vmatpush1.xpose.msra.mxu0 0.0
  %1554 = vmatprep.subr.mxu0 0.0
  %1555 = vmatpush1.xpose.msra.mxu0 0.0
  %1556 = vmatprep.subr.mxu0 0.0
  %1557 = vmatpush1.xpose.msra.mxu0 0.0
  %1558 = vmatprep.subr.mxu0 0.0
  %1559 = vmatpush1.xpose.msra.mxu0 0.0
  %1560 = vmatprep.subr.mxu0 0.0
  %1561 = vmatpush1.xpose.msra.mxu0 0.0
  %1562 = vmatprep.subr.mxu0 0.0
  %1563 = vmatpush1.xpose.msra.mxu0 0.0
  %1564 = vmatprep.subr.mxu0 0.0
  %1565 = vmatpush1.xpose.msra.mxu0 0.0
  %1566 = vmatprep.subr.mxu0 0.0
  %1567 = vmatpush1.xpose.msra.mxu0 0.0
  %1568 = vmatprep.subr.mxu0 0.0
  %1569 = vmatpush1.xpose.msra.mxu0 0.0
  %1570 = vmatprep.subr.mxu0 0.0
  %1571 = vmatpush1.xpose.msra.mxu0 0.0
  %1572 = vmatprep.subr.mxu0 0.0
  %1573 = vmatpush1.xpose.msra.mxu0 0.0
  %1574 = vmatprep.subr.mxu0 0.0
  %1575 = vmatpush1.xpose.msra.mxu0 0.0
  %1576 = vmatprep.subr.mxu0 0.0
  %1577 = vmatpush1.xpose.msra.mxu0 0.0
  %1578 = vmatprep.subr.mxu0 0.0
  %1579 = vmatpush1.xpose.msra.mxu0 0.0
  %1580 = vmatprep.subr.mxu0 0.0
  %1581 = vmatpush1.xpose.msra.mxu0 0.0
  %1582 = vmatprep.mubr.f32.mxu0 0.0
  %1583 = vmatmul.mubr.f32.gmra.mrb[0].mxu0 %v1514
  %v1584 = vpop.f32.mrb[0].mxu0
  %v1585 = vadd.f32 0.0, %v1584
  %v1586 = vpop.f32.mrb[0].mxu0
  %1587 = vdwg.mxu0
  %v1588 = vsel %vm448, %v1507, -inf
  %1589 = vmax.xlane.f32.xlu0 %v1588
  %v1590 = vpop.xlane.xlu0 %1589
  %v1591 = vsel %vm448, %v1585, -inf
  %1592 = vmax.xlane.f32.xlu0 %v1591
  %v1593 = vpop.xlane.xlu0 %1592
  %v1594 = vsub.f32 %v1507, %v1590
  %v1595 = vsub.f32 %v1585, %v1593
  %v1596 = vmul.f32 %v1594, 1.442695
  %v1597 = vpow.pop %v1596
  %v1598 = vmul.f32 %v1595, 1.442695
  %v1599 = vpow.pop %v1598
  %v1600 = vsel %vm448, %v1597, 0.0
  %1601 = vadd.xlane.f32.xlu0 %v1600
  %v1602 = vpop.xlane.xlu0 %1601
  %v1603 = vsel %vm448, %v1599, 0.0
  %1604 = vadd.xlane.f32.xlu0 %v1603
  %v1605 = vpop.xlane.xlu0 %1604
  %v1606 = vrcp.pop %v1602
  %v1607 = vrcp.pop %v1605
  %v1608 = vmul.f32 %v1597, %v1606
  %v1609 = vmul.f32 %v1599, %v1607
  %1610 = vrot.lane.b32.xlu0 %v435, 104
  %v1611 = vpop.permute.xlu0 %1610
  %v1614 = vsel %vm448, %v1608, 0
  %1616 = vmatprep.subr.mxu0 0.0
  %1617 = vmatpush1.msra.mxu0 %v1611
  %1618 = vmatprep.subr.mxu0 0.0
  %1619 = vmatpush1.msra.mxu0 0.0
  %1620 = vmatprep.subr.mxu0 0.0
  %1621 = vmatpush1.msra.mxu0 0.0
  %1622 = vmatprep.subr.mxu0 0.0
  %1623 = vmatpush1.msra.mxu0 0.0
  %1624 = vmatprep.subr.mxu0 0.0
  %1625 = vmatpush1.msra.mxu0 0.0
  %1626 = vmatprep.subr.mxu0 0.0
  %1627 = vmatpush1.msra.mxu0 0.0
  %1628 = vmatprep.subr.mxu0 0.0
  %1629 = vmatpush1.msra.mxu0 0.0
  %1630 = vmatprep.subr.mxu0 0.0
  %1631 = vmatpush1.msra.mxu0 0.0
  %1632 = vmatprep.subr.mxu0 0.0
  %1633 = vmatpush1.msra.mxu0 0.0
  %1634 = vmatprep.subr.mxu0 0.0
  %1635 = vmatpush1.msra.mxu0 0.0
  %1636 = vmatprep.subr.mxu0 0.0
  %1637 = vmatpush1.msra.mxu0 0.0
  %1638 = vmatprep.subr.mxu0 0.0
  %1639 = vmatpush1.msra.mxu0 0.0
  %1640 = vmatprep.subr.mxu0 0.0
  %1641 = vmatpush1.msra.mxu0 0.0
  %1642 = vmatprep.subr.mxu0 0.0
  %1643 = vmatpush1.msra.mxu0 0.0
  %1644 = vmatprep.subr.mxu0 0.0
  %1645 = vmatpush1.msra.mxu0 0.0
  %1646 = vmatprep.subr.mxu0 0.0
  %1647 = vmatpush1.msra.mxu0 0.0
  %1648 = vmatprep.subr.mxu0 0.0
  %1649 = vmatpush1.msra.mxu0 0.0
  %1650 = vmatprep.subr.mxu0 0.0
  %1651 = vmatpush1.msra.mxu0 0.0
  %1652 = vmatprep.subr.mxu0 0.0
  %1653 = vmatpush1.msra.mxu0 0.0
  %1654 = vmatprep.subr.mxu0 0.0
  %1655 = vmatpush1.msra.mxu0 0.0
  %1656 = vmatprep.subr.mxu0 0.0
  %1657 = vmatpush1.msra.mxu0 0.0
  %1658 = vmatprep.subr.mxu0 0.0
  %1659 = vmatpush1.msra.mxu0 0.0
  %1660 = vmatprep.subr.mxu0 0.0
  %1661 = vmatpush1.msra.mxu0 0.0
  %1662 = vmatprep.subr.mxu0 0.0
  %1663 = vmatpush1.msra.mxu0 0.0
  %1664 = vmatprep.subr.mxu0 0.0
  %1665 = vmatpush1.msra.mxu0 0.0
  %1666 = vmatprep.subr.mxu0 0.0
  %1667 = vmatpush1.msra.mxu0 0.0
  %1668 = vmatprep.subr.mxu0 0.0
  %1669 = vmatpush1.msra.mxu0 0.0
  %1670 = vmatprep.subr.mxu0 0.0
  %1671 = vmatpush1.msra.mxu0 0.0
  %1672 = vmatprep.subr.mxu0 0.0
  %1673 = vmatpush1.msra.mxu0 0.0
  %1674 = vmatprep.subr.mxu0 0.0
  %1675 = vmatpush1.msra.mxu0 0.0
  %1676 = vmatprep.subr.mxu0 0.0
  %1677 = vmatpush1.msra.mxu0 0.0
  %1678 = vmatprep.subr.mxu0 0.0
  %1679 = vmatpush1.msra.mxu0 0.0
  %1680 = vmatprep.mubr.f32.mxu0 0.0
  %1681 = vmatmul.mubr.f32.gmra.mrb[0].mxu0 %v1614
  %v1682 = vpop.f32.mrb[0].mxu0
  %v1683 = vadd.f32 0.0, %v1682
  %v1684 = vpop.f32.mrb[0].mxu0
  %1685 = vdwg.mxu0
  %1686 = vrot.lane.b32.xlu0 %v440, 104
  %v1687 = vpop.permute.xlu0 %1686
  %v1690 = vsel %vm448, %v1609, 0
  %1692 = vmatprep.subr.mxu0 0.0
  %1693 = vmatpush1.msra.mxu0 %v1687
  %1694 = vmatprep.subr.mxu0 0.0
  %1695 = vmatpush1.msra.mxu0 0.0
  %1696 = vmatprep.subr.mxu0 0.0
  %1697 = vmatpush1.msra.mxu0 0.0
  %1698 = vmatprep.subr.mxu0 0.0
  %1699 = vmatpush1.msra.mxu0 0.0
  %1700 = vmatprep.subr.mxu0 0.0
  %1701 = vmatpush1.msra.mxu0 0.0
  %1702 = vmatprep.subr.mxu0 0.0
  %1703 = vmatpush1.msra.mxu0 0.0
  %1704 = vmatprep.subr.mxu0 0.0
  %1705 = vmatpush1.msra.mxu0 0.0
  %1706 = vmatprep.subr.mxu0 0.0
  %1707 = vmatpush1.msra.mxu0 0.0
  %1708 = vmatprep.subr.mxu0 0.0
  %1709 = vmatpush1.msra.mxu0 0.0
  %1710 = vmatprep.subr.mxu0 0.0
  %1711 = vmatpush1.msra.mxu0 0.0
  %1712 = vmatprep.subr.mxu0 0.0
  %1713 = vmatpush1.msra.mxu0 0.0
  %1714 = vmatprep.subr.mxu0 0.0
  %1715 = vmatpush1.msra.mxu0 0.0
  %1716 = vmatprep.subr.mxu0 0.0
  %1717 = vmatpush1.msra.mxu0 0.0
  %1718 = vmatprep.subr.mxu0 0.0
  %1719 = vmatpush1.msra.mxu0 0.0
  %1720 = vmatprep.subr.mxu0 0.0
  %1721 = vmatpush1.msra.mxu0 0.0
  %1722 = vmatprep.subr.mxu0 0.0
  %1723 = vmatpush1.msra.mxu0 0.0
  %1724 = vmatprep.subr.mxu0 0.0
  %1725 = vmatpush1.msra.mxu0 0.0
  %1726 = vmatprep.subr.mxu0 0.0
  %1727 = vmatpush1.msra.mxu0 0.0
  %1728 = vmatprep.subr.mxu0 0.0
  %1729 = vmatpush1.msra.mxu0 0.0
  %1730 = vmatprep.subr.mxu0 0.0
  %1731 = vmatpush1.msra.mxu0 0.0
  %1732 = vmatprep.subr.mxu0 0.0
  %1733 = vmatpush1.msra.mxu0 0.0
  %1734 = vmatprep.subr.mxu0 0.0
  %1735 = vmatpush1.msra.mxu0 0.0
  %1736 = vmatprep.subr.mxu0 0.0
  %1737 = vmatpush1.msra.mxu0 0.0
  %1738 = vmatprep.subr.mxu0 0.0
  %1739 = vmatpush1.msra.mxu0 0.0
  %1740 = vmatprep.subr.mxu0 0.0
  %1741 = vmatpush1.msra.mxu0 0.0
  %1742 = vmatprep.subr.mxu0 0.0
  %1743 = vmatpush1.msra.mxu0 0.0
  %1744 = vmatprep.subr.mxu0 0.0
  %1745 = vmatpush1.msra.mxu0 0.0
  %1746 = vmatprep.subr.mxu0 0.0
  %1747 = vmatpush1.msra.mxu0 0.0
  %1748 = vmatprep.subr.mxu0 0.0
  %1749 = vmatpush1.msra.mxu0 0.0
  %1750 = vmatprep.subr.mxu0 0.0
  %1751 = vmatpush1.msra.mxu0 0.0
  %1752 = vmatprep.subr.mxu0 0.0
  %1753 = vmatpush1.msra.mxu0 0.0
  %1754 = vmatprep.subr.mxu0 0.0
  %1755 = vmatpush1.msra.mxu0 0.0
  %1756 = vmatprep.mubr.f32.mxu0 0.0
  %1757 = vmatmul.mubr.f32.gmra.mrb[0].mxu0 %v1690
  %v1758 = vpop.f32.mrb[0].mxu0
  %v1759 = vadd.f32 0.0, %v1758
  %v1760 = vpop.f32.mrb[0].mxu0
  %1761 = vdwg.mxu0
  %1764 = vrot.lane.b32.xlu0 %v1022, 8
  %v1765 = vpop.permute.xlu0 %1764
  %1766 = vrot.lane.b32.xlu0 %v1099, 8
  %v1767 = vpop.permute.xlu0 %1766
  %1772 = vrot.lane.b32.xlu0 %v1353, 16
  %v1773 = vpop.permute.xlu0 %1772
  %1774 = vrot.lane.b32.xlu0 %v1429, 16
  %v1775 = vpop.permute.xlu0 %1774
  %1780 = vrot.lane.b32.xlu0 %v1683, 24
  %v1781 = vpop.permute.xlu0 %1780
  %1782 = vrot.lane.b32.xlu0 %v1759, 24
  %v1783 = vpop.permute.xlu0 %1782
  %v1786 = vsel %vm448, %v694, %v1765
  %v1787 = vsel %vm448, %v767, %v1767
  %vm1788 = vcmask 130048
  %v1789 = vsel %vm1788, %v1786, %v1773
  %v1790 = vsel %vm1788, %v1787, %v1775
  %vm1791 = vcmask 195584
  %v1792 = vsel %vm1791, %v1789, %v1781
  %v1793 = vsel %vm1791, %v1790, %v1783
  %v1794 = vld [vmem:[%s2 + $0x1b0] sm:$0xff]
  %v1795 = vld [vmem:[%s2 + $0x1b8] sm:$0xff]
  %v1796 = vld [vmem:[%s2 + $0x1c0] sm:$0xff]
  %v1797 = vld [vmem:[%s2 + $0x1c8] sm:$0xff]
  %v1798 = vld [vmem:[%s2 + $0x1d0] sm:$0x1]
  %v1799 = vlaneseq
  %v1800 = vshrl.u32 %v1799, 7
  %v1801 = vsub.s32 0, %v1800
  %v1802 = vrot.slane %v1798, %v1801
  %v1804 = vsel %vm220, %v1792, 0
  %v1807 = vsel %vm220, %v1793, 0
  %1809 = vmatprep.subr.mxu0 0.0
  %1810 = vmatpush1.msra.mxu0 %v1794
  %1811 = vmatprep.subr.mxu0 0.0
  %1812 = vmatpush1.msra.mxu0 %v1795
  %1813 = vmatprep.subr.mxu0 0.0
  %1814 = vmatpush1.msra.mxu0 %v1796
  %1815 = vmatprep.subr.mxu0 0.0
  %1816 = vmatpush1.msra.mxu0 %v1797
  %1817 = vmatprep.subr.mxu0 0.0
  %1818 = vmatpush1.msra.mxu0 0.0
  %1819 = vmatprep.subr.mxu0 0.0
  %1820 = vmatpush1.msra.mxu0 0.0
  %1821 = vmatprep.subr.mxu0 0.0
  %1822 = vmatpush1.msra.mxu0 0.0
  %1823 = vmatprep.subr.mxu0 0.0
  %1824 = vmatpush1.msra.mxu0 0.0
  %1825 = vmatprep.subr.mxu0 0.0
  %1826 = vmatpush1.msra.mxu0 0.0
  %1827 = vmatprep.subr.mxu0 0.0
  %1828 = vmatpush1.msra.mxu0 0.0
  %1829 = vmatprep.subr.mxu0 0.0
  %1830 = vmatpush1.msra.mxu0 0.0
  %1831 = vmatprep.subr.mxu0 0.0
  %1832 = vmatpush1.msra.mxu0 0.0
  %1833 = vmatprep.subr.mxu0 0.0
  %1834 = vmatpush1.msra.mxu0 0.0
  %1835 = vmatprep.subr.mxu0 0.0
  %1836 = vmatpush1.msra.mxu0 0.0
  %1837 = vmatprep.subr.mxu0 0.0
  %1838 = vmatpush1.msra.mxu0 0.0
  %1839 = vmatprep.subr.mxu0 0.0
  %1840 = vmatpush1.msra.mxu0 0.0
  %1841 = vmatprep.subr.mxu0 0.0
  %1842 = vmatpush1.msra.mxu0 0.0
  %1843 = vmatprep.subr.mxu0 0.0
  %1844 = vmatpush1.msra.mxu0 0.0
  %1845 = vmatprep.subr.mxu0 0.0
  %1846 = vmatpush1.msra.mxu0 0.0
  %1847 = vmatprep.subr.mxu0 0.0
  %1848 = vmatpush1.msra.mxu0 0.0
  %1849 = vmatprep.subr.mxu0 0.0
  %1850 = vmatpush1.msra.mxu0 0.0
  %1851 = vmatprep.subr.mxu0 0.0
  %1852 = vmatpush1.msra.mxu0 0.0
  %1853 = vmatprep.subr.mxu0 0.0
  %1854 = vmatpush1.msra.mxu0 0.0
  %1855 = vmatprep.subr.mxu0 0.0
  %1856 = vmatpush1.msra.mxu0 0.0
  %1857 = vmatprep.subr.mxu0 0.0
  %1858 = vmatpush1.msra.mxu0 0.0
  %1859 = vmatprep.subr.mxu0 0.0
  %1860 = vmatpush1.msra.mxu0 0.0
  %1861 = vmatprep.subr.mxu0 0.0
  %1862 = vmatpush1.msra.mxu0 0.0
  %1863 = vmatprep.subr.mxu0 0.0
  %1864 = vmatpush1.msra.mxu0 0.0
  %1865 = vmatprep.subr.mxu0 0.0
  %1866 = vmatpush1.msra.mxu0 0.0
  %1867 = vmatprep.subr.mxu0 0.0
  %1868 = vmatpush1.msra.mxu0 0.0
  %1869 = vmatprep.subr.mxu0 0.0
  %1870 = vmatpush1.msra.mxu0 0.0
  %1871 = vmatprep.subr.mxu0 0.0
  %1872 = vmatpush1.msra.mxu0 0.0
  %1873 = vmatprep.mubr.f32.mxu0 0.0
  %1874 = vmatmul.mubr.f32.gmra.mrb[0].mxu0 %v1804
  %v1875 = vpop.f32.mrb[0].mxu0
  %v1876 = vadd.f32 %v1802, %v1875
  %v1877 = vpop.f32.mrb[0].mxu0
  %1878 = vmatprep.mubr.f32.mxu0 0.0
  %1879 = vmatmul.mubr.f32.gmra.mrb[0].mxu0 %v1807
  %v1880 = vpop.f32.mrb[0].mxu0
  %v1881 = vadd.f32 %v1802, %v1880
  %v1882 = vpop.f32.mrb[0].mxu0
  %1883 = vdwg.mxu0
  %v1884 = vadd.f32 %v1876, 0.0
  %v1885 = vadd.f32 %v1881, 0.0
  %v1886 = vld [vmem:[%s2 + $0x1d8] sm:$0x1]
  %v1887 = vld [vmem:[%s2 + $0x1e0] sm:$0x1]
  %v1888 = vsel %vm220, %v1884, 0.0
  %1889 = vadd.xlane.f32.xlu0 %v1888
  %v1890 = vpop.xlane.xlu0 %1889
  %v1891 = vsel %vm220, %v1885, 0.0
  %1892 = vadd.xlane.f32.xlu0 %v1891
  %v1893 = vpop.xlane.xlu0 %1892
  %v1894 = vmul.f32 %v1890, %v227
  %v1895 = vmul.f32 %v1893, %v227
  %v1896 = vsub.f32 %v1884, %v1894
  %v1897 = vsub.f32 %v1885, %v1895
  %v1898 = vmul.f32 %v1896, %v1896
  %v1899 = vmul.f32 %v1897, %v1897
  %v1900 = vsel %vm220, %v1898, 0.0
  %1901 = vadd.xlane.f32.xlu0 %v1900
  %v1902 = vpop.xlane.xlu0 %1901
  %v1903 = vsel %vm220, %v1899, 0.0
  %1904 = vadd.xlane.f32.xlu0 %v1903
  %v1905 = vpop.xlane.xlu0 %1904
  %v1906 = vmul.f32 %v1902, %v227
  %v1907 = vmul.f32 %v1905, %v227
  %v1908 = vadd.f32 %v1906, 1e-05
  %v1909 = vadd.f32 %v1907, 1e-05
  %v1910 = vrsqrt.pop %v1908
  %v1911 = vrsqrt.pop %v1909
  %v1912 = vmul.f32 %v1896, %v1910
  %v1913 = vmul.f32 %v1897, %v1911
  %v1914 = vlaneseq
  %v1915 = vshrl.u32 %v1914, 7
  %v1916 = vsub.s32 0, %v1915
  %v1917 = vrot.slane %v1886, %v1916
  %v1918 = vmul.f32 %v1912, %v1917
  %v1919 = vmul.f32 %v1913, %v1917
  %v1920 = vlaneseq
  %v1921 = vshrl.u32 %v1920, 7
  %v1922 = vsub.s32 0, %v1921
  %v1923 = vrot.slane %v1887, %v1922
  %v1924 = vadd.f32 %v1918, %v1923
  %v1925 = vadd.f32 %v1919, %v1923
  %v1926 = vadd.f32 %v1924, %v267
  %v1927 = vadd.f32 %v1925, %v267
  %v1928 = vld [vmem:[%s2 + $0x1e8] sm:$0xff]
  %v1929 = vld [vmem:[%s2 + $0x1f0] sm:$0xff]
  %v1930 = vld [vmem:[%s2 + $0x1f8] sm:$0xff]
  %v1931 = vld [vmem:[%s2 + $0x200] sm:$0xff]
  %v1932 = vld [vmem:[%s2 + $0x208] sm:$0x1]
  %v1933 = vlaneseq
  %v1934 = vshrl.u32 %v1933, 7
  %v1935 = vsub.s32 0, %v1934
  %v1936 = vrot.slane %v1932, %v1935
  %v1938 = vsel %vm220, %v1926, 0
  %v1941 = vsel %vm220, %v1927, 0
  %1943 = vmatprep.subr.mxu0 0.0
  %1944 = vmatpush1.msra.mxu0 %v1928
  %1945 = vmatprep.subr.mxu0 0.0
  %1946 = vmatpush1.msra.mxu0 %v1929
  %1947 = vmatprep.subr.mxu0 0.0
  %1948 = vmatpush1.msra.mxu0 %v1930
  %1949 = vmatprep.subr.mxu0 0.0
  %1950 = vmatpush1.msra.mxu0 %v1931
  %1951 = vmatprep.subr.mxu0 0.0
  %1952 = vmatpush1.msra.mxu0 0.0
  %1953 = vmatprep.subr.mxu0 0.0
  %1954 = vmatpush1.msra.mxu0 0.0
  %1955 = vmatprep.subr.mxu0 0.0
  %1956 = vmatpush1.msra.mxu0 0.0
  %1957 = vmatprep.subr.mxu0 0.0
  %1958 = vmatpush1.msra.mxu0 0.0
  %1959 = vmatprep.subr.mxu0 0.0
  %1960 = vmatpush1.msra.mxu0 0.0
  %1961 = vmatprep.subr.mxu0 0.0
  %1962 = vmatpush1.msra.mxu0 0.0
  %1963 = vmatprep.subr.mxu0 0.0
  %1964 = vmatpush1.msra.mxu0 0.0
  %1965 = vmatprep.subr.mxu0 0.0
  %1966 = vmatpush1.msra.mxu0 0.0
  %1967 = vmatprep.subr.mxu0 0.0
  %1968 = vmatpush1.msra.mxu0 0.0
  %1969 = vmatprep.subr.mxu0 0.0
  %1970 = vmatpush1.msra.mxu0 0.0
  %1971 = vmatprep.subr.mxu0 0.0
  %1972 = vmatpush1.msra.mxu0 0.0
  %1973 = vmatprep.subr.mxu0 0.0
  %1974 = vmatpush1.msra.mxu0 0.0
  %1975 = vmatprep.subr.mxu0 0.0
  %1976 = vmatpush1.msra.mxu0 0.0
  %1977 = vmatprep.subr.mxu0 0.0
  %1978 = vmatpush1.msra.mxu0 0.0
  %1979 = vmatprep.subr.mxu0 0.0
  %1980 = vmatpush1.msra.mxu0 0.0
  %1981 = vmatprep.subr.mxu0 0.0
  %1982 = vmatpush1.msra.mxu0 0.0
  %1983 = vmatprep.subr.mxu0 0.0
  %1984 = vmatpush1.msra.mxu0 0.0
  %1985 = vmatprep.subr.mxu0 0.0
  %1986 = vmatpush1.msra.mxu0 0.0
  %1987 = vmatprep.subr.mxu0 0.0
  %1988 = vmatpush1.msra.mxu0 0.0
  %1989 = vmatprep.subr.mxu0 0.0
  %1990 = vmatpush1.msra.mxu0 0.0
  %1991 = vmatprep.subr.mxu0 0.0
  %1992 = vmatpush1.msra.mxu0 0.0
  %1993 = vmatprep.subr.mxu0 0.0
  %1994 = vmatpush1.msra.mxu0 0.0
  %1995 = vmatprep.subr.mxu0 0.0
  %1996 = vmatpush1.msra.mxu0 0.0
  %1997 = vmatprep.subr.mxu0 0.0
  %1998 = vmatpush1.msra.mxu0 0.0
  %1999 = vmatprep.subr.mxu0 0.0
  %2000 = vmatpush1.msra.mxu0 0.0
  %2001 = vmatprep.subr.mxu0 0.0
  %2002 = vmatpush1.msra.mxu0 0.0
  %2003 = vmatprep.subr.mxu0 0.0
  %2004 = vmatpush1.msra.mxu0 0.0
  %2005 = vmatprep.subr.mxu0 0.0
  %2006 = vmatpush1.msra.mxu0 0.0
  %2007 = vmatprep.mubr.f32.mxu0 0.0
  %2008 = vmatmul.mubr.f32.gmra.mrb[0].mxu0 %v1938
  %v2009 = vpop.f32.mrb[0].mxu0
  %v2010 = vadd.f32 %v1936, %v2009
  %v2011 = vpop.f32.mrb[0].mxu0
  %2012 = vmatprep.mubr.f32.mxu0 0.0
  %2013 = vmatmul.mubr.f32.gmra.mrb[0].mxu0 %v1941
  %v2014 = vpop.f32.mrb[0].mxu0
  %v2015 = vadd.f32 %v1936, %v2014
  %v2016 = vpop.f32.mrb[0].mxu0
  %2017 = vdwg.mxu0
  %v2018 = vld [vmem:[%s2 + $0x210] sm:$0xff]
  %v2019 = vld [vmem:[%s2 + $0x218] sm:$0xff]
  %v2020 = vld [vmem:[%s2 + $0x220] sm:$0xff]
  %v2021 = vld [vmem:[%s2 + $0x228] sm:$0xff]
  %v2022 = vld [vmem:[%s2 + $0x230] sm:$0x1]
  %v2023 = vlaneseq
  %v2024 = vshrl.u32 %v2023, 7
  %v2025 = vsub.s32 0, %v2024
  %v2026 = vrot.slane %v2022, %v2025
  %v2028 = vsel %vm220, %v261, 0
  %v2031 = vsel %vm220, %v262, 0
  %2033 = vmatprep.subr.mxu0 0.0
  %2034 = vmatpush1.msra.mxu0 %v2018
  %2035 = vmatprep.subr.mxu0 0.0
  %2036 = vmatpush1.msra.mxu0 %v2019
  %2037 = vmatprep.subr.mxu0 0.0
  %2038 = vmatpush1.msra.mxu0 %v2020
  %2039 = vmatprep.subr.mxu0 0.0
  %2040 = vmatpush1.msra.mxu0 %v2021
  %2041 = vmatprep.subr.mxu0 0.0
  %2042 = vmatpush1.msra.mxu0 0.0
  %2043 = vmatprep.subr.mxu0 0.0
  %2044 = vmatpush1.msra.mxu0 0.0
  %2045 = vmatprep.subr.mxu0 0.0
  %2046 = vmatpush1.msra.mxu0 0.0
  %2047 = vmatprep.subr.mxu0 0.0
  %2048 = vmatpush1.msra.mxu0 0.0
  %2049 = vmatprep.subr.mxu0 0.0
  %2050 = vmatpush1.msra.mxu0 0.0
  %2051 = vmatprep.subr.mxu0 0.0
  %2052 = vmatpush1.msra.mxu0 0.0
  %2053 = vmatprep.subr.mxu0 0.0
  %2054 = vmatpush1.msra.mxu0 0.0
  %2055 = vmatprep.subr.mxu0 0.0
  %2056 = vmatpush1.msra.mxu0 0.0
  %2057 = vmatprep.subr.mxu0 0.0
  %2058 = vmatpush1.msra.mxu0 0.0
  %2059 = vmatprep.subr.mxu0 0.0
  %2060 = vmatpush1.msra.mxu0 0.0
  %2061 = vmatprep.subr.mxu0 0.0
  %2062 = vmatpush1.msra.mxu0 0.0
  %2063 = vmatprep.subr.mxu0 0.0
  %2064 = vmatpush1.msra.mxu0 0.0
  %2065 = vmatprep.subr.mxu0 0.0
  %2066 = vmatpush1.msra.mxu0 0.0
  %2067 = vmatprep.subr.mxu0 0.0
  %2068 = vmatpush1.msra.mxu0 0.0
  %2069 = vmatprep.subr.mxu0 0.0
  %2070 = vmatpush1.msra.mxu0 0.0
  %2071 = vmatprep.subr.mxu0 0.0
  %2072 = vmatpush1.msra.mxu0 0.0
  %2073 = vmatprep.subr.mxu0 0.0
  %2074 = vmatpush1.msra.mxu0 0.0
  %2075 = vmatprep.subr.mxu0 0.0
  %2076 = vmatpush1.msra.mxu0 0.0
  %2077 = vmatprep.subr.mxu0 0.0
  %2078 = vmatpush1.msra.mxu0 0.0
  %2079 = vmatprep.subr.mxu0 0.0
  %2080 = vmatpush1.msra.mxu0 0.0
  %2081 = vmatprep.subr.mxu0 0.0
  %2082 = vmatpush1.msra.mxu0 0.0
  %2083 = vmatprep.subr.mxu0 0.0
  %2084 = vmatpush1.msra.mxu0 0.0
  %2085 = vmatprep.subr.mxu0 0.0
  %2086 = vmatpush1.msra.mxu0 0.0
  %2087 = vmatprep.subr.mxu0 0.0
  %2088 = vmatpush1.msra.mxu0 0.0
  %2089 = vmatprep.subr.mxu0 0.0
  %2090 = vmatpush1.msra.mxu0 0.0
  %2091 = vmatprep.subr.mxu0 0.0
  %2092 = vmatpush1.msra.mxu0 0.0
  %2093 = vmatprep.subr.mxu0 0.0
  %2094 = vmatpush1.msra.mxu0 0.0
  %2095 = vmatprep.subr.mxu0 0.0
  %2096 = vmatpush1.msra.mxu0 0.0
  %2097 = vmatprep.mubr.f32.mxu0 0.0
  %2098 = vmatmul.mubr.f32.gmra.mrb[0].mxu0 %v2028
  %v2099 = vpop.f32.mrb[0].mxu0
  %v2100 = vadd.f32 %v2026, %v2099
  %v2101 = vpop.f32.mrb[0].mxu0
  %2102 = vmatprep.mubr.f32.mxu0 0.0
  %2103 = vmatmul.mubr.f32.gmra.mrb[0].mxu0 %v2031
  %v2104 = vpop.f32.mrb[0].mxu0
  %v2105 = vadd.f32 %v2026, %v2104
  %v2106 = vpop.f32.mrb[0].mxu0
  %2107 = vdwg.mxu0
  %v2108 = vld [vmem:[%s2 + $0x238] sm:$0xff]
  %v2109 = vld [vmem:[%s2 + $0x240] sm:$0xff]
  %v2110 = vld [vmem:[%s2 + $0x248] sm:$0xff]
  %v2111 = vld [vmem:[%s2 + $0x250] sm:$0xff]
  %v2112 = vld [vmem:[%s2 + $0x258] sm:$0x1]
  %v2113 = vlaneseq
  %v2114 = vshrl.u32 %v2113, 7
  %v2115 = vsub.s32 0, %v2114
  %v2116 = vrot.slane %v2112, %v2115
  %v2118 = vsel %vm220, %v258, 0
  %v2121 = vsel %vm220, %v259, 0
  %2123 = vmatprep.subr.mxu0 0.0
  %2124 = vmatpush1.msra.mxu0 %v2108
  %2125 = vmatprep.subr.mxu0 0.0
  %2126 = vmatpush1.msra.mxu0 %v2109
  %2127 = vmatprep.subr.mxu0 0.0
  %2128 = vmatpush1.msra.mxu0 %v2110
  %2129 = vmatprep.subr.mxu0 0.0
  %2130 = vmatpush1.msra.mxu0 %v2111
  %2131 = vmatprep.subr.mxu0 0.0
  %2132 = vmatpush1.msra.mxu0 0.0
  %2133 = vmatprep.subr.mxu0 0.0
  %2134 = vmatpush1.msra.mxu0 0.0
  %2135 = vmatprep.subr.mxu0 0.0
  %2136 = vmatpush1.msra.mxu0 0.0
  %2137 = vmatprep.subr.mxu0 0.0
  %2138 = vmatpush1.msra.mxu0 0.0
  %2139 = vmatprep.subr.mxu0 0.0
  %2140 = vmatpush1.msra.mxu0 0.0
  %2141 = vmatprep.subr.mxu0 0.0
  %2142 = vmatpush1.msra.mxu0 0.0
  %2143 = vmatprep.subr.mxu0 0.0
  %2144 = vmatpush1.msra.mxu0 0.0
  %2145 = vmatprep.subr.mxu0 0.0
  %2146 = vmatpush1.msra.mxu0 0.0
  %2147 = vmatprep.subr.mxu0 0.0
  %2148 = vmatpush1.msra.mxu0 0.0
  %2149 = vmatprep.subr.mxu0 0.0
  %2150 = vmatpush1.msra.mxu0 0.0
  %2151 = vmatprep.subr.mxu0 0.0
  %2152 = vmatpush1.msra.mxu0 0.0
  %2153 = vmatprep.subr.mxu0 0.0
  %2154 = vmatpush1.msra.mxu0 0.0
  %2155 = vmatprep.subr.mxu0 0.0
  %2156 = vmatpush1.msra.mxu0 0.0
  %2157 = vmatprep.subr.mxu0 0.0
  %2158 = vmatpush1.msra.mxu0 0.0
  %2159 = vmatprep.subr.mxu0 0.0
  %2160 = vmatpush1.msra.mxu0 0.0
  %2161 = vmatprep.subr.mxu0 0.0
  %2162 = vmatpush1.msra.mxu0 0.0
  %2163 = vmatprep.subr.mxu0 0.0
  %2164 = vmatpush1.msra.mxu0 0.0
  %2165 = vmatprep.subr.mxu0 0.0
  %2166 = vmatpush1.msra.mxu0 0.0
  %2167 = vmatprep.subr.mxu0 0.0
  %2168 = vmatpush1.msra.mxu0 0.0
  %2169 = vmatprep.subr.mxu0 0.0
  %2170 = vmatpush1.msra.mxu0 0.0
  %2171 = vmatprep.subr.mxu0 0.0
  %2172 = vmatpush1.msra.mxu0 0.0
  %2173 = vmatprep.subr.mxu0 0.0
  %2174 = vmatpush1.msra.mxu0 0.0
  %2175 = vmatprep.subr.mxu0 0.0
  %2176 = vmatpush1.msra.mxu0 0.0
  %2177 = vmatprep.subr.mxu0 0.0
  %2178 = vmatpush1.msra.mxu0 0.0
  %2179 = vmatprep.subr.mxu0 0.0
  %2180 = vmatpush1.msra.mxu0 0.0
  %2181 = vmatprep.subr.mxu0 0.0
  %2182 = vmatpush1.msra.mxu0 0.0
  %2183 = vmatprep.subr.mxu0 0.0
  %2184 = vmatpush1.msra.mxu0 0.0
  %2185 = vmatprep.subr.mxu0 0.0
  %2186 = vmatpush1.msra.mxu0 0.0
  %2187 = vmatprep.mubr.f32.mxu0 0.0
  %2188 = vmatmul.mubr.f32.gmra.mrb[0].mxu0 %v2118
  %v2189 = vpop.f32.mrb[0].mxu0
  %v2190 = vadd.f32 %v2116, %v2189
  %v2191 = vpop.f32.mrb[0].mxu0
  %2192 = vmatprep.mubr.f32.mxu0 0.0
  %2193 = vmatmul.mubr.f32.gmra.mrb[0].mxu0 %v2121
  %v2194 = vpop.f32.mrb[0].mxu0
  %v2195 = vadd.f32 %v2116, %v2194
  %v2196 = vpop.f32.mrb[0].mxu0
  %2197 = vdwg.mxu0
  %v2198 = vmul.f32 %v2010, 0.35355338
  %v2199 = vmul.f32 %v2015, 0.35355338
  %v2201 = vsel %vm448, %v2198, 0
  %v2204 = vsel %vm448, %v2100, 0
  %2206 = vmatprep.subr.mxu0 0.0
  %2207 = vmatpush1.xpose.msra.mxu0 %v2204
  %2208 = vmatprep.subr.mxu0 0.0
  %2209 = vmatpush1.xpose.msra.mxu0 0.0
  %2210 = vmatprep.subr.mxu0 0.0
  %2211 = vmatpush1.xpose.msra.mxu0 0.0
  %2212 = vmatprep.subr.mxu0 0.0
  %2213 = vmatpush1.xpose.msra.mxu0 0.0
  %2214 = vmatprep.subr.mxu0 0.0
  %2215 = vmatpush1.xpose.msra.mxu0 0.0
  %2216 = vmatprep.subr.mxu0 0.0
  %2217 = vmatpush1.xpose.msra.mxu0 0.0
  %2218 = vmatprep.subr.mxu0 0.0
  %2219 = vmatpush1.xpose.msra.mxu0 0.0
  %2220 = vmatprep.subr.mxu0 0.0
  %2221 = vmatpush1.xpose.msra.mxu0 0.0
  %2222 = vmatprep.subr.mxu0 0.0
  %2223 = vmatpush1.xpose.msra.mxu0 0.0
  %2224 = vmatprep.subr.mxu0 0.0
  %2225 = vmatpush1.xpose.msra.mxu0 0.0
  %2226 = vmatprep.subr.mxu0 0.0
  %2227 = vmatpush1.xpose.msra.mxu0 0.0
  %2228 = vmatprep.subr.mxu0 0.0
  %2229 = vmatpush1.xpose.msra.mxu0 0.0
  %2230 = vmatprep.subr.mxu0 0.0
  %2231 = vmatpush1.xpose.msra.mxu0 0.0
  %2232 = vmatprep.subr.mxu0 0.0
  %2233 = vmatpush1.xpose.msra.mxu0 0.0
  %2234 = vmatprep.subr.mxu0 0.0
  %2235 = vmatpush1.xpose.msra.mxu0 0.0
  %2236 = vmatprep.subr.mxu0 0.0
  %2237 = vmatpush1.xpose.msra.mxu0 0.0
  %2238 = vmatprep.subr.mxu0 0.0
  %2239 = vmatpush1.xpose.msra.mxu0 0.0
  %2240 = vmatprep.subr.mxu0 0.0
  %2241 = vmatpush1.xpose.msra.mxu0 0.0
  %2242 = vmatprep.subr.mxu0 0.0
  %2243 = vmatpush1.xpose.msra.mxu0 0.0
  %2244 = vmatprep.subr.mxu0 0.0
  %2245 = vmatpush1.xpose.msra.mxu0 0.0
  %2246 = vmatprep.subr.mxu0 0.0
  %2247 = vmatpush1.xpose.msra.mxu0 0.0
  %2248 = vmatprep.subr.mxu0 0.0
  %2249 = vmatpush1.xpose.msra.mxu0 0.0
  %2250 = vmatprep.subr.mxu0 0.0
  %2251 = vmatpush1.xpose.msra.mxu0 0.0
  %2252 = vmatprep.subr.mxu0 0.0
  %2253 = vmatpush1.xpose.msra.mxu0 0.0
  %2254 = vmatprep.subr.mxu0 0.0
  %2255 = vmatpush1.xpose.msra.mxu0 0.0
  %2256 = vmatprep.subr.mxu0 0.0
  %2257 = vmatpush1.xpose.msra.mxu0 0.0
  %2258 = vmatprep.subr.mxu0 0.0
  %2259 = vmatpush1.xpose.msra.mxu0 0.0
  %2260 = vmatprep.subr.mxu0 0.0
  %2261 = vmatpush1.xpose.msra.mxu0 0.0
  %2262 = vmatprep.subr.mxu0 0.0
  %2263 = vmatpush1.xpose.msra.mxu0 0.0
  %2264 = vmatprep.subr.mxu0 0.0
  %2265 = vmatpush1.xpose.msra.mxu0 0.0
  %2266 = vmatprep.subr.mxu0 0.0
  %2267 = vmatpush1.xpose.msra.mxu0 0.0
  %2268 = vmatprep.subr.mxu0 0.0
  %2269 = vmatpush1.xpose.msra.mxu0 0.0
  %2270 = vmatprep.mubr.f32.mxu0 0.0
  %2271 = vmatmul.mubr.f32.gmra.mrb[0].mxu0 %v2201
  %v2272 = vpop.f32.mrb[0].mxu0
  %v2273 = vadd.f32 %v266, %v2272
  %v2274 = vpop.f32.mrb[0].mxu0
  %2275 = vdwg.mxu0
  %v2277 = vsel %vm448, %v2199, 0
  %v2280 = vsel %vm448, %v2105, 0
  %2282 = vmatprep.subr.mxu0 0.0
  %2283 = vmatpush1.xpose.msra.mxu0 %v2280
  %2284 = vmatprep.subr.mxu0 0.0
  %2285 = vmatpush1.xpose.msra.mxu0 0.0
  %2286 = vmatprep.subr.mxu0 0.0
  %2287 = vmatpush1.xpose.msra.mxu0 0.0
  %2288 = vmatprep.subr.mxu0 0.0
  %2289 = vmatpush1.xpose.msra.mxu0 0.0
  %2290 = vmatprep.subr.mxu0 0.0
  %2291 = vmatpush1.xpose.msra.mxu0 0.0
  %2292 = vmatprep.subr.mxu0 0.0
  %2293 = vmatpush1.xpose.msra.mxu0 0.0
  %2294 = vmatprep.subr.mxu0 0.0
  %2295 = vmatpush1.xpose.msra.mxu0 0.0
  %2296 = vmatprep.subr.mxu0 0.0
  %2297 = vmatpush1.xpose.msra.mxu0 0.0
  %2298 = vmatprep.subr.mxu0 0.0
  %2299 = vmatpush1.xpose.msra.mxu0 0.0
  %2300 = vmatprep.subr.mxu0 0.0
  %2301 = vmatpush1.xpose.msra.mxu0 0.0
  %2302 = vmatprep.subr.mxu0 0.0
  %2303 = vmatpush1.xpose.msra.mxu0 0.0
  %2304 = vmatprep.subr.mxu0 0.0
  %2305 = vmatpush1.xpose.msra.mxu0 0.0
  %2306 = vmatprep.subr.mxu0 0.0
  %2307 = vmatpush1.xpose.msra.mxu0 0.0
  %2308 = vmatprep.subr.mxu0 0.0
  %2309 = vmatpush1.xpose.msra.mxu0 0.0
  %2310 = vmatprep.subr.mxu0 0.0
  %2311 = vmatpush1.xpose.msra.mxu0 0.0
  %2312 = vmatprep.subr.mxu0 0.0
  %2313 = vmatpush1.xpose.msra.mxu0 0.0
  %2314 = vmatprep.subr.mxu0 0.0
  %2315 = vmatpush1.xpose.msra.mxu0 0.0
  %2316 = vmatprep.subr.mxu0 0.0
  %2317 = vmatpush1.xpose.msra.mxu0 0.0
  %2318 = vmatprep.subr.mxu0 0.0
  %2319 = vmatpush1.xpose.msra.mxu0 0.0
  %2320 = vmatprep.subr.mxu0 0.0
  %2321 = vmatpush1.xpose.msra.mxu0 0.0
  %2322 = vmatprep.subr.mxu0 0.0
  %2323 = vmatpush1.xpose.msra.mxu0 0.0
  %2324 = vmatprep.subr.mxu0 0.0
  %2325 = vmatpush1.xpose.msra.mxu0 0.0
  %2326 = vmatprep.subr.mxu0 0.0
  %2327 = vmatpush1.xpose.msra.mxu0 0.0
  %2328 = vmatprep.subr.mxu0 0.0
  %2329 = vmatpush1.xpose.msra.mxu0 0.0
  %2330 = vmatprep.subr.mxu0 0.0
  %2331 = vmatpush1.xpose.msra.mxu0 0.0
  %2332 = vmatprep.subr.mxu0 0.0
  %2333 = vmatpush1.xpose.msra.mxu0 0.0
  %2334 = vmatprep.subr.mxu0 0.0
  %2335 = vmatpush1.xpose.msra.mxu0 0.0
  %2336 = vmatprep.subr.mxu0 0.0
  %2337 = vmatpush1.xpose.msra.mxu0 0.0
  %2338 = vmatprep.subr.mxu0 0.0
  %2339 = vmatpush1.xpose.msra.mxu0 0.0
  %2340 = vmatprep.subr.mxu0 0.0
  %2341 = vmatpush1.xpose.msra.mxu0 0.0
  %2342 = vmatprep.subr.mxu0 0.0
  %2343 = vmatpush1.xpose.msra.mxu0 0.0
  %2344 = vmatprep.subr.mxu0 0.0
  %2345 = vmatpush1.xpose.msra.mxu0 0.0
  %2346 = vmatprep.mubr.f32.mxu0 0.0
  %2347 = vmatmul.mubr.f32.gmra.mrb[0].mxu0 %v2277
  %v2348 = vpop.f32.mrb[0].mxu0
  %v2349 = vadd.f32 %v266, %v2348
  %v2350 = vpop.f32.mrb[0].mxu0
  %2351 = vdwg.mxu0
  %v2352 = vsel %vm448, %v2273, -inf
  %2353 = vmax.xlane.f32.xlu0 %v2352
  %v2354 = vpop.xlane.xlu0 %2353
  %v2355 = vsel %vm448, %v2349, -inf
  %2356 = vmax.xlane.f32.xlu0 %v2355
  %v2357 = vpop.xlane.xlu0 %2356
  %v2358 = vsub.f32 %v2273, %v2354
  %v2359 = vsub.f32 %v2349, %v2357
  %v2360 = vmul.f32 %v2358, 1.442695
  %v2361 = vpow.pop %v2360
  %v2362 = vmul.f32 %v2359, 1.442695
  %v2363 = vpow.pop %v2362
  %v2364 = vsel %vm448, %v2361, 0.0
  %2365 = vadd.xlane.f32.xlu0 %v2364
  %v2366 = vpop.xlane.xlu0 %2365
  %v2367 = vsel %vm448, %v2363, 0.0
  %2368 = vadd.xlane.f32.xlu0 %v2367
  %v2369 = vpop.xlane.xlu0 %2368
  %v2370 = vrcp.pop %v2366
  %v2371 = vrcp.pop %v2369
  %v2372 = vmul.f32 %v2361, %v2370
  %v2373 = vmul.f32 %v2363, %v2371
  %v2375 = vsel %vm448, %v2372, 0
  %2377 = vmatprep.subr.mxu0 0.0
  %2378 = vmatpush1.msra.mxu0 %v2190
  %2379 = vmatprep.subr.mxu0 0.0
  %2380 = vmatpush1.msra.mxu0 0.0
  %2381 = vmatprep.subr.mxu0 0.0
  %2382 = vmatpush1.msra.mxu0 0.0
  %2383 = vmatprep.subr.mxu0 0.0
  %2384 = vmatpush1.msra.mxu0 0.0
  %2385 = vmatprep.subr.mxu0 0.0
  %2386 = vmatpush1.msra.mxu0 0.0
  %2387 = vmatprep.subr.mxu0 0.0
  %2388 = vmatpush1.msra.mxu0 0.0
  %2389 = vmatprep.subr.mxu0 0.0
  %2390 = vmatpush1.msra.mxu0 0.0
  %2391 = vmatprep.subr.mxu0 0.0
  %2392 = vmatpush1.msra.mxu0 0.0
  %2393 = vmatprep.subr.mxu0 0.0
  %2394 = vmatpush1.msra.mxu0 0.0
  %2395 = vmatprep.subr.mxu0 0.0
  %2396 = vmatpush1.msra.mxu0 0.0
  %2397 = vmatprep.subr.mxu0 0.0
  %2398 = vmatpush1.msra.mxu0 0.0
  %2399 = vmatprep.subr.mxu0 0.0
  %2400 = vmatpush1.msra.mxu0 0.0
  %2401 = vmatprep.subr.mxu0 0.0
  %2402 = vmatpush1.msra.mxu0 0.0
  %2403 = vmatprep.subr.mxu0 0.0
  %2404 = vmatpush1.msra.mxu0 0.0
  %2405 = vmatprep.subr.mxu0 0.0
  %2406 = vmatpush1.msra.mxu0 0.0
  %2407 = vmatprep.subr.mxu0 0.0
  %2408 = vmatpush1.msra.mxu0 0.0
  %2409 = vmatprep.subr.mxu0 0.0
  %2410 = vmatpush1.msra.mxu0 0.0
  %2411 = vmatprep.subr.mxu0 0.0
  %2412 = vmatpush1.msra.mxu0 0.0
  %2413 = vmatprep.subr.mxu0 0.0
  %2414 = vmatpush1.msra.mxu0 0.0
  %2415 = vmatprep.subr.mxu0 0.0
  %2416 = vmatpush1.msra.mxu0 0.0
  %2417 = vmatprep.subr.mxu0 0.0
  %2418 = vmatpush1.msra.mxu0 0.0
  %2419 = vmatprep.subr.mxu0 0.0
  %2420 = vmatpush1.msra.mxu0 0.0
  %2421 = vmatprep.subr.mxu0 0.0
  %2422 = vmatpush1.msra.mxu0 0.0
  %2423 = vmatprep.subr.mxu0 0.0
  %2424 = vmatpush1.msra.mxu0 0.0
  %2425 = vmatprep.subr.mxu0 0.0
  %2426 = vmatpush1.msra.mxu0 0.0
  %2427 = vmatprep.subr.mxu0 0.0
  %2428 = vmatpush1.msra.mxu0 0.0
  %2429 = vmatprep.subr.mxu0 0.0
  %2430 = vmatpush1.msra.mxu0 0.0
  %2431 = vmatprep.subr.mxu0 0.0
  %2432 = vmatpush1.msra.mxu0 0.0
  %2433 = vmatprep.subr.mxu0 0.0
  %2434 = vmatpush1.msra.mxu0 0.0
  %2435 = vmatprep.subr.mxu0 0.0
  %2436 = vmatpush1.msra.mxu0 0.0
  %2437 = vmatprep.subr.mxu0 0.0
  %2438 = vmatpush1.msra.mxu0 0.0
  %2439 = vmatprep.subr.mxu0 0.0
  %2440 = vmatpush1.msra.mxu0 0.0
  %2441 = vmatprep.mubr.f32.mxu0 0.0
  %2442 = vmatmul.mubr.f32.gmra.mrb[0].mxu0 %v2375
  %v2443 = vpop.f32.mrb[0].mxu0
  %v2444 = vadd.f32 0.0, %v2443
  %v2445 = vpop.f32.mrb[0].mxu0
  %2446 = vdwg.mxu0
  %v2448 = vsel %vm448, %v2373, 0
  %2450 = vmatprep.subr.mxu0 0.0
  %2451 = vmatpush1.msra.mxu0 %v2195
  %2452 = vmatprep.subr.mxu0 0.0
  %2453 = vmatpush1.msra.mxu0 0.0
  %2454 = vmatprep.subr.mxu0 0.0
  %2455 = vmatpush1.msra.mxu0 0.0
  %2456 = vmatprep.subr.mxu0 0.0
  %2457 = vmatpush1.msra.mxu0 0.0
  %2458 = vmatprep.subr.mxu0 0.0
  %2459 = vmatpush1.msra.mxu0 0.0
  %2460 = vmatprep.subr.mxu0 0.0
  %2461 = vmatpush1.msra.mxu0 0.0
  %2462 = vmatprep.subr.mxu0 0.0
  %2463 = vmatpush1.msra.mxu0 0.0
  %2464 = vmatprep.subr.mxu0 0.0
  %2465 = vmatpush1.msra.mxu0 0.0
  %2466 = vmatprep.subr.mxu0 0.0
  %2467 = vmatpush1.msra.mxu0 0.0
  %2468 = vmatprep.subr.mxu0 0.0
  %2469 = vmatpush1.msra.mxu0 0.0
  %2470 = vmatprep.subr.mxu0 0.0
  %2471 = vmatpush1.msra.mxu0 0.0
  %2472 = vmatprep.subr.mxu0 0.0
  %2473 = vmatpush1.msra.mxu0 0.0
  %2474 = vmatprep.subr.mxu0 0.0
  %2475 = vmatpush1.msra.mxu0 0.0
  %2476 = vmatprep.subr.mxu0 0.0
  %2477 = vmatpush1.msra.mxu0 0.0
  %2478 = vmatprep.subr.mxu0 0.0
  %2479 = vmatpush1.msra.mxu0 0.0
  %2480 = vmatprep.subr.mxu0 0.0
  %2481 = vmatpush1.msra.mxu0 0.0
  %2482 = vmatprep.subr.mxu0 0.0
  %2483 = vmatpush1.msra.mxu0 0.0
  %2484 = vmatprep.subr.mxu0 0.0
  %2485 = vmatpush1.msra.mxu0 0.0
  %2486 = vmatprep.subr.mxu0 0.0
  %2487 = vmatpush1.msra.mxu0 0.0
  %2488 = vmatprep.subr.mxu0 0.0
  %2489 = vmatpush1.msra.mxu0 0.0
  %2490 = vmatprep.subr.mxu0 0.0
  %2491 = vmatpush1.msra.mxu0 0.0
  %2492 = vmatprep.subr.mxu0 0.0
  %2493 = vmatpush1.msra.mxu0 0.0
  %2494 = vmatprep.subr.mxu0 0.0
  %2495 = vmatpush1.msra.mxu0 0.0
  %2496 = vmatprep.subr.mxu0 0.0
  %2497 = vmatpush1.msra.mxu0 0.0
  %2498 = vmatprep.subr.mxu0 0.0
  %2499 = vmatpush1.msra.mxu0 0.0
  %2500 = vmatprep.subr.mxu0 0.0
  %2501 = vmatpush1.msra.mxu0 0.0
  %2502 = vmatprep.subr.mxu0 0.0
  %2503 = vmatpush1.msra.mxu0 0.0
  %2504 = vmatprep.subr.mxu0 0.0
  %2505 = vmatpush1.msra.mxu0 0.0
  %2506 = vmatprep.subr.mxu0 0.0
  %2507 = vmatpush1.msra.mxu0 0.0
  %2508 = vmatprep.subr.mxu0 0.0
  %2509 = vmatpush1.msra.mxu0 0.0
  %2510 = vmatprep.subr.mxu0 0.0
  %2511 = vmatpush1.msra.mxu0 0.0
  %2512 = vmatprep.subr.mxu0 0.0
  %2513 = vmatpush1.msra.mxu0 0.0
  %2514 = vmatprep.mubr.f32.mxu0 0.0
  %2515 = vmatmul.mubr.f32.gmra.mrb[0].mxu0 %v2448
  %v2516 = vpop.f32.mrb[0].mxu0
  %v2517 = vadd.f32 0.0, %v2516
  %v2518 = vpop.f32.mrb[0].mxu0
  %2519 = vdwg.mxu0
  %2520 = vrot.lane.b32.xlu0 %v2198, 120
  %v2521 = vpop.permute.xlu0 %2520
  %2522 = vrot.lane.b32.xlu0 %v2100, 120
  %v2523 = vpop.permute.xlu0 %2522
  %v2524 = vsel %vm448, %v2521, 0
  %v2526 = vsel %vm448, %v2523, 0
  %2528 = vmatprep.subr.mxu0 0.0
  %2529 = vmatpush1.xpose.msra.mxu0 %v2526
  %2530 = vmatprep.subr.mxu0 0.0
  %2531 = vmatpush1.xpose.msra.mxu0 0.0
  %2532 = vmatprep.subr.mxu0 0.0
  %2533 = vmatpush1.xpose.msra.mxu0 0.0
  %2534 = vmatprep.subr.mxu0 0.0
  %2535 = vmatpush1.xpose.msra.mxu0 0.0
  %2536 = vmatprep.subr.mxu0 0.0
  %2537 = vmatpush1.xpose.msra.mxu0 0.0
  %2538 = vmatprep.subr.mxu0 0.0
  %2539 = vmatpush1.xpose.msra.mxu0 0.0
  %2540 = vmatprep.subr.mxu0 0.0
  %2541 = vmatpush1.xpose.msra.mxu0 0.0
  %2542 = vmatprep.subr.mxu0 0.0
  %2543 = vmatpush1.xpose.msra.mxu0 0.0
  %2544 = vmatprep.subr.mxu0 0.0
  %2545 = vmatpush1.xpose.msra.mxu0 0.0
  %2546 = vmatprep.subr.mxu0 0.0
  %2547 = vmatpush1.xpose.msra.mxu0 0.0
  %2548 = vmatprep.subr.mxu0 0.0
  %2549 = vmatpush1.xpose.msra.mxu0 0.0
  %2550 = vmatprep.subr.mxu0 0.0
  %2551 = vmatpush1.xpose.msra.mxu0 0.0
  %2552 = vmatprep.subr.mxu0 0.0
  %2553 = vmatpush1.xpose.msra.mxu0 0.0
  %2554 = vmatprep.subr.mxu0 0.0
  %2555 = vmatpush1.xpose.msra.mxu0 0.0
  %2556 = vmatprep.subr.mxu0 0.0
  %2557 = vmatpush1.xpose.msra.mxu0 0.0
  %2558 = vmatprep.subr.mxu0 0.0
  %2559 = vmatpush1.xpose.msra.mxu0 0.0
  %2560 = vmatprep.subr.mxu0 0.0
  %2561 = vmatpush1.xpose.msra.mxu0 0.0
  %2562 = vmatprep.subr.mxu0 0.0
  %2563 = vmatpush1.xpose.msra.mxu0 0.0
  %2564 = vmatprep.subr.mxu0 0.0
  %2565 = vmatpush1.xpose.msra.mxu0 0.0
  %2566 = vmatprep.subr.mxu0 0.0
  %2567 = vmatpush1.xpose.msra.mxu0 0.0
  %2568 = vmatprep.subr.mxu0 0.0
  %2569 = vmatpush1.xpose.msra.mxu0 0.0
  %2570 = vmatprep.subr.mxu0 0.0
  %2571 = vmatpush1.xpose.msra.mxu0 0.0
  %2572 = vmatprep.subr.mxu0 0.0
  %2573 = vmatpush1.xpose.msra.mxu0 0.0
  %2574 = vmatprep.subr.mxu0 0.0
  %2575 = vmatpush1.xpose.msra.mxu0 0.0
  %2576 = vmatprep.subr.mxu0 0.0
  %2577 = vmatpush1.xpose.msra.mxu0 0.0
  %2578 = vmatprep.subr.mxu0 0.0
  %2579 = vmatpush1.xpose.msra.mxu0 0.0
  %2580 = vmatprep.subr.mxu0 0.0
  %2581 = vmatpush1.xpose.msra.mxu0 0.0
  %2582 = vmatprep.subr.mxu0 0.0
  %2583 = vmatpush1.xpose.msra.mxu0 0.0
  %2584 = vmatprep.subr.mxu0 0.0
  %2585 = vmatpush1.xpose.msra.mxu0 0.0
  %2586 = vmatprep.subr.mxu0 0.0
  %2587 = vmatpush1.xpose.msra.mxu0 0.0
  %2588 = vmatprep.subr.mxu0 0.0
  %2589 = vmatpush1.xpose.msra.mxu0 0.0
  %2590 = vmatprep.subr.mxu0 0.0
  %2591 = vmatpush1.xpose.msra.mxu0 0.0
  %2592 = vmatprep.mubr.f32.mxu0 0.0
  %2593 = vmatmul.mubr.f32.gmra.mrb[0].mxu0 %v2524
  %v2594 = vpop.f32.mrb[0].mxu0
  %v2595 = vadd.f32 %v266, %v2594
  %v2596 = vpop.f32.mrb[0].mxu0
  %2597 = vdwg.mxu0
  %2598 = vrot.lane.b32.xlu0 %v2199, 120
  %v2599 = vpop.permute.xlu0 %2598
  %2600 = vrot.lane.b32.xlu0 %v2105, 120
  %v2601 = vpop.permute.xlu0 %2600
  %v2602 = vsel %vm448, %v2599, 0
  %v2604 = vsel %vm448, %v2601, 0
  %2606 = vmatprep.subr.mxu0 0.0
  %2607 = vmatpush1.xpose.msra.mxu0 %v2604
  %2608 = vmatprep.subr.mxu0 0.0
  %2609 = vmatpush1.xpose.msra.mxu0 0.0
  %2610 = vmatprep.subr.mxu0 0.0
  %2611 = vmatpush1.xpose.msra.mxu0 0.0
  %2612 = vmatprep.subr.mxu0 0.0
  %2613 = vmatpush1.xpose.msra.mxu0 0.0
  %2614 = vmatprep.subr.mxu0 0.0
  %2615 = vmatpush1.xpose.msra.mxu0 0.0
  %2616 = vmatprep.subr.mxu0 0.0
  %2617 = vmatpush1.xpose.msra.mxu0 0.0
  %2618 = vmatprep.subr.mxu0 0.0
  %2619 = vmatpush1.xpose.msra.mxu0 0.0
  %2620 = vmatprep.subr.mxu0 0.0
  %2621 = vmatpush1.xpose.msra.mxu0 0.0
  %2622 = vmatprep.subr.mxu0 0.0
  %2623 = vmatpush1.xpose.msra.mxu0 0.0
  %2624 = vmatprep.subr.mxu0 0.0
  %2625 = vmatpush1.xpose.msra.mxu0 0.0
  %2626 = vmatprep.subr.mxu0 0.0
  %2627 = vmatpush1.xpose.msra.mxu0 0.0
  %2628 = vmatprep.subr.mxu0 0.0
  %2629 = vmatpush1.xpose.msra.mxu0 0.0
  %2630 = vmatprep.subr.mxu0 0.0
  %2631 = vmatpush1.xpose.msra.mxu0 0.0
  %2632 = vmatprep.subr.mxu0 0.0
  %2633 = vmatpush1.xpose.msra.mxu0 0.0
  %2634 = vmatprep.subr.mxu0 0.0
  %2635 = vmatpush1.xpose.msra.mxu0 0.0
  %2636 = vmatprep.subr.mxu0 0.0
  %2637 = vmatpush1.xpose.msra.mxu0 0.0
  %2638 = vmatprep.subr.mxu0 0.0
  %2639 = vmatpush1.xpose.msra.mxu0 0.0
  %2640 = vmatprep.subr.mxu0 0.0
  %2641 = vmatpush1.xpose.msra.mxu0 0.0
  %2642 = vmatprep.subr.mxu0 0.0
  %2643 = vmatpush1.xpose.msra.mxu0 0.0
  %2644 = vmatprep.subr.mxu0 0.0
  %2645 = vmatpush1.xpose.msra.mxu0 0.0
  %2646 = vmatprep.subr.mxu0 0.0
  %2647 = vmatpush1.xpose.msra.mxu0 0.0
  %2648 = vmatprep.subr.mxu0 0.0
  %2649 = vmatpush1.xpose.msra.mxu0 0.0
  %2650 = vmatprep.subr.mxu0 0.0
  %2651 = vmatpush1.xpose.msra.mxu0 0.0
  %2652 = vmatprep.subr.mxu0 0.0
  %2653 = vmatpush1.xpose.msra.mxu0 0.0
  %2654 = vmatprep.subr.mxu0 0.0
  %2655 = vmatpush1.xpose.msra.mxu0 0.0
  %2656 = vmatprep.subr.mxu0 0.0
  %2657 = vmatpush1.xpose.msra.mxu0 0.0
  %2658 = vmatprep.subr.mxu0 0.0
  %2659 = vmatpush1.xpose.msra.mxu0 0.0
  %2660 = vmatprep.subr.mxu0 0.0
  %2661 = vmatpush1.xpose.msra.mxu0 0.0
  %2662 = vmatprep.subr.mxu0 0.0
  %2663 = vmatpush1.xpose.msra.mxu0 0.0
  %2664 = vmatprep.subr.mxu0 0.0
  %2665 = vmatpush1.xpose.msra.mxu0 0.0
  %2666 = vmatprep.subr.mxu0 0.0
  %2667 = vmatpush1.xpose.msra.mxu0 0.0
  %2668 = vmatprep.subr.mxu0 0.0
  %2669 = vmatpush1.xpose.msra.mxu0 0.0
  %2670 = vmatprep.mubr.f32.mxu0 0.0
  %2671 = vmatmul.mubr.f32.gmra.mrb[0].mxu0 %v2602
  %v2672 = vpop.f32.mrb[0].mxu0
  %v2673 = vadd.f32 %v266, %v2672
  %v2674 = vpop.f32.mrb[0].mxu0
  %2675 = vdwg.mxu0
  %v2676 = vsel %vm448, %v2595, -inf
  %2677 = vmax.xlane.f32.xlu0 %v2676
  %v2678 = vpop.xlane.xlu0 %2677
  %v2679 = vsel %vm448, %v2673, -inf
  %2680 = vmax.xlane.f32.xlu0 %v2679
  %v2681 = vpop.xlane.xlu0 %2680
  %v2682 = vsub.f32 %v2595, %v2678
  %v2683 = vsub.f32 %v2673, %v2681
  %v2684 = vmul.f32 %v2682, 1.442695
  %v2685 = vpow.pop %v2684
  %v2686 = vmul.f32 %v2683, 1.442695
  %v2687 = vpow.pop %v2686
  %v2688 = vsel %vm448, %v2685, 0.0
  %2689 = vadd.xlane.f32.xlu0 %v2688
  %v2690 = vpop.xlane.xlu0 %2689
  %v2691 = vsel %vm448, %v2687, 0.0
  %2692 = vadd.xlane.f32.xlu0 %v2691
  %v2693 = vpop.xlane.xlu0 %2692
  %v2694 = vrcp.pop %v2690
  %v2695 = vrcp.pop %v2693
  %v2696 = vmul.f32 %v2685, %v2694
  %v2697 = vmul.f32 %v2687, %v2695
  %2699 = vrot.lane.b32.xlu0 %v2190, 120
  %v2700 = vpop.permute.xlu0 %2699
  %v2703 = vsel %vm448, %v2696, 0
  %2705 = vmatprep.subr.mxu0 0.0
  %2706 = vmatpush1.msra.mxu0 %v2700
  %2707 = vmatprep.subr.mxu0 0.0
  %2708 = vmatpush1.msra.mxu0 0.0
  %2709 = vmatprep.subr.mxu0 0.0
  %2710 = vmatpush1.msra.mxu0 0.0
  %2711 = vmatprep.subr.mxu0 0.0
  %2712 = vmatpush1.msra.mxu0 0.0
  %2713 = vmatprep.subr.mxu0 0.0
  %2714 = vmatpush1.msra.mxu0 0.0
  %2715 = vmatprep.subr.mxu0 0.0
  %2716 = vmatpush1.msra.mxu0 0.0
  %2717 = vmatprep.subr.mxu0 0.0
  %2718 = vmatpush1.msra.mxu0 0.0
  %2719 = vmatprep.subr.mxu0 0.0
  %2720 = vmatpush1.msra.mxu0 0.0
  %2721 = vmatprep.subr.mxu0 0.0
  %2722 = vmatpush1.msra.mxu0 0.0
  %2723 = vmatprep.subr.mxu0 0.0
  %2724 = vmatpush1.msra.mxu0 0.0
  %2725 = vmatprep.subr.mxu0 0.0
  %2726 = vmatpush1.msra.mxu0 0.0
  %2727 = vmatprep.subr.mxu0 0.0
  %2728 = vmatpush1.msra.mxu0 0.0
  %2729 = vmatprep.subr.mxu0 0.0
  %2730 = vmatpush1.msra.mxu0 0.0
  %2731 = vmatprep.subr.mxu0 0.0
  %2732 = vmatpush1.msra.mxu0 0.0
  %2733 = vmatprep.subr.mxu0 0.0
  %2734 = vmatpush1.msra.mxu0 0.0
  %2735 = vmatprep.subr.mxu0 0.0
  %2736 = vmatpush1.msra.mxu0 0.0
  %2737 = vmatprep.subr.mxu0 0.0
  %2738 = vmatpush1.msra.mxu0 0.0
  %2739 = vmatprep.subr.mxu0 0.0
  %2740 = vmatpush1.msra.mxu0 0.0
  %2741 = vmatprep.subr.mxu0 0.0
  %2742 = vmatpush1.msra.mxu0 0.0
  %2743 = vmatprep.subr.mxu0 0.0
  %2744 = vmatpush1.msra.mxu0 0.0
  %2745 = vmatprep.subr.mxu0 0.0
  %2746 = vmatpush1.msra.mxu0 0.0
  %2747 = vmatprep.subr.mxu0 0.0
  %2748 = vmatpush1.msra.mxu0 0.0
  %2749 = vmatprep.subr.mxu0 0.0
  %2750 = vmatpush1.msra.mxu0 0.0
  %2751 = vmatprep.subr.mxu0 0.0
  %2752 = vmatpush1.msra.mxu0 0.0
  %2753 = vmatprep.subr.mxu0 0.0
  %2754 = vmatpush1.msra.mxu0 0.0
  %2755 = vmatprep.subr.mxu0 0.0
  %2756 = vmatpush1.msra.mxu0 0.0
  %2757 = vmatprep.subr.mxu0 0.0
  %2758 = vmatpush1.msra.mxu0 0.0
  %2759 = vmatprep.subr.mxu0 0.0
  %2760 = vmatpush1.msra.mxu0 0.0
  %2761 = vmatprep.subr.mxu0 0.0
  %2762 = vmatpush1.msra.mxu0 0.0
  %2763 = vmatprep.subr.mxu0 0.0
  %2764 = vmatpush1.msra.mxu0 0.0
  %2765 = vmatprep.subr.mxu0 0.0
  %2766 = vmatpush1.msra.mxu0 0.0
  %2767 = vmatprep.subr.mxu0 0.0
  %2768 = vmatpush1.msra.mxu0 0.0
  %2769 = vmatprep.mubr.f32.mxu0 0.0
  %2770 = vmatmul.mubr.f32.gmra.mrb[0].mxu0 %v2703
  %v2771 = vpop.f32.mrb[0].mxu0
  %v2772 = vadd.f32 0.0, %v2771
  %v2773 = vpop.f32.mrb[0].mxu0
  %2774 = vdwg.mxu0
  %2776 = vrot.lane.b32.xlu0 %v2195, 120
  %v2777 = vpop.permute.xlu0 %2776
  %v2780 = vsel %vm448, %v2697, 0
  %2782 = vmatprep.subr.mxu0 0.0
  %2783 = vmatpush1.msra.mxu0 %v2777
  %2784 = vmatprep.subr.mxu0 0.0
  %2785 = vmatpush1.msra.mxu0 0.0
  %2786 = vmatprep.subr.mxu0 0.0
  %2787 = vmatpush1.msra.mxu0 0.0
  %2788 = vmatprep.subr.mxu0 0.0
  %2789 = vmatpush1.msra.mxu0 0.0
  %2790 = vmatprep.subr.mxu0 0.0
  %2791 = vmatpush1.msra.mxu0 0.0
  %2792 = vmatprep.subr.mxu0 0.0
  %2793 = vmatpush1.msra.mxu0 0.0
  %2794 = vmatprep.subr.mxu0 0.0
  %2795 = vmatpush1.msra.mxu0 0.0
  %2796 = vmatprep.subr.mxu0 0.0
  %2797 = vmatpush1.msra.mxu0 0.0
  %2798 = vmatprep.subr.mxu0 0.0
  %2799 = vmatpush1.msra.mxu0 0.0
  %2800 = vmatprep.subr.mxu0 0.0
  %2801 = vmatpush1.msra.mxu0 0.0
  %2802 = vmatprep.subr.mxu0 0.0
  %2803 = vmatpush1.msra.mxu0 0.0
  %2804 = vmatprep.subr.mxu0 0.0
  %2805 = vmatpush1.msra.mxu0 0.0
  %2806 = vmatprep.subr.mxu0 0.0
  %2807 = vmatpush1.msra.mxu0 0.0
  %2808 = vmatprep.subr.mxu0 0.0
  %2809 = vmatpush1.msra.mxu0 0.0
  %2810 = vmatprep.subr.mxu0 0.0
  %2811 = vmatpush1.msra.mxu0 0.0
  %2812 = vmatprep.subr.mxu0 0.0
  %2813 = vmatpush1.msra.mxu0 0.0
  %2814 = vmatprep.subr.mxu0 0.0
  %2815 = vmatpush1.msra.mxu0 0.0
  %2816 = vmatprep.subr.mxu0 0.0
  %2817 = vmatpush1.msra.mxu0 0.0
  %2818 = vmatprep.subr.mxu0 0.0
  %2819 = vmatpush1.msra.mxu0 0.0
  %2820 = vmatprep.subr.mxu0 0.0
  %2821 = vmatpush1.msra.mxu0 0.0
  %2822 = vmatprep.subr.mxu0 0.0
  %2823 = vmatpush1.msra.mxu0 0.0
  %2824 = vmatprep.subr.mxu0 0.0
  %2825 = vmatpush1.msra.mxu0 0.0
  %2826 = vmatprep.subr.mxu0 0.0
  %2827 = vmatpush1.msra.mxu0 0.0
  %2828 = vmatprep.subr.mxu0 0.0
  %2829 = vmatpush1.msra.mxu0 0.0
  %2830 = vmatprep.subr.mxu0 0.0
  %2831 = vmatpush1.msra.mxu0 0.0
  %2832 = vmatprep.subr.mxu0 0.0
  %2833 = vmatpush1.msra.mxu0 0.0
  %2834 = vmatprep.subr.mxu0 0.0
  %2835 = vmatpush1.msra.mxu0 0.0
  %2836 = vmatprep.subr.mxu0 0.0
  %2837 = vmatpush1.msra.mxu0 0.0
  %2838 = vmatprep.subr.mxu0 0.0
  %2839 = vmatpush1.msra.mxu0 0.0
  %2840 = vmatprep.subr.mxu0 0.0
  %2841 = vmatpush1.msra.mxu0 0.0
  %2842 = vmatprep.subr.mxu0 0.0
  %2843 = vmatpush1.msra.mxu0 0.0
  %2844 = vmatprep.subr.mxu0 0.0
  %2845 = vmatpush1.msra.mxu0 0.0
  %2846 = vmatprep.mubr.f32.mxu0 0.0
  %2847 = vmatmul.mubr.f32.gmra.mrb[0].mxu0 %v2780
  %v2848 = vpop.f32.mrb[0].mxu0
  %v2849 = vadd.f32 0.0, %v2848
  %v2850 = vpop.f32.mrb[0].mxu0
  %2851 = vdwg.mxu0
  %2852 = vrot.lane.b32.xlu0 %v2198, 112
  %v2853 = vpop.permute.xlu0 %2852
  %2854 = vrot.lane.b32.xlu0 %v2100, 112
  %v2855 = vpop.permute.xlu0 %2854
  %v2856 = vsel %vm448, %v2853, 0
  %v2858 = vsel %vm448, %v2855, 0
  %2860 = vmatprep.subr.mxu0 0.0
  %2861 = vmatpush1.xpose.msra.mxu0 %v2858
  %2862 = vmatprep.subr.mxu0 0.0
  %2863 = vmatpush1.xpose.msra.mxu0 0.0
  %2864 = vmatprep.subr.mxu0 0.0
  %2865 = vmatpush1.xpose.msra.mxu0 0.0
  %2866 = vmatprep.subr.mxu0 0.0
  %2867 = vmatpush1.xpose.msra.mxu0 0.0
  %2868 = vmatprep.subr.mxu0 0.0
  %2869 = vmatpush1.xpose.msra.mxu0 0.0
  %2870 = vmatprep.subr.mxu0 0.0
  %2871 = vmatpush1.xpose.msra.mxu0 0.0
  %2872 = vmatprep.subr.mxu0 0.0
  %2873 = vmatpush1.xpose.msra.mxu0 0.0
  %2874 = vmatprep.subr.mxu0 0.0
  %2875 = vmatpush1.xpose.msra.mxu0 0.0
  %2876 = vmatprep.subr.mxu0 0.0
  %2877 = vmatpush1.xpose.msra.mxu0 0.0
  %2878 = vmatprep.subr.mxu0 0.0
  %2879 = vmatpush1.xpose.msra.mxu0 0.0
  %2880 = vmatprep.subr.mxu0 0.0
  %2881 = vmatpush1.xpose.msra.mxu0 0.0
  %2882 = vmatprep.subr.mxu0 0.0
  %2883 = vmatpush1.xpose.msra.mxu0 0.0
  %2884 = vmatprep.subr.mxu0 0.0
  %2885 = vmatpush1.xpose.msra.mxu0 0.0
  %2886 = vmatprep.subr.mxu0 0.0
  %2887 = vmatpush1.xpose.msra.mxu0 0.0
  %2888 = vmatprep.subr.mxu0 0.0
  %2889 = vmatpush1.xpose.msra.mxu0 0.0
  %2890 = vmatprep.subr.mxu0 0.0
  %2891 = vmatpush1.xpose.msra.mxu0 0.0
  %2892 = vmatprep.subr.mxu0 0.0
  %2893 = vmatpush1.xpose.msra.mxu0 0.0
  %2894 = vmatprep.subr.mxu0 0.0
  %2895 = vmatpush1.xpose.msra.mxu0 0.0
  %2896 = vmatprep.subr.mxu0 0.0
  %2897 = vmatpush1.xpose.msra.mxu0 0.0
  %2898 = vmatprep.subr.mxu0 0.0
  %2899 = vmatpush1.xpose.msra.mxu0 0.0
  %2900 = vmatprep.subr.mxu0 0.0
  %2901 = vmatpush1.xpose.msra.mxu0 0.0
  %2902 = vmatprep.subr.mxu0 0.0
  %2903 = vmatpush1.xpose.msra.mxu0 0.0
  %2904 = vmatprep.subr.mxu0 0.0
  %2905 = vmatpush1.xpose.msra.mxu0 0.0
  %2906 = vmatprep.subr.mxu0 0.0
  %2907 = vmatpush1.xpose.msra.mxu0 0.0
  %2908 = vmatprep.subr.mxu0 0.0
  %2909 = vmatpush1.xpose.msra.mxu0 0.0
  %2910 = vmatprep.subr.mxu0 0.0
  %2911 = vmatpush1.xpose.msra.mxu0 0.0
  %2912 = vmatprep.subr.mxu0 0.0
  %2913 = vmatpush1.xpose.msra.mxu0 0.0
  %2914 = vmatprep.subr.mxu0 0.0
  %2915 = vmatpush1.xpose.msra.mxu0 0.0
  %2916 = vmatprep.subr.mxu0 0.0
  %2917 = vmatpush1.xpose.msra.mxu0 0.0
  %2918 = vmatprep.subr.mxu0 0.0
  %2919 = vmatpush1.xpose.msra.mxu0 0.0
  %2920 = vmatprep.subr.mxu0 0.0
  %2921 = vmatpush1.xpose.msra.mxu0 0.0
  %2922 = vmatprep.subr.mxu0 0.0
  %2923 = vmatpush1.xpose.msra.mxu0 0.0
  %2924 = vmatprep.mubr.f32.mxu0 0.0
  %2925 = vmatmul.mubr.f32.gmra.mrb[0].mxu0 %v2856
  %v2926 = vpop.f32.mrb[0].mxu0
  %v2927 = vadd.f32 %v266, %v2926
  %v2928 = vpop.f32.mrb[0].mxu0
  %2929 = vdwg.mxu0
  %2930 = vrot.lane.b32.xlu0 %v2199, 112
  %v2931 = vpop.permute.xlu0 %2930
  %2932 = vrot.lane.b32.xlu0 %v2105, 112
  %v2933 = vpop.permute.xlu0 %2932
  %v2934 = vsel %vm448, %v2931, 0
  %v2936 = vsel %vm448, %v2933, 0
  %2938 = vmatprep.subr.mxu0 0.0
  %2939 = vmatpush1.xpose.msra.mxu0 %v2936
  %2940 = vmatprep.subr.mxu0 0.0
  %2941 = vmatpush1.xpose.msra.mxu0 0.0
  %2942 = vmatprep.subr.mxu0 0.0
  %2943 = vmatpush1.xpose.msra.mxu0 0.0
  %2944 = vmatprep.subr.mxu0 0.0
  %2945 = vmatpush1.xpose.msra.mxu0 0.0
  %2946 = vmatprep.subr.mxu0 0.0
  %2947 = vmatpush1.xpose.msra.mxu0 0.0
  %2948 = vmatprep.subr.mxu0 0.0
  %2949 = vmatpush1.xpose.msra.mxu0 0.0
  %2950 = vmatprep.subr.mxu0 0.0
  %2951 = vmatpush1.xpose.msra.mxu0 0.0
  %2952 = vmatprep.subr.mxu0 0.0
  %2953 = vmatpush1.xpose.msra.mxu0 0.0
  %2954 = vmatprep.subr.mxu0 0.0
  %2955 = vmatpush1.xpose.msra.mxu0 0.0
  %2956 = vmatprep.subr.mxu0 0.0
  %2957 = vmatpush1.xpose.msra.mxu0 0.0
  %2958 = vmatprep.subr.mxu0 0.0
  %2959 = vmatpush1.xpose.msra.mxu0 0.0
  %2960 = vmatprep.subr.mxu0 0.0
  %2961 = vmatpush1.xpose.msra.mxu0 0.0
  %2962 = vmatprep.subr.mxu0 0.0
  %2963 = vmatpush1.xpose.msra.mxu0 0.0
  %2964 = vmatprep.subr.mxu0 0.0
  %2965 = vmatpush1.xpose.msra.mxu0 0.0
  %2966 = vmatprep.subr.mxu0 0.0
  %2967 = vmatpush1.xpose.msra.mxu0 0.0
  %2968 = vmatprep.subr.mxu0 0.0
  %2969 = vmatpush1.xpose.msra.mxu0 0.0
  %2970 = vmatprep.subr.mxu0 0.0
  %2971 = vmatpush1.xpose.msra.mxu0 0.0
  %2972 = vmatprep.subr.mxu0 0.0
  %2973 = vmatpush1.xpose.msra.mxu0 0.0
  %2974 = vmatprep.subr.mxu0 0.0
  %2975 = vmatpush1.xpose.msra.mxu0 0.0
  %2976 = vmatprep.subr.mxu0 0.0
  %2977 = vmatpush1.xpose.msra.mxu0 0.0
  %2978 = vmatprep.subr.mxu0 0.0
  %2979 = vmatpush1.xpose.msra.mxu0 0.0
  %2980 = vmatprep.subr.mxu0 0.0
  %2981 = vmatpush1.xpose.msra.mxu0 0.0
  %2982 = vmatprep.subr.mxu0 0.0
  %2983 = vmatpush1.xpose.msra.mxu0 0.0
  %2984 = vmatprep.subr.mxu0 0.0
  %2985 = vmatpush1.xpose.msra.mxu0 0.0
  %2986 = vmatprep.subr.mxu0 0.0
  %2987 = vmatpush1.xpose.msra.mxu0 0.0
  %2988 = vmatprep.subr.mxu0 0.0
  %2989 = vmatpush1.xpose.msra.mxu0 0.0
  %2990 = vmatprep.subr.mxu0 0.0
  %2991 = vmatpush1.xpose.msra.mxu0 0.0
  %2992 = vmatprep.subr.mxu0 0.0
  %2993 = vmatpush1.xpose.msra.mxu0 0.0
  %2994 = vmatprep.subr.mxu0 0.0
  %2995 = vmatpush1.xpose.msra.mxu0 0.0
  %2996 = vmatprep.subr.mxu0 0.0
  %2997 = vmatpush1.xpose.msra.mxu0 0.0
  %2998 = vmatprep.subr.mxu0 0.0
  %2999 = vmatpush1.xpose.msra.mxu0 0.0
  %3000 = vmatprep.subr.mxu0 0.0
  %3001 = vmatpush1.xpose.msra.mxu0 0.0
  %3002 = vmatprep.mubr.f32.mxu0 0.0
  %3003 = vmatmul.mubr.f32.gmra.mrb[0].mxu0 %v2934
  %v3004 = vpop.f32.mrb[0].mxu0
  %v3005 = vadd.f32 %v266, %v3004
  %v3006 = vpop.f32.mrb[0].mxu0
  %3007 = vdwg.mxu0
  %v3008 = vsel %vm448, %v2927, -inf
  %3009 = vmax.xlane.f32.xlu0 %v3008
  %v3010 = vpop.xlane.xlu0 %3009
  %v3011 = vsel %vm448, %v3005, -inf
  %3012 = vmax.xlane.f32.xlu0 %v3011
  %v3013 = vpop.xlane.xlu0 %3012
  %v3014 = vsub.f32 %v2927, %v3010
  %v3015 = vsub.f32 %v3005, %v3013
  %v3016 = vmul.f32 %v3014, 1.442695
  %v3017 = vpow.pop %v3016
  %v3018 = vmul.f32 %v3015, 1.442695
  %v3019 = vpow.pop %v3018
  %v3020 = vsel %vm448, %v3017, 0.0
  %3021 = vadd.xlane.f32.xlu0 %v3020
  %v3022 = vpop.xlane.xlu0 %3021
  %v3023 = vsel %vm448, %v3019, 0.0
  %3024 = vadd.xlane.f32.xlu0 %v3023
  %v3025 = vpop.xlane.xlu0 %3024
  %v3026 = vrcp.pop %v3022
  %v3027 = vrcp.pop %v3025
  %v3028 = vmul.f32 %v3017, %v3026
  %v3029 = vmul.f32 %v3019, %v3027
  %3030 = vrot.lane.b32.xlu0 %v2190, 112
  %v3031 = vpop.permute.xlu0 %3030
  %v3034 = vsel %vm448, %v3028, 0
  %3036 = vmatprep.subr.mxu0 0.0
  %3037 = vmatpush1.msra.mxu0 %v3031
  %3038 = vmatprep.subr.mxu0 0.0
  %3039 = vmatpush1.msra.mxu0 0.0
  %3040 = vmatprep.subr.mxu0 0.0
  %3041 = vmatpush1.msra.mxu0 0.0
  %3042 = vmatprep.subr.mxu0 0.0
  %3043 = vmatpush1.msra.mxu0 0.0
  %3044 = vmatprep.subr.mxu0 0.0
  %3045 = vmatpush1.msra.mxu0 0.0
  %3046 = vmatprep.subr.mxu0 0.0
  %3047 = vmatpush1.msra.mxu0 0.0
  %3048 = vmatprep.subr.mxu0 0.0
  %3049 = vmatpush1.msra.mxu0 0.0
  %3050 = vmatprep.subr.mxu0 0.0
  %3051 = vmatpush1.msra.mxu0 0.0
  %3052 = vmatprep.subr.mxu0 0.0
  %3053 = vmatpush1.msra.mxu0 0.0
  %3054 = vmatprep.subr.mxu0 0.0
  %3055 = vmatpush1.msra.mxu0 0.0
  %3056 = vmatprep.subr.mxu0 0.0
  %3057 = vmatpush1.msra.mxu0 0.0
  %3058 = vmatprep.subr.mxu0 0.0
  %3059 = vmatpush1.msra.mxu0 0.0
  %3060 = vmatprep.subr.mxu0 0.0
  %3061 = vmatpush1.msra.mxu0 0.0
  %3062 = vmatprep.subr.mxu0 0.0
  %3063 = vmatpush1.msra.mxu0 0.0
  %3064 = vmatprep.subr.mxu0 0.0
  %3065 = vmatpush1.msra.mxu0 0.0
  %3066 = vmatprep.subr.mxu0 0.0
  %3067 = vmatpush1.msra.mxu0 0.0
  %3068 = vmatprep.subr.mxu0 0.0
  %3069 = vmatpush1.msra.mxu0 0.0
  %3070 = vmatprep.subr.mxu0 0.0
  %3071 = vmatpush1.msra.mxu0 0.0
  %3072 = vmatprep.subr.mxu0 0.0
  %3073 = vmatpush1.msra.mxu0 0.0
  %3074 = vmatprep.subr.mxu0 0.0
  %3075 = vmatpush1.msra.mxu0 0.0
  %3076 = vmatprep.subr.mxu0 0.0
  %3077 = vmatpush1.msra.mxu0 0.0
  %3078 = vmatprep.subr.mxu0 0.0
  %3079 = vmatpush1.msra.mxu0 0.0
  %3080 = vmatprep.subr.mxu0 0.0
  %3081 = vmatpush1.msra.mxu0 0.0
  %3082 = vmatprep.subr.mxu0 0.0
  %3083 = vmatpush1.msra.mxu0 0.0
  %3084 = vmatprep.subr.mxu0 0.0
  %3085 = vmatpush1.msra.mxu0 0.0
  %3086 = vmatprep.subr.mxu0 0.0
  %3087 = vmatpush1.msra.mxu0 0.0
  %3088 = vmatprep.subr.mxu0 0.0
  %3089 = vmatpush1.msra.mxu0 0.0
  %3090 = vmatprep.subr.mxu0 0.0
  %3091 = vmatpush1.msra.mxu0 0.0
  %3092 = vmatprep.subr.mxu0 0.0
  %3093 = vmatpush1.msra.mxu0 0.0
  %3094 = vmatprep.subr.mxu0 0.0
  %3095 = vmatpush1.msra.mxu0 0.0
  %3096 = vmatprep.subr.mxu0 0.0
  %3097 = vmatpush1.msra.mxu0 0.0
  %3098 = vmatprep.subr.mxu0 0.0
  %3099 = vmatpush1.msra.mxu0 0.0
  %3100 = vmatprep.mubr.f32.mxu0 0.0
  %3101 = vmatmul.mubr.f32.gmra.mrb[0].mxu0 %v3034
  %v3102 = vpop.f32.mrb[0].mxu0
  %v3103 = vadd.f32 0.0, %v3102
  %v3104 = vpop.f32.mrb[0].mxu0
  %3105 = vdwg.mxu0
  %3106 = vrot.lane.b32.xlu0 %v2195, 112
  %v3107 = vpop.permute.xlu0 %3106
  %v3110 = vsel %vm448, %v3029, 0
  %3112 = vmatprep.subr.mxu0 0.0
  %3113 = vmatpush1.msra.mxu0 %v3107
  %3114 = vmatprep.subr.mxu0 0.0
  %3115 = vmatpush1.msra.mxu0 0.0
  %3116 = vmatprep.subr.mxu0 0.0
  %3117 = vmatpush1.msra.mxu0 0.0
  %3118 = vmatprep.subr.mxu0 0.0
  %3119 = vmatpush1.msra.mxu0 0.0
  %3120 = vmatprep.subr.mxu0 0.0
  %3121 = vmatpush1.msra.mxu0 0.0
  %3122 = vmatprep.subr.mxu0 0.0
  %3123 = vmatpush1.msra.mxu0 0.0
  %3124 = vmatprep.subr.mxu0 0.0
  %3125 = vmatpush1.msra.mxu0 0.0
  %3126 = vmatprep.subr.mxu0 0.0
  %3127 = vmatpush1.msra.mxu0 0.0
  %3128 = vmatprep.subr.mxu0 0.0
  %3129 = vmatpush1.msra.mxu0 0.0
  %3130 = vmatprep.subr.mxu0 0.0
  %3131 = vmatpush1.msra.mxu0 0.0
  %3132 = vmatprep.subr.mxu0 0.0
  %3133 = vmatpush1.msra.mxu0 0.0
  %3134 = vmatprep.subr.mxu0 0.0
  %3135 = vmatpush1.msra.mxu0 0.0
  %3136 = vmatprep.subr.mxu0 0.0
  %3137 = vmatpush1.msra.mxu0 0.0
  %3138 = vmatprep.subr.mxu0 0.0
  %3139 = vmatpush1.msra.mxu0 0.0
  %3140 = vmatprep.subr.mxu0 0.0
  %3141 = vmatpush1.msra.mxu0 0.0
  %3142 = vmatprep.subr.mxu0 0.0
  %3143 = vmatpush1.msra.mxu0 0.0
  %3144 = vmatprep.subr.mxu0 0.0
  %3145 = vmatpush1.msra.mxu0 0.0
  %3146 = vmatprep.subr.mxu0 0.0
  %3147 = vmatpush1.msra.mxu0 0.0
  %3148 = vmatprep.subr.mxu0 0.0
  %3149 = vmatpush1.msra.mxu0 0.0
  %3150 = vmatprep.subr.mxu0 0.0
  %3151 = vmatpush1.msra.mxu0 0.0
  %3152 = vmatprep.subr.mxu0 0.0
  %3153 = vmatpush1.msra.mxu0 0.0
  %3154 = vmatprep.subr.mxu0 0.0
  %3155 = vmatpush1.msra.mxu0 0.0
  %3156 = vmatprep.subr.mxu0 0.0
  %3157 = vmatpush1.msra.mxu0 0.0
  %3158 = vmatprep.subr.mxu0 0.0
  %3159 = vmatpush1.msra.mxu0 0.0
  %3160 = vmatprep.subr.mxu0 0.0
  %3161 = vmatpush1.msra.mxu0 0.0
  %3162 = vmatprep.subr.mxu0 0.0
  %3163 = vmatpush1.msra.mxu0 0.0
  %3164 = vmatprep.subr.mxu0 0.0
  %3165 = vmatpush1.msra.mxu0 0.0
  %3166 = vmatprep.subr.mxu0 0.0
  %3167 = vmatpush1.msra.mxu0 0.0
  %3168 = vmatprep.subr.mxu0 0.0
  %3169 = vmatpush1.msra.mxu0 0.0
  %3170 = vmatprep.subr.mxu0 0.0
  %3171 = vmatpush1.msra.mxu0 0.0
  %3172 = vmatprep.subr.mxu0 0.0
  %3173 = vmatpush1.msra.mxu0 0.0
  %3174 = vmatprep.subr.mxu0 0.0
  %3175 = vmatpush1.msra.mxu0 0.0
  %3176 = vmatprep.mubr.f32.mxu0 0.0
  %3177 = vmatmul.mubr.f32.gmra.mrb[0].mxu0 %v3110
  %v3178 = vpop.f32.mrb[0].mxu0
  %v3179 = vadd.f32 0.0, %v3178
  %v3180 = vpop.f32.mrb[0].mxu0
  %3181 = vdwg.mxu0
  %3182 = vrot.lane.b32.xlu0 %v2198, 104
  %v3183 = vpop.permute.xlu0 %3182
  %3184 = vrot.lane.b32.xlu0 %v2100, 104
  %v3185 = vpop.permute.xlu0 %3184
  %v3186 = vsel %vm448, %v3183, 0
  %v3188 = vsel %vm448, %v3185, 0
  %3190 = vmatprep.subr.mxu0 0.0
  %3191 = vmatpush1.xpose.msra.mxu0 %v3188
  %3192 = vmatprep.subr.mxu0 0.0
  %3193 = vmatpush1.xpose.msra.mxu0 0.0
  %3194 = vmatprep.subr.mxu0 0.0
  %3195 = vmatpush1.xpose.msra.mxu0 0.0
  %3196 = vmatprep.subr.mxu0 0.0
  %3197 = vmatpush1.xpose.msra.mxu0 0.0
  %3198 = vmatprep.subr.mxu0 0.0
  %3199 = vmatpush1.xpose.msra.mxu0 0.0
  %3200 = vmatprep.subr.mxu0 0.0
  %3201 = vmatpush1.xpose.msra.mxu0 0.0
  %3202 = vmatprep.subr.mxu0 0.0
  %3203 = vmatpush1.xpose.msra.mxu0 0.0
  %3204 = vmatprep.subr.mxu0 0.0
  %3205 = vmatpush1.xpose.msra.mxu0 0.0
  %3206 = vmatprep.subr.mxu0 0.0
  %3207 = vmatpush1.xpose.msra.mxu0 0.0
  %3208 = vmatprep.subr.mxu0 0.0
  %3209 = vmatpush1.xpose.msra.mxu0 0.0
  %3210 = vmatprep.subr.mxu0 0.0
  %3211 = vmatpush1.xpose.msra.mxu0 0.0
  %3212 = vmatprep.subr.mxu0 0.0
  %3213 = vmatpush1.xpose.msra.mxu0 0.0
  %3214 = vmatprep.subr.mxu0 0.0
  %3215 = vmatpush1.xpose.msra.mxu0 0.0
  %3216 = vmatprep.subr.mxu0 0.0
  %3217 = vmatpush1.xpose.msra.mxu0 0.0
  %3218 = vmatprep.subr.mxu0 0.0
  %3219 = vmatpush1.xpose.msra.mxu0 0.0
  %3220 = vmatprep.subr.mxu0 0.0
  %3221 = vmatpush1.xpose.msra.mxu0 0.0
  %3222 = vmatprep.subr.mxu0 0.0
  %3223 = vmatpush1.xpose.msra.mxu0 0.0
  %3224 = vmatprep.subr.mxu0 0.0
  %3225 = vmatpush1.xpose.msra.mxu0 0.0
  %3226 = vmatprep.subr.mxu0 0.0
  %3227 = vmatpush1.xpose.msra.mxu0 0.0
  %3228 = vmatprep.subr.mxu0 0.0
  %3229 = vmatpush1.xpose.msra.mxu0 0.0
  %3230 = vmatprep.subr.mxu0 0.0
  %3231 = vmatpush1.xpose.msra.mxu0 0.0
  %3232 = vmatprep.subr.mxu0 0.0
  %3233 = vmatpush1.xpose.msra.mxu0 0.0
  %3234 = vmatprep.subr.mxu0 0.0
  %3235 = vmatpush1.xpose.msra.mxu0 0.0
  %3236 = vmatprep.subr.mxu0 0.0
  %3237 = vmatpush1.xpose.msra.mxu0 0.0
  %3238 = vmatprep.subr.mxu0 0.0
  %3239 = vmatpush1.xpose.msra.mxu0 0.0
  %3240 = vmatprep.subr.mxu0 0.0
  %3241 = vmatpush1.xpose.msra.mxu0 0.0
  %3242 = vmatprep.subr.mxu0 0.0
  %3243 = vmatpush1.xpose.msra.mxu0 0.0
  %3244 = vmatprep.subr.mxu0 0.0
  %3245 = vmatpush1.xpose.msra.mxu0 0.0
  %3246 = vmatprep.subr.mxu0 0.0
  %3247 = vmatpush1.xpose.msra.mxu0 0.0
  %3248 = vmatprep.subr.mxu0 0.0
  %3249 = vmatpush1.xpose.msra.mxu0 0.0
  %3250 = vmatprep.subr.mxu0 0.0
  %3251 = vmatpush1.xpose.msra.mxu0 0.0
  %3252 = vmatprep.subr.mxu0 0.0
  %3253 = vmatpush1.xpose.msra.mxu0 0.0
  %3254 = vmatprep.mubr.f32.mxu0 0.0
  %3255 = vmatmul.mubr.f32.gmra.mrb[0].mxu0 %v3186
  %v3256 = vpop.f32.mrb[0].mxu0
  %v3257 = vadd.f32 %v266, %v3256
  %v3258 = vpop.f32.mrb[0].mxu0
  %3259 = vdwg.mxu0
  %3260 = vrot.lane.b32.xlu0 %v2199, 104
  %v3261 = vpop.permute.xlu0 %3260
  %3262 = vrot.lane.b32.xlu0 %v2105, 104
  %v3263 = vpop.permute.xlu0 %3262
  %v3264 = vsel %vm448, %v3261, 0
  %v3266 = vsel %vm448, %v3263, 0
  %3268 = vmatprep.subr.mxu0 0.0
  %3269 = vmatpush1.xpose.msra.mxu0 %v3266
  %3270 = vmatprep.subr.mxu0 0.0
  %3271 = vmatpush1.xpose.msra.mxu0 0.0
  %3272 = vmatprep.subr.mxu0 0.0
  %3273 = vmatpush1.xpose.msra.mxu0 0.0
  %3274 = vmatprep.subr.mxu0 0.0
  %3275 = vmatpush1.xpose.msra.mxu0 0.0
  %3276 = vmatprep.subr.mxu0 0.0
  %3277 = vmatpush1.xpose.msra.mxu0 0.0
  %3278 = vmatprep.subr.mxu0 0.0
  %3279 = vmatpush1.xpose.msra.mxu0 0.0
  %3280 = vmatprep.subr.mxu0 0.0
  %3281 = vmatpush1.xpose.msra.mxu0 0.0
  %3282 = vmatprep.subr.mxu0 0.0
  %3283 = vmatpush1.xpose.msra.mxu0 0.0
  %3284 = vmatprep.subr.mxu0 0.0
  %3285 = vmatpush1.xpose.msra.mxu0 0.0
  %3286 = vmatprep.subr.mxu0 0.0
  %3287 = vmatpush1.xpose.msra.mxu0 0.0
  %3288 = vmatprep.subr.mxu0 0.0
  %3289 = vmatpush1.xpose.msra.mxu0 0.0
  %3290 = vmatprep.subr.mxu0 0.0
  %3291 = vmatpush1.xpose.msra.mxu0 0.0
  %3292 = vmatprep.subr.mxu0 0.0
  %3293 = vmatpush1.xpose.msra.mxu0 0.0
  %3294 = vmatprep.subr.mxu0 0.0
  %3295 = vmatpush1.xpose.msra.mxu0 0.0
  %3296 = vmatprep.subr.mxu0 0.0
  %3297 = vmatpush1.xpose.msra.mxu0 0.0
  %3298 = vmatprep.subr.mxu0 0.0
  %3299 = vmatpush1.xpose.msra.mxu0 0.0
  %3300 = vmatprep.subr.mxu0 0.0
  %3301 = vmatpush1.xpose.msra.mxu0 0.0
  %3302 = vmatprep.subr.mxu0 0.0
  %3303 = vmatpush1.xpose.msra.mxu0 0.0
  %3304 = vmatprep.subr.mxu0 0.0
  %3305 = vmatpush1.xpose.msra.mxu0 0.0
  %3306 = vmatprep.subr.mxu0 0.0
  %3307 = vmatpush1.xpose.msra.mxu0 0.0
  %3308 = vmatprep.subr.mxu0 0.0
  %3309 = vmatpush1.xpose.msra.mxu0 0.0
  %3310 = vmatprep.subr.mxu0 0.0
  %3311 = vmatpush1.xpose.msra.mxu0 0.0
  %3312 = vmatprep.subr.mxu0 0.0
  %3313 = vmatpush1.xpose.msra.mxu0 0.0
  %3314 = vmatprep.subr.mxu0 0.0
  %3315 = vmatpush1.xpose.msra.mxu0 0.0
  %3316 = vmatprep.subr.mxu0 0.0
  %3317 = vmatpush1.xpose.msra.mxu0 0.0
  %3318 = vmatprep.subr.mxu0 0.0
  %3319 = vmatpush1.xpose.msra.mxu0 0.0
  %3320 = vmatprep.subr.mxu0 0.0
  %3321 = vmatpush1.xpose.msra.mxu0 0.0
  %3322 = vmatprep.subr.mxu0 0.0
  %3323 = vmatpush1.xpose.msra.mxu0 0.0
  %3324 = vmatprep.subr.mxu0 0.0
  %3325 = vmatpush1.xpose.msra.mxu0 0.0
  %3326 = vmatprep.subr.mxu0 0.0
  %3327 = vmatpush1.xpose.msra.mxu0 0.0
  %3328 = vmatprep.subr.mxu0 0.0
  %3329 = vmatpush1.xpose.msra.mxu0 0.0
  %3330 = vmatprep.subr.mxu0 0.0
  %3331 = vmatpush1.xpose.msra.mxu0 0.0
  %3332 = vmatprep.mubr.f32.mxu0 0.0
  %3333 = vmatmul.mubr.f32.gmra.mrb[0].mxu0 %v3264
  %v3334 = vpop.f32.mrb[0].mxu0
  %v3335 = vadd.f32 %v266, %v3334
  %v3336 = vpop.f32.mrb[0].mxu0
  %3337 = vdwg.mxu0
  %v3338 = vsel %vm448, %v3257, -inf
  %3339 = vmax.xlane.f32.xlu0 %v3338
  %v3340 = vpop.xlane.xlu0 %3339
  %v3341 = vsel %vm448, %v3335, -inf
  %3342 = vmax.xlane.f32.xlu0 %v3341
  %v3343 = vpop.xlane.xlu0 %3342
  %v3344 = vsub.f32 %v3257, %v3340
  %v3345 = vsub.f32 %v3335, %v3343
  %v3346 = vmul.f32 %v3344, 1.442695
  %v3347 = vpow.pop %v3346
  %v3348 = vmul.f32 %v3345, 1.442695
  %v3349 = vpow.pop %v3348
  %v3350 = vsel %vm448, %v3347, 0.0
  %3351 = vadd.xlane.f32.xlu0 %v3350
  %v3352 = vpop.xlane.xlu0 %3351
  %v3353 = vsel %vm448, %v3349, 0.0
  %3354 = vadd.xlane.f32.xlu0 %v3353
  %v3355 = vpop.xlane.xlu0 %3354
  %v3356 = vrcp.pop %v3352
  %v3357 = vrcp.pop %v3355
  %v3358 = vmul.f32 %v3347, %v3356
  %v3359 = vmul.f32 %v3349, %v3357
  %3360 = vrot.lane.b32.xlu0 %v2190, 104
  %v3361 = vpop.permute.xlu0 %3360
  %v3364 = vsel %vm448, %v3358, 0
  %3366 = vmatprep.subr.mxu0 0.0
  %3367 = vmatpush1.msra.mxu0 %v3361
  %3368 = vmatprep.subr.mxu0 0.0
  %3369 = vmatpush1.msra.mxu0 0.0
  %3370 = vmatprep.subr.mxu0 0.0
  %3371 = vmatpush1.msra.mxu0 0.0
  %3372 = vmatprep.subr.mxu0 0.0
  %3373 = vmatpush1.msra.mxu0 0.0
  %3374 = vmatprep.subr.mxu0 0.0
  %3375 = vmatpush1.msra.mxu0 0.0
  %3376 = vmatprep.subr.mxu0 0.0
  %3377 = vmatpush1.msra.mxu0 0.0
  %3378 = vmatprep.subr.mxu0 0.0
  %3379 = vmatpush1.msra.mxu0 0.0
  %3380 = vmatprep.subr.mxu0 0.0
  %3381 = vmatpush1.msra.mxu0 0.0
  %3382 = vmatprep.subr.mxu0 0.0
  %3383 = vmatpush1.msra.mxu0 0.0
  %3384 = vmatprep.subr.mxu0 0.0
  %3385 = vmatpush1.msra.mxu0 0.0
  %3386 = vmatprep.subr.mxu0 0.0
  %3387 = vmatpush1.msra.mxu0 0.0
  %3388 = vmatprep.subr.mxu0 0.0
  %3389 = vmatpush1.msra.mxu0 0.0
  %3390 = vmatprep.subr.mxu0 0.0
  %3391 = vmatpush1.msra.mxu0 0.0
  %3392 = vmatprep.subr.mxu0 0.0
  %3393 = vmatpush1.msra.mxu0 0.0
  %3394 = vmatprep.subr.mxu0 0.0
  %3395 = vmatpush1.msra.mxu0 0.0
  %3396 = vmatprep.subr.mxu0 0.0
  %3397 = vmatpush1.msra.mxu0 0.0
  %3398 = vmatprep.subr.mxu0 0.0
  %3399 = vmatpush1.msra.mxu0 0.0
  %3400 = vmatprep.subr.mxu0 0.0
  %3401 = vmatpush1.msra.mxu0 0.0
  %3402 = vmatprep.subr.mxu0 0.0
  %3403 = vmatpush1.msra.mxu0 0.0
  %3404 = vmatprep.subr.mxu0 0.0
  %3405 = vmatpush1.msra.mxu0 0.0
  %3406 = vmatprep.subr.mxu0 0.0
  %3407 = vmatpush1.msra.mxu0 0.0
  %3408 = vmatprep.subr.mxu0 0.0
  %3409 = vmatpush1.msra.mxu0 0.0
  %3410 = vmatprep.subr.mxu0 0.0
  %3411 = vmatpush1.msra.mxu0 0.0
  %3412 = vmatprep.subr.mxu0 0.0
  %3413 = vmatpush1.msra.mxu0 0.0
  %3414 = vmatprep.subr.mxu0 0.0
  %3415 = vmatpush1.msra.mxu0 0.0
  %3416 = vmatprep.subr.mxu0 0.0
  %3417 = vmatpush1.msra.mxu0 0.0
  %3418 = vmatprep.subr.mxu0 0.0
  %3419 = vmatpush1.msra.mxu0 0.0
  %3420 = vmatprep.subr.mxu0 0.0
  %3421 = vmatpush1.msra.mxu0 0.0
  %3422 = vmatprep.subr.mxu0 0.0
  %3423 = vmatpush1.msra.mxu0 0.0
  %3424 = vmatprep.subr.mxu0 0.0
  %3425 = vmatpush1.msra.mxu0 0.0
  %3426 = vmatprep.subr.mxu0 0.0
  %3427 = vmatpush1.msra.mxu0 0.0
  %3428 = vmatprep.subr.mxu0 0.0
  %3429 = vmatpush1.msra.mxu0 0.0
  %3430 = vmatprep.mubr.f32.mxu0 0.0
  %3431 = vmatmul.mubr.f32.gmra.mrb[0].mxu0 %v3364
  %v3432 = vpop.f32.mrb[0].mxu0
  %v3433 = vadd.f32 0.0, %v3432
  %v3434 = vpop.f32.mrb[0].mxu0
  %3435 = vdwg.mxu0
  %3436 = vrot.lane.b32.xlu0 %v2195, 104
  %v3437 = vpop.permute.xlu0 %3436
  %v3440 = vsel %vm448, %v3359, 0
  %3442 = vmatprep.subr.mxu0 0.0
  %3443 = vmatpush1.msra.mxu0 %v3437
  %3444 = vmatprep.subr.mxu0 0.0
  %3445 = vmatpush1.msra.mxu0 0.0
  %3446 = vmatprep.subr.mxu0 0.0
  %3447 = vmatpush1.msra.mxu0 0.0
  %3448 = vmatprep.subr.mxu0 0.0
  %3449 = vmatpush1.msra.mxu0 0.0
  %3450 = vmatprep.subr.mxu0 0.0
  %3451 = vmatpush1.msra.mxu0 0.0
  %3452 = vmatprep.subr.mxu0 0.0
  %3453 = vmatpush1.msra.mxu0 0.0
  %3454 = vmatprep.subr.mxu0 0.0
  %3455 = vmatpush1.msra.mxu0 0.0
  %3456 = vmatprep.subr.mxu0 0.0
  %3457 = vmatpush1.msra.mxu0 0.0
  %3458 = vmatprep.subr.mxu0 0.0
  %3459 = vmatpush1.msra.mxu0 0.0
  %3460 = vmatprep.subr.mxu0 0.0
  %3461 = vmatpush1.msra.mxu0 0.0
  %3462 = vmatprep.subr.mxu0 0.0
  %3463 = vmatpush1.msra.mxu0 0.0
  %3464 = vmatprep.subr.mxu0 0.0
  %3465 = vmatpush1.msra.mxu0 0.0
  %3466 = vmatprep.subr.mxu0 0.0
  %3467 = vmatpush1.msra.mxu0 0.0
  %3468 = vmatprep.subr.mxu0 0.0
  %3469 = vmatpush1.msra.mxu0 0.0
  %3470 = vmatprep.subr.mxu0 0.0
  %3471 = vmatpush1.msra.mxu0 0.0
  %3472 = vmatprep.subr.mxu0 0.0
  %3473 = vmatpush1.msra.mxu0 0.0
  %3474 = vmatprep.subr.mxu0 0.0
  %3475 = vmatpush1.msra.mxu0 0.0
  %3476 = vmatprep.subr.mxu0 0.0
  %3477 = vmatpush1.msra.mxu0 0.0
  %3478 = vmatprep.subr.mxu0 0.0
  %3479 = vmatpush1.msra.mxu0 0.0
  %3480 = vmatprep.subr.mxu0 0.0
  %3481 = vmatpush1.msra.mxu0 0.0
  %3482 = vmatprep.subr.mxu0 0.0
  %3483 = vmatpush1.msra.mxu0 0.0
  %3484 = vmatprep.subr.mxu0 0.0
  %3485 = vmatpush1.msra.mxu0 0.0
  %3486 = vmatprep.subr.mxu0 0.0
  %3487 = vmatpush1.msra.mxu0 0.0
  %3488 = vmatprep.subr.mxu0 0.0
  %3489 = vmatpush1.msra.mxu0 0.0
  %3490 = vmatprep.subr.mxu0 0.0
  %3491 = vmatpush1.msra.mxu0 0.0
  %3492 = vmatprep.subr.mxu0 0.0
  %3493 = vmatpush1.msra.mxu0 0.0
  %3494 = vmatprep.subr.mxu0 0.0
  %3495 = vmatpush1.msra.mxu0 0.0
  %3496 = vmatprep.subr.mxu0 0.0
  %3497 = vmatpush1.msra.mxu0 0.0
  %3498 = vmatprep.subr.mxu0 0.0
  %3499 = vmatpush1.msra.mxu0 0.0
  %3500 = vmatprep.subr.mxu0 0.0
  %3501 = vmatpush1.msra.mxu0 0.0
  %3502 = vmatprep.subr.mxu0 0.0
  %3503 = vmatpush1.msra.mxu0 0.0
  %3504 = vmatprep.subr.mxu0 0.0
  %3505 = vmatpush1.msra.mxu0 0.0
  %3506 = vmatprep.mubr.f32.mxu0 0.0
  %3507 = vmatmul.mubr.f32.gmra.mrb[0].mxu0 %v3440
  %v3508 = vpop.f32.mrb[0].mxu0
  %v3509 = vadd.f32 0.0, %v3508
  %v3510 = vpop.f32.mrb[0].mxu0
  %3511 = vdwg.mxu0
  %3514 = vrot.lane.b32.xlu0 %v2772, 8
  %v3515 = vpop.permute.xlu0 %3514
  %3516 = vrot.lane.b32.xlu0 %v2849, 8
  %v3517 = vpop.permute.xlu0 %3516
  %3522 = vrot.lane.b32.xlu0 %v3103, 16
  %v3523 = vpop.permute.xlu0 %3522
  %3524 = vrot.lane.b32.xlu0 %v3179, 16
  %v3525 = vpop.permute.xlu0 %3524
  %3530 = vrot.lane.b32.xlu0 %v3433, 24
  %v3531 = vpop.permute.xlu0 %3530
  %3532 = vrot.lane.b32.xlu0 %v3509, 24
  %v3533 = vpop.permute.xlu0 %3532
  %v3536 = vsel %vm448, %v2444, %v3515
  %v3537 = vsel %vm448, %v2517, %v3517
  %v3538 = vsel %vm1788, %v3536, %v3523
  %v3539 = vsel %vm1788, %v3537, %v3525
  %v3540 = vsel %vm1791, %v3538, %v3531
  %v3541 = vsel %vm1791, %v3539, %v3533
  %v3542 = vld [vmem:[%s2 + $0x260] sm:$0xff]
  %v3543 = vld [vmem:[%s2 + $0x268] sm:$0xff]
  %v3544 = vld [vmem:[%s2 + $0x270] sm:$0xff]
  %v3545 = vld [vmem:[%s2 + $0x278] sm:$0xff]
  %v3546 = vld [vmem:[%s2 + $0x280] sm:$0x1]
  %v3547 = vlaneseq
  %v3548 = vshrl.u32 %v3547, 7
  %v3549 = vsub.s32 0, %v3548
  %v3550 = vrot.slane %v3546, %v3549
  %v3552 = vsel %vm220, %v3540, 0
  %v3555 = vsel %vm220, %v3541, 0
  %3557 = vmatprep.subr.mxu0 0.0
  %3558 = vmatpush1.msra.mxu0 %v3542
  %3559 = vmatprep.subr.mxu0 0.0
  %3560 = vmatpush1.msra.mxu0 %v3543
  %3561 = vmatprep.subr.mxu0 0.0
  %3562 = vmatpush1.msra.mxu0 %v3544
  %3563 = vmatprep.subr.mxu0 0.0
  %3564 = vmatpush1.msra.mxu0 %v3545
  %3565 = vmatprep.subr.mxu0 0.0
  %3566 = vmatpush1.msra.mxu0 0.0
  %3567 = vmatprep.subr.mxu0 0.0
  %3568 = vmatpush1.msra.mxu0 0.0
  %3569 = vmatprep.subr.mxu0 0.0
  %3570 = vmatpush1.msra.mxu0 0.0
  %3571 = vmatprep.subr.mxu0 0.0
  %3572 = vmatpush1.msra.mxu0 0.0
  %3573 = vmatprep.subr.mxu0 0.0
  %3574 = vmatpush1.msra.mxu0 0.0
  %3575 = vmatprep.subr.mxu0 0.0
  %3576 = vmatpush1.msra.mxu0 0.0
  %3577 = vmatprep.subr.mxu0 0.0
  %3578 = vmatpush1.msra.mxu0 0.0
  %3579 = vmatprep.subr.mxu0 0.0
  %3580 = vmatpush1.msra.mxu0 0.0
  %3581 = vmatprep.subr.mxu0 0.0
  %3582 = vmatpush1.msra.mxu0 0.0
  %3583 = vmatprep.subr.mxu0 0.0
  %3584 = vmatpush1.msra.mxu0 0.0
  %3585 = vmatprep.subr.mxu0 0.0
  %3586 = vmatpush1.msra.mxu0 0.0
  %3587 = vmatprep.subr.mxu0 0.0
  %3588 = vmatpush1.msra.mxu0 0.0
  %3589 = vmatprep.subr.mxu0 0.0
  %3590 = vmatpush1.msra.mxu0 0.0
  %3591 = vmatprep.subr.mxu0 0.0
  %3592 = vmatpush1.msra.mxu0 0.0
  %3593 = vmatprep.subr.mxu0 0.0
  %3594 = vmatpush1.msra.mxu0 0.0
  %3595 = vmatprep.subr.mxu0 0.0
  %3596 = vmatpush1.msra.mxu0 0.0
  %3597 = vmatprep.subr.mxu0 0.0
  %3598 = vmatpush1.msra.mxu0 0.0
  %3599 = vmatprep.subr.mxu0 0.0
  %3600 = vmatpush1.msra.mxu0 0.0
  %3601 = vmatprep.subr.mxu0 0.0
  %3602 = vmatpush1.msra.mxu0 0.0
  %3603 = vmatprep.subr.mxu0 0.0
  %3604 = vmatpush1.msra.mxu0 0.0
  %3605 = vmatprep.subr.mxu0 0.0
  %3606 = vmatpush1.msra.mxu0 0.0
  %3607 = vmatprep.subr.mxu0 0.0
  %3608 = vmatpush1.msra.mxu0 0.0
  %3609 = vmatprep.subr.mxu0 0.0
  %3610 = vmatpush1.msra.mxu0 0.0
  %3611 = vmatprep.subr.mxu0 0.0
  %3612 = vmatpush1.msra.mxu0 0.0
  %3613 = vmatprep.subr.mxu0 0.0
  %3614 = vmatpush1.msra.mxu0 0.0
  %3615 = vmatprep.subr.mxu0 0.0
  %3616 = vmatpush1.msra.mxu0 0.0
  %3617 = vmatprep.subr.mxu0 0.0
  %3618 = vmatpush1.msra.mxu0 0.0
  %3619 = vmatprep.subr.mxu0 0.0
  %3620 = vmatpush1.msra.mxu0 0.0
  %3621 = vmatprep.mubr.f32.mxu0 0.0
  %3622 = vmatmul.mubr.f32.gmra.mrb[0].mxu0 %v3552
  %v3623 = vpop.f32.mrb[0].mxu0
  %v3624 = vadd.f32 %v3550, %v3623
  %v3625 = vpop.f32.mrb[0].mxu0
  %3626 = vmatprep.mubr.f32.mxu0 0.0
  %3627 = vmatmul.mubr.f32.gmra.mrb[0].mxu0 %v3555
  %v3628 = vpop.f32.mrb[0].mxu0
  %v3629 = vadd.f32 %v3550, %v3628
  %v3630 = vpop.f32.mrb[0].mxu0
  %3631 = vdwg.mxu0
  %v3632 = vadd.f32 %v1924, %v3624
  %v3633 = vadd.f32 %v1925, %v3629
  %v3634 = vld [vmem:[%s2 + $0x288] sm:$0x1]
  %v3635 = vld [vmem:[%s2 + $0x290] sm:$0x1]
  %v3636 = vsel %vm220, %v3632, 0.0
  %3637 = vadd.xlane.f32.xlu0 %v3636
  %v3638 = vpop.xlane.xlu0 %3637
  %v3639 = vsel %vm220, %v3633, 0.0
  %3640 = vadd.xlane.f32.xlu0 %v3639
  %v3641 = vpop.xlane.xlu0 %3640
  %v3642 = vmul.f32 %v3638, %v227
  %v3643 = vmul.f32 %v3641, %v227
  %v3644 = vsub.f32 %v3632, %v3642
  %v3645 = vsub.f32 %v3633, %v3643
  %v3646 = vmul.f32 %v3644, %v3644
  %v3647 = vmul.f32 %v3645, %v3645
  %v3648 = vsel %vm220, %v3646, 0.0
  %3649 = vadd.xlane.f32.xlu0 %v3648
  %v3650 = vpop.xlane.xlu0 %3649
  %v3651 = vsel %vm220, %v3647, 0.0
  %3652 = vadd.xlane.f32.xlu0 %v3651
  %v3653 = vpop.xlane.xlu0 %3652
  %v3654 = vmul.f32 %v3650, %v227
  %v3655 = vmul.f32 %v3653, %v227
  %v3656 = vadd.f32 %v3654, 1e-05
  %v3657 = vadd.f32 %v3655, 1e-05
  %v3658 = vrsqrt.pop %v3656
  %v3659 = vrsqrt.pop %v3657
  %v3660 = vmul.f32 %v3644, %v3658
  %v3661 = vmul.f32 %v3645, %v3659
  %v3662 = vlaneseq
  %v3663 = vshrl.u32 %v3662, 7
  %v3664 = vsub.s32 0, %v3663
  %v3665 = vrot.slane %v3634, %v3664
  %v3666 = vmul.f32 %v3660, %v3665
  %v3667 = vmul.f32 %v3661, %v3665
  %v3668 = vlaneseq
  %v3669 = vshrl.u32 %v3668, 7
  %v3670 = vsub.s32 0, %v3669
  %v3671 = vrot.slane %v3635, %v3670
  %v3672 = vadd.f32 %v3666, %v3671
  %v3673 = vadd.f32 %v3667, %v3671
  %v3674 = vld [vmem:[%s2 + $0x298] sm:$0xff]
  %v3675 = vld [vmem:[%s2 + $0x2a0] sm:$0xff]
  %v3676 = vld [vmem:[%s2 + $0x2a8] sm:$0xff]
  %v3677 = vld [vmem:[%s2 + $0x2b0] sm:$0xff]
  %v3678 = vld [vmem:[%s2 + $0x2b8] sm:$0x1]
  %v3679 = vlaneseq
  %v3680 = vshrl.u32 %v3679, 7
  %v3681 = vsub.s32 0, %v3680
  %v3682 = vrot.slane %v3678, %v3681
  %v3684 = vsel %vm220, %v3672, 0
  %v3687 = vsel %vm220, %v3673, 0
  %3689 = vmatprep.subr.mxu0 0.0
  %3690 = vmatpush1.msra.mxu0 %v3674
  %3691 = vmatprep.subr.mxu0 0.0
  %3692 = vmatpush1.msra.mxu0 %v3675
  %3693 = vmatprep.subr.mxu0 0.0
  %3694 = vmatpush1.msra.mxu0 %v3676
  %3695 = vmatprep.subr.mxu0 0.0
  %3696 = vmatpush1.msra.mxu0 %v3677
  %3697 = vmatprep.subr.mxu0 0.0
  %3698 = vmatpush1.msra.mxu0 0.0
  %3699 = vmatprep.subr.mxu0 0.0
  %3700 = vmatpush1.msra.mxu0 0.0
  %3701 = vmatprep.subr.mxu0 0.0
  %3702 = vmatpush1.msra.mxu0 0.0
  %3703 = vmatprep.subr.mxu0 0.0
  %3704 = vmatpush1.msra.mxu0 0.0
  %3705 = vmatprep.subr.mxu0 0.0
  %3706 = vmatpush1.msra.mxu0 0.0
  %3707 = vmatprep.subr.mxu0 0.0
  %3708 = vmatpush1.msra.mxu0 0.0
  %3709 = vmatprep.subr.mxu0 0.0
  %3710 = vmatpush1.msra.mxu0 0.0
  %3711 = vmatprep.subr.mxu0 0.0
  %3712 = vmatpush1.msra.mxu0 0.0
  %3713 = vmatprep.subr.mxu0 0.0
  %3714 = vmatpush1.msra.mxu0 0.0
  %3715 = vmatprep.subr.mxu0 0.0
  %3716 = vmatpush1.msra.mxu0 0.0
  %3717 = vmatprep.subr.mxu0 0.0
  %3718 = vmatpush1.msra.mxu0 0.0
  %3719 = vmatprep.subr.mxu0 0.0
  %3720 = vmatpush1.msra.mxu0 0.0
  %3721 = vmatprep.subr.mxu0 0.0
  %3722 = vmatpush1.msra.mxu0 0.0
  %3723 = vmatprep.subr.mxu0 0.0
  %3724 = vmatpush1.msra.mxu0 0.0
  %3725 = vmatprep.subr.mxu0 0.0
  %3726 = vmatpush1.msra.mxu0 0.0
  %3727 = vmatprep.subr.mxu0 0.0
  %3728 = vmatpush1.msra.mxu0 0.0
  %3729 = vmatprep.subr.mxu0 0.0
  %3730 = vmatpush1.msra.mxu0 0.0
  %3731 = vmatprep.subr.mxu0 0.0
  %3732 = vmatpush1.msra.mxu0 0.0
  %3733 = vmatprep.subr.mxu0 0.0
  %3734 = vmatpush1.msra.mxu0 0.0
  %3735 = vmatprep.subr.mxu0 0.0
  %3736 = vmatpush1.msra.mxu0 0.0
  %3737 = vmatprep.subr.mxu0 0.0
  %3738 = vmatpush1.msra.mxu0 0.0
  %3739 = vmatprep.subr.mxu0 0.0
  %3740 = vmatpush1.msra.mxu0 0.0
  %3741 = vmatprep.subr.mxu0 0.0
  %3742 = vmatpush1.msra.mxu0 0.0
  %3743 = vmatprep.subr.mxu0 0.0
  %3744 = vmatpush1.msra.mxu0 0.0
  %3745 = vmatprep.subr.mxu0 0.0
  %3746 = vmatpush1.msra.mxu0 0.0
  %3747 = vmatprep.subr.mxu0 0.0
  %3748 = vmatpush1.msra.mxu0 0.0
  %3749 = vmatprep.subr.mxu0 0.0
  %3750 = vmatpush1.msra.mxu0 0.0
  %3751 = vmatprep.subr.mxu0 0.0
  %3752 = vmatpush1.msra.mxu0 0.0
  %3753 = vmatprep.mubr.f32.mxu0 0.0
  %3754 = vmatmul.mubr.f32.gmra.mrb[0].mxu0 %v3684
  %v3755 = vpop.f32.mrb[0].mxu0
  %v3756 = vadd.f32 %v3682, %v3755
  %v3757 = vpop.f32.mrb[0].mxu0
  %3758 = vmatprep.mubr.f32.mxu0 0.0
  %3759 = vmatmul.mubr.f32.gmra.mrb[0].mxu0 %v3687
  %v3760 = vpop.f32.mrb[0].mxu0
  %v3761 = vadd.f32 %v3682, %v3760
  %v3762 = vpop.f32.mrb[0].mxu0
  %3763 = vdwg.mxu0
  %v3764 = vmax.f32 %v3756, 0.0
  %v3765 = vmax.f32 %v3761, 0.0
  %v3766 = vld [vmem:[%s2 + $0x2c0] sm:$0xff]
  %v3767 = vld [vmem:[%s2 + $0x2c8] sm:$0xff]
  %v3768 = vld [vmem:[%s2 + $0x2d0] sm:$0xff]
  %v3769 = vld [vmem:[%s2 + $0x2d8] sm:$0xff]
  %v3770 = vld [vmem:[%s2 + $0x2e0] sm:$0xff]
  %v3771 = vld [vmem:[%s2 + $0x2e8] sm:$0xff]
  %v3772 = vld [vmem:[%s2 + $0x2f0] sm:$0xff]
  %v3773 = vld [vmem:[%s2 + $0x2f8] sm:$0xff]
  %v3774 = vld [vmem:[%s2 + $0x300] sm:$0x1]
  %v3775 = vlaneseq
  %v3776 = vshrl.u32 %v3775, 7
  %v3777 = vsub.s32 0, %v3776
  %v3778 = vrot.slane %v3774, %v3777
  %v3780 = vsel %vm136, %v3764, 0
  %v3783 = vsel %vm136, %v3765, 0
  %3785 = vmatprep.subr.mxu0 0.0
  %3786 = vmatpush1.msra.mxu0 %v3766
  %3787 = vmatprep.subr.mxu0 0.0
  %3788 = vmatpush1.msra.mxu0 %v3767
  %3789 = vmatprep.subr.mxu0 0.0
  %3790 = vmatpush1.msra.mxu0 %v3768
  %3791 = vmatprep.subr.mxu0 0.0
  %3792 = vmatpush1.msra.mxu0 %v3769
  %3793 = vmatprep.subr.mxu0 0.0
  %3794 = vmatpush1.msra.mxu0 %v3770
  %3795 = vmatprep.subr.mxu0 0.0
  %3796 = vmatpush1.msra.mxu0 %v3771
  %3797 = vmatprep.subr.mxu0 0.0
  %3798 = vmatpush1.msra.mxu0 %v3772
  %3799 = vmatprep.subr.mxu0 0.0
  %3800 = vmatpush1.msra.mxu0 %v3773
  %3801 = vmatprep.subr.mxu0 0.0
  %3802 = vmatpush1.msra.mxu0 0.0
  %3803 = vmatprep.subr.mxu0 0.0
  %3804 = vmatpush1.msra.mxu0 0.0
  %3805 = vmatprep.subr.mxu0 0.0
  %3806 = vmatpush1.msra.mxu0 0.0
  %3807 = vmatprep.subr.mxu0 0.0
  %3808 = vmatpush1.msra.mxu0 0.0
  %3809 = vmatprep.subr.mxu0 0.0
  %3810 = vmatpush1.msra.mxu0 0.0
  %3811 = vmatprep.subr.mxu0 0.0
  %3812 = vmatpush1.msra.mxu0 0.0
  %3813 = vmatprep.subr.mxu0 0.0
  %3814 = vmatpush1.msra.mxu0 0.0
  %3815 = vmatprep.subr.mxu0 0.0
  %3816 = vmatpush1.msra.mxu0 0.0
  %3817 = vmatprep.subr.mxu0 0.0
  %3818 = vmatpush1.msra.mxu0 0.0
  %3819 = vmatprep.subr.mxu0 0.0
  %3820 = vmatpush1.msra.mxu0 0.0
  %3821 = vmatprep.subr.mxu0 0.0
  %3822 = vmatpush1.msra.mxu0 0.0
  %3823 = vmatprep.subr.mxu0 0.0
  %3824 = vmatpush1.msra.mxu0 0.0
  %3825 = vmatprep.subr.mxu0 0.0
  %3826 = vmatpush1.msra.mxu0 0.0
  %3827 = vmatprep.subr.mxu0 0.0
  %3828 = vmatpush1.msra.mxu0 0.0
  %3829 = vmatprep.subr.mxu0 0.0
  %3830 = vmatpush1.msra.mxu0 0.0
  %3831 = vmatprep.subr.mxu0 0.0
  %3832 = vmatpush1.msra.mxu0 0.0
  %3833 = vmatprep.subr.mxu0 0.0
  %3834 = vmatpush1.msra.mxu0 0.0
  %3835 = vmatprep.subr.mxu0 0.0
  %3836 = vmatpush1.msra.mxu0 0.0
  %3837 = vmatprep.subr.mxu0 0.0
  %3838 = vmatpush1.msra.mxu0 0.0
  %3839 = vmatprep.subr.mxu0 0.0
  %3840 = vmatpush1.msra.mxu0 0.0
  %3841 = vmatprep.subr.mxu0 0.0
  %3842 = vmatpush1.msra.mxu0 0.0
  %3843 = vmatprep.subr.mxu0 0.0
  %3844 = vmatpush1.msra.mxu0 0.0
  %3845 = vmatprep.subr.mxu0 0.0
  %3846 = vmatpush1.msra.mxu0 0.0
  %3847 = vmatprep.subr.mxu0 0.0
  %3848 = vmatpush1.msra.mxu0 0.0
  %3849 = vmatprep.mubr.f32.mxu0 0.0
  %3850 = vmatmul.mubr.f32.gmra.mrb[0].mxu0 %v3780
  %v3851 = vpop.f32.mrb[0].mxu0
  %v3852 = vadd.f32 %v3778, %v3851
  %v3853 = vpop.f32.mrb[0].mxu0
  %3854 = vmatprep.mubr.f32.mxu0 0.0
  %3855 = vmatmul.mubr.f32.gmra.mrb[0].mxu0 %v3783
  %v3856 = vpop.f32.mrb[0].mxu0
  %v3857 = vadd.f32 %v3778, %v3856
  %v3858 = vpop.f32.mrb[0].mxu0
  %3859 = vdwg.mxu0
  %v3860 = vadd.f32 %v3672, %v3852
  %v3861 = vadd.f32 %v3673, %v3857
  %v3862 = vld [vmem:[%s2 + $0x308] sm:$0x1]
  %v3863 = vld [vmem:[%s2 + $0x310] sm:$0x1]
  %v3864 = vsel %vm220, %v3860, 0.0
  %3865 = vadd.xlane.f32.xlu0 %v3864
  %v3866 = vpop.xlane.xlu0 %3865
  %v3867 = vsel %vm220, %v3861, 0.0
  %3868 = vadd.xlane.f32.xlu0 %v3867
  %v3869 = vpop.xlane.xlu0 %3868
  %v3870 = vmul.f32 %v3866, %v227
  %v3871 = vmul.f32 %v3869, %v227
  %v3872 = vsub.f32 %v3860, %v3870
  %v3873 = vsub.f32 %v3861, %v3871
  %v3874 = vmul.f32 %v3872, %v3872
  %v3875 = vmul.f32 %v3873, %v3873
  %v3876 = vsel %vm220, %v3874, 0.0
  %3877 = vadd.xlane.f32.xlu0 %v3876
  %v3878 = vpop.xlane.xlu0 %3877
  %v3879 = vsel %vm220, %v3875, 0.0
  %3880 = vadd.xlane.f32.xlu0 %v3879
  %v3881 = vpop.xlane.xlu0 %3880
  %v3882 = vmul.f32 %v3878, %v227
  %v3883 = vmul.f32 %v3881, %v227
  %v3884 = vadd.f32 %v3882, 1e-05
  %v3885 = vadd.f32 %v3883, 1e-05
  %v3886 = vrsqrt.pop %v3884
  %v3887 = vrsqrt.pop %v3885
  %v3888 = vmul.f32 %v3872, %v3886
  %v3889 = vmul.f32 %v3873, %v3887
  %v3890 = vlaneseq
  %v3891 = vshrl.u32 %v3890, 7
  %v3892 = vsub.s32 0, %v3891
  %v3893 = vrot.slane %v3862, %v3892
  %v3894 = vmul.f32 %v3888, %v3893
  %v3895 = vmul.f32 %v3889, %v3893
  %v3896 = vlaneseq
  %v3897 = vshrl.u32 %v3896, 7
  %v3898 = vsub.s32 0, %v3897
  %v3899 = vrot.slane %v3863, %v3898
  %v3900 = vadd.f32 %v3894, %v3899
  %v3901 = vadd.f32 %v3895, %v3899
  %v3902 = vld [vmem:[%s2 + $0x318] sm:$0x1]
  %v3903 = vld [vmem:[%s2 + $0x320] sm:$0x1]
  %v3904 = vsel %vm220, %v3900, 0.0
  %3905 = vadd.xlane.f32.xlu0 %v3904
  %v3906 = vpop.xlane.xlu0 %3905
  %v3907 = vsel %vm220, %v3901, 0.0
  %3908 = vadd.xlane.f32.xlu0 %v3907
  %v3909 = vpop.xlane.xlu0 %3908
  %v3910 = vmul.f32 %v3906, %v227
  %v3911 = vmul.f32 %v3909, %v227
  %v3912 = vsub.f32 %v3900, %v3910
  %v3913 = vsub.f32 %v3901, %v3911
  %v3914 = vmul.f32 %v3912, %v3912
  %v3915 = vmul.f32 %v3913, %v3913
  %v3916 = vsel %vm220, %v3914, 0.0
  %3917 = vadd.xlane.f32.xlu0 %v3916
  %v3918 = vpop.xlane.xlu0 %3917
  %v3919 = vsel %vm220, %v3915, 0.0
  %3920 = vadd.xlane.f32.xlu0 %v3919
  %v3921 = vpop.xlane.xlu0 %3920
  %v3922 = vmul.f32 %v3918, %v227
  %v3923 = vmul.f32 %v3921, %v227
  %v3924 = vadd.f32 %v3922, 1e-05
  %v3925 = vadd.f32 %v3923, 1e-05
  %v3926 = vrsqrt.pop %v3924
  %v3927 = vrsqrt.pop %v3925
  %v3928 = vmul.f32 %v3912, %v3926
  %v3929 = vmul.f32 %v3913, %v3927
  %v3930 = vlaneseq
  %v3931 = vshrl.u32 %v3930, 7
  %v3932 = vsub.s32 0, %v3931
  %v3933 = vrot.slane %v3902, %v3932
  %v3934 = vmul.f32 %v3928, %v3933
  %v3935 = vmul.f32 %v3929, %v3933
  %v3936 = vlaneseq
  %v3937 = vshrl.u32 %v3936, 7
  %v3938 = vsub.s32 0, %v3937
  %v3939 = vrot.slane %v3903, %v3938
  %v3940 = vadd.f32 %v3934, %v3939
  %v3941 = vadd.f32 %v3935, %v3939
  %3942 = vst.msk [vmem:[%s3] sm:$0xff] %vm220, %v3940
  %3943 = vst.msk [vmem:[%s3 + $0x8] sm:$0xff] %vm220, %v258
  %3944 = vst.msk [vmem:[%s3 + $0x10] sm:$0xff] %vm220, %v3941
  %3945 = vst.msk [vmem:[%s3 + $0x18] sm:$0xff] %vm220, %v259
  // Predicated region
  $region14: #{forward.1} parent=0 // pred_check
    _
  $region15: #{forward.1} parent=0 // pred_check_branch
    %3947 = sbr.rel (0) target = $region17
  $region16: #{forward.1} parent=0 // pred_region
    _
  $region17: #{forward.1} parent=0 // pred_fallthru
    _
  // Predicated region
  $region18: #{forward.1} parent=0 // pred_check
    _
  $region19: #{forward.1} parent=0 // pred_check_branch
    %3949 = sbr.rel (0) target = $region21
  $region20: #{forward.1} parent=0 // pred_region
    _
  $region21: #{forward.1} parent=0 // pred_fallthru
    _

</llo_original>
